<compile_context>
chip_gen: v7x
topology: tpu7x:2x2x1
jax: 0.10.0
libtpu: 0.0.40
codegen_flags: <defaults>
</compile_context>

<pallas_src>
import math

import jax
import jax.numpy as jnp
from jax.experimental import pallas as pl
from jax.experimental.pallas import tpu as pltpu


# ----------------------------------------------------------------------------
# Fused Pallas kernel (one grid step == one bag)
# ----------------------------------------------------------------------------

def _make_dds_kernel(num_layers, T, SP, H):
    H2, H4, H6 = 2 * H, 4 * H, 6 * H

    def kernel(x_ref, valid_ref, *refs):
        nlw = 4 * num_layers
        lw = refs[:nlw]
        (wattn_ref, wsen_ref, winterT_ref, binter_ref,
         woutT_ref, bout_ref) = refs[nlw:nlw + 6]
        out_ref = refs[nlw + 6]
        seq_ref = refs[nlw + 7]                        # (T*SP, 2H) merged fwd|bwd slab

        valid2 = valid_ref[...]                        # (T*SP, 1) float {0,1}

        # Static lane masks: packed gate columns are [r_f|r_b|z_f|z_b|n_f|n_b],
        # i.e. within every 2H-wide pair the first H lanes belong to fwd dir.
        col6 = jax.lax.broadcasted_iota(jnp.int32, (1, H6), 1)
        fwd6 = (col6 % H2) < H
        col2 = jax.lax.broadcasted_iota(jnp.int32, (1, H2), 1)
        fwd2 = col2 < H

        for l in range(num_layers):
            wih_ref, bih_ref, whh_ref, bhh_ref = lw[4 * l:4 * l + 4]
            whh = whh_ref[...]                         # (2H, 6H) f32, block-structured
            bhh = bhh_ref[...]                         # (1, 6H)
            bih = bih_ref[...]                         # (1, 6H)

            if l == 0:
                xin = x_ref[...]                       # (T*SP, F0) bf16
            else:
                xin = seq_ref[...].astype(jnp.bfloat16)   # snapshot of layer l-1 output
            # One whole-sequence input projection per layer (both dirs packed).
            gx = jnp.dot(xin, wih_ref[...],
                         preferred_element_type=jnp.float32) + bih     # (T*SP, 6H)

            # Fully unrolled recurrence (T small/static); fwd step t and bwd
            # step T-1-t share one block-structured MXU push per iteration.
            # TODO(synk): for long sentences (T >~ 32) switch to
            # lax.fori_loop(..., unroll=4) over a gx VMEM scratch with pl.ds.
            h = jnp.zeros((SP, H2), jnp.float32)       # [h_f | h_b]
            for t in range(T):
                tb = T - 1 - t
                sf = slice(t * SP, (t + 1) * SP)
                sb = slice(tb * SP, (tb + 1) * SP)
                vf = valid2[sf, :]                     # (SP, 1)
                vb = valid2[sb, :]
                gx_step = jnp.where(fwd6, gx[sf, :], gx[sb, :])        # (SP, 6H)
                gh = jnp.dot(h, whh, preferred_element_type=jnp.float32) + bhh
                rz = jax.nn.sigmoid(gx_step[:, 0:H4] + gh[:, 0:H4])    # one (8,128) sigmoid
                r = rz[:, 0:H2]
                z = rz[:, H2:H4]
                n = jnp.tanh(gx_step[:, H4:H6] + r * gh[:, H4:H6])     # one (8,64) tanh
                h_new = (1.0 - z) * n + z * h
                vmask = jnp.where(fwd2, vf, vb)        # per-half length mask (SP, 2H)
                h = jnp.where(vmask > 0.0, h_new, h)   # packed-seq: freeze past len
                seq_ref[sf, 0:H] = h[:, 0:H] * vf      # zeros at padded positions
                seq_ref[sb, H:H2] = h[:, H:H2] * vb
            # TODO(synk): nn.GRU inter-layer dropout (train mode only) omitted;
            # eval-mode semantics are implemented.

        # ---- word attention: softmax over the words of each sentence ----
        seq = seq_ref[...]                             # (T*SP, 2H), [fwd | bwd]
        att = jnp.sum(seq * wattn_ref[...], axis=-1, keepdims=True)    # (T*SP, 1)

        m = att[0:SP, :]
        for t in range(1, T):                          # max incl. exact-0 padded logits
            m = jnp.maximum(m, att[t * SP:(t + 1) * SP, :])  # (as in the PyTorch ref)
        denom = jnp.zeros((SP, 1), jnp.float32)
        for t in range(T):
            s = slice(t * SP, (t + 1) * SP)
            # Length mask == PyTorch's (attn != 0) mask because GRU outputs (and
            # hence logits) at padded positions are exactly zero.
            denom = denom + jnp.exp(att[s, :] - m) * valid2[s, :]
        denom = denom + (denom == 0.0).astype(jnp.float32)   # padded-sentence guard
        inv = 1.0 / denom                              # exact (reference parity)
        sen = jnp.zeros((SP, H2), jnp.float32)
        for t in range(T):                             # exp recomputed (EUP slot is free)
            s = slice(t * SP, (t + 1) * SP)
            w = jnp.exp(att[s, :] - m) * valid2[s, :] * inv
            sen = sen + seq[s, :] * w

        # ---- sentence attention (softmax over sentences) + Linear heads ----
        satt = jnp.sum(sen * wsen_ref[...], axis=-1, keepdims=True)    # (SP, 1)
        satt = satt - jnp.max(satt, axis=0, keepdims=True)
        sen_valid = valid2[0:SP, :]                    # real sentence <=> any valid word
        for t in range(1, T):
            sen_valid = jnp.maximum(sen_valid, valid2[t * SP:(t + 1) * SP, :])
        es = jnp.exp(satt) * sen_valid                 # exclude sublane-padding rows
        snorm = es / jnp.sum(es, axis=0, keepdims=True)          # exact
        pair = jnp.sum(sen * snorm, axis=0, keepdims=True)       # (1, 2H)

        hidden = jnp.dot(pair, winterT_ref[...],
                         preferred_element_type=jnp.float32) + binter_ref[...]
        hidden = jnp.maximum(hidden, 0.0)              # ReLU
        out_ref[...] = (jnp.dot(hidden, woutT_ref[...],
                                preferred_element_type=jnp.float32) + bout_ref[...])

    return kernel


# ----------------------------------------------------------------------------
# Driver: embedding glue + single pallas_call with a parallel bag grid
# ----------------------------------------------------------------------------

def dds_forward(params, sen_ids, pos1_ids, pos2_ids, lens):
    B, S, T = sen_ids.shape
    SP = ((S + 7) // 8) * 8                            # pad sentences to full sublanes
    num_layers = len(params["gru"])
    H = params["w_interT"].shape[1]
    R = params["b_out"].shape[-1]

    # XLA glue: embedding gathers + concat; time-major, sublane-padded, per bag.
    word = params["w2v"][sen_ids]                      # (B, S, T, E)
    p1 = params["pos1"][pos1_ids]                      # (B, S, T, P)
    p2 = params["pos2"][pos2_ids]                      # (B, S, T, P)
    x = jnp.concatenate([word, p1, p2], axis=-1)       # (B, S, T, F0)
    x = jnp.transpose(x, (0, 2, 1, 3))                 # (B, T, S, F0)
    x = jnp.pad(x, ((0, 0), (0, 0), (0, SP - S), (0, 0)))
    F0 = x.shape[-1]
    x = x.reshape(B, T * SP, F0).astype(jnp.bfloat16)  # bf16: halve streamed HBM bytes

    lens_p = jnp.pad(lens.astype(jnp.int32), ((0, 0), (0, SP - S)))   # (B, SP)
    valid = (jnp.arange(T)[None, :, None] < lens_p[:, None, :]).astype(jnp.float32)
    valid = valid.reshape(B, T * SP, 1)

    inputs = [x, valid]
    in_specs = [
        pl.BlockSpec((None, T * SP, F0), lambda b: (b, 0, 0)),
        pl.BlockSpec((None, T * SP, 1), lambda b: (b, 0, 0)),
    ]

    def const_spec(arr):                               # weights: VMEM-resident across bags
        return pl.BlockSpec(arr.shape, lambda b: (0,) * arr.ndim)

    for lp in params["gru"]:
        for name in ("wih", "bih", "whh", "bhh"):
            a = lp[name]
            inputs.append(a)
            in_specs.append(const_spec(a))
    for name in ("wattn", "wsen", "w_interT", "b_inter", "w_outT", "b_out"):
        a = params[name]
        inputs.append(a)
        in_specs.append(const_spec(a))

    # Advisory cost estimate so XLA can overlap the embedding glue with the call.
    flops = 0
    for l in range(num_layers):
        in_l = F0 if l == 0 else 2 * H
        flops += 2 * (T * SP) * in_l * (6 * H)         # input projections
        flops += 2 * T * SP * (2 * H) * (6 * H)        # recurrence
    flops += 2 * (2 * H) * H + 2 * H * R               # heads
    flops *= B
    transcendentals = B * (num_layers * T * SP * 6 * H + 3 * T * SP + SP)
    bytes_accessed = int(sum(int(a.size) * a.dtype.itemsize for a in inputs) + B * R * 4)

    out = pl.pallas_call(
        _make_dds_kernel(num_layers, T, SP, H),
        out_shape=jax.ShapeDtypeStruct((B, 1, R), jnp.float32),
        grid_spec=pltpu.PrefetchScalarGridSpec(
            num_scalar_prefetch=0,
            grid=(B,),
            in_specs=in_specs,
            out_specs=pl.BlockSpec((None, 1, R), lambda b: (b, 0, 0)),
            scratch_shapes=[pltpu.VMEM((T * SP, 2 * H), jnp.float32)],  # merged fwd|bwd slab
        ),
        compiler_params=pltpu.CompilerParams(
            dimension_semantics=("parallel",),         # bags shard across TCs on v7x
            vmem_limit_bytes=32 * 1024 * 1024,         # safe on v5e/v6e/v7x
        ),
        cost_estimate=pl.CostEstimate(flops=int(flops),
                                      transcendentals=int(transcendentals),
                                      bytes_accessed=bytes_accessed),
    )(*inputs)
    return out.reshape(B, R)


# ----------------------------------------------------------------------------
# Parameter init (PyTorch layout) + packing into the kernel layout
# ----------------------------------------------------------------------------

def init_params(key, num_voca, embed_dim, pos_dim, hidden_dim, num_layers,
                num_relations):
    """Deterministic PyTorch-layout parameters."""
    input_dim = embed_dim + 2 * pos_dim
    keys = iter(jax.random.split(key, 8 * num_layers + 16))
    k = 1.0 / math.sqrt(hidden_dim)

    def unif(shape):
        return jax.random.uniform(next(keys), shape, jnp.float32, -k, k)

    gru = []
    for l in range(num_layers):
        in_l = input_dim if l == 0 else 2 * hidden_dim
        layer = {}
        for d in ("f", "b"):
            layer["W_ih_" + d] = unif((3 * hidden_dim, in_l))        # rows [r; z; n]
            layer["W_hh_" + d] = unif((3 * hidden_dim, hidden_dim))
            layer["b_ih_" + d] = unif((3 * hidden_dim,))
            layer["b_hh_" + d] = unif((3 * hidden_dim,))
        gru.append(layer)

    return {
        "w2v": jax.random.normal(next(keys), (num_voca, embed_dim), jnp.float32),
        "pos1": jax.random.normal(next(keys), (num_voca, pos_dim), jnp.float32),
        "pos2": jax.random.normal(next(keys), (num_voca, pos_dim), jnp.float32),
        "gru": gru,
        "word_attn_w1": jax.random.normal(next(keys), (2 * hidden_dim,), jnp.float32),
        "sen_attn_w1": jax.random.normal(next(keys), (2 * hidden_dim,), jnp.float32),
        "W_inter": unif((hidden_dim, 2 * hidden_dim)),
        "b_inter": unif((hidden_dim,)),
        "W_out": unif((num_relations, hidden_dim)),
        "b_out": unif((num_relations,)),
    }


def pack_params(p, hidden_dim):
    """Convert PyTorch-layout weights to the packed kernel layout.

    Packed gate-column order (width 6H): [r_f | r_b | z_f | z_b | n_f | n_b].
    """
    H = hidden_dim

    def colpack(f, b):                                 # f, b: (in, 3H), cols [r|z|n]
        return jnp.concatenate(
            [f[:, 0:H], b[:, 0:H], f[:, H:2 * H], b[:, H:2 * H],
             f[:, 2 * H:3 * H], b[:, 2 * H:3 * H]], axis=1)

    gru = []
    for lp in p["gru"]:
        WihT_f, WihT_b = lp["W_ih_f"].T, lp["W_ih_b"].T        # (in, 3H)
        WhhT_f, WhhT_b = lp["W_hh_f"].T, lp["W_hh_b"].T        # (H, 3H)
        Z = jnp.zeros((H, H), jnp.float32)
        whh = jnp.concatenate([
            jnp.concatenate([WhhT_f[:, 0:H], Z, WhhT_f[:, H:2 * H], Z,
                             WhhT_f[:, 2 * H:3 * H], Z], axis=1),
            jnp.concatenate([Z, WhhT_b[:, 0:H], Z, WhhT_b[:, H:2 * H],
                             Z, WhhT_b[:, 2 * H:3 * H]], axis=1)], axis=0)  # (2H, 6H)
        gru.append({
            "wih": colpack(WihT_f, WihT_b).astype(jnp.bfloat16),           # (in, 6H)
            "bih": colpack(lp["b_ih_f"][None, :], lp["b_ih_b"][None, :]),  # (1, 6H)
            "whh": whh,                                                    # (2H, 6H) f32
            "bhh": colpack(lp["b_hh_f"][None, :], lp["b_hh_b"][None, :]),  # (1, 6H)
        })

    return {
        "w2v": p["w2v"], "pos1": p["pos1"], "pos2": p["pos2"],
        "gru": gru,
        "wattn": p["word_attn_w1"][None, :],           # (1, 2H), [fwd | bwd]
        "wsen": p["sen_attn_w1"][None, :],             # (1, 2H)
        "w_interT": p["W_inter"].T,                    # (2H, H)
        "b_inter": p["b_inter"][None, :],              # (1, H)
        "w_outT": p["W_out"].T,                        # (H, R)
        "b_out": p["b_out"][None, :],                  # (1, R)
    }


if __name__ == "__main__":
    # Small config consistent with the module's __init__.
    num_voca = 50
    embed_dim = 16
    pos_dim = 4
    hidden_dim = 32
    num_layers = 2
    num_relations = 5

    B = 4           # independent bags (grid / megacore axis)
    S = 3           # sentences per bag
    T = 8           # max sentence length

    key = jax.random.PRNGKey(0)
    kp, ks, k1, k2, kl = jax.random.split(key, 5)
    raw = init_params(kp, num_voca, embed_dim, pos_dim, hidden_dim,
                      num_layers, num_relations)
    params = pack_params(raw, hidden_dim)

    sen_ids = jax.random.randint(ks, (B, S, T), 0, num_voca, dtype=jnp.int32)
    pos1_ids = jax.random.randint(k1, (B, S, T), 0, num_voca, dtype=jnp.int32)
    pos2_ids = jax.random.randint(k2, (B, S, T), 0, num_voca, dtype=jnp.int32)
    lens = jax.random.randint(kl, (B, S), 1, T + 1, dtype=jnp.int32)

    fwd = jax.jit(dds_forward)
    out = jax.block_until_ready(fwd(params, sen_ids, pos1_ids, pos2_ids, lens))
    assert out.shape == (B, num_relations)
    assert bool(jnp.all(jnp.isfinite(out)))
    print("KERNEL_OK")
</pallas_src>

<mosaic_0001>
module attributes {stable_mosaic.version = 11 : i64} {
  func.func @kernel(%arg0: i32, %arg1: memref<1x64x24xbf16, #tpu.memory_space<vmem>>, %arg2: memref<1x64x1xf32, #tpu.memory_space<vmem>>, %arg3: memref<24x192xbf16, #tpu.memory_space<vmem>>, %arg4: memref<1x192xf32, #tpu.memory_space<vmem>>, %arg5: memref<64x192xf32, #tpu.memory_space<vmem>>, %arg6: memref<1x192xf32, #tpu.memory_space<vmem>>, %arg7: memref<64x192xbf16, #tpu.memory_space<vmem>>, %arg8: memref<1x192xf32, #tpu.memory_space<vmem>>, %arg9: memref<64x192xf32, #tpu.memory_space<vmem>>, %arg10: memref<1x192xf32, #tpu.memory_space<vmem>>, %arg11: memref<1x64xf32, #tpu.memory_space<vmem>>, %arg12: memref<1x64xf32, #tpu.memory_space<vmem>>, %arg13: memref<64x32xf32, #tpu.memory_space<vmem>>, %arg14: memref<1x32xf32, #tpu.memory_space<vmem>>, %arg15: memref<32x5xf32, #tpu.memory_space<vmem>>, %arg16: memref<1x5xf32, #tpu.memory_space<vmem>>, %arg17: memref<1x1x5xf32, #tpu.memory_space<vmem>>, %arg18: memref<64x64xf32, #tpu.memory_space<vmem>>) attributes {dimension_semantics = [#tpu.dimension_semantics<parallel>], iteration_bounds = array<i64: 4>, scalar_prefetch = 0 : i64, scratch_operands = 1 : i64, tpu.core_type = #tpu.core_type<tc>, window_params = [{transform_indices = @transform_0, window_bounds = array<i64: 1, 64, 24>}, {transform_indices = @transform_1, window_bounds = array<i64: 1, 64, 1>}, {pipeline_mode = #tpu.pipeline_mode<synchronous>, transform_indices = @transform_2, window_bounds = array<i64: 24, 192>}, {pipeline_mode = #tpu.pipeline_mode<synchronous>, transform_indices = @transform_3, window_bounds = array<i64: 1, 192>}, {pipeline_mode = #tpu.pipeline_mode<synchronous>, transform_indices = @transform_4, window_bounds = array<i64: 64, 192>}, {pipeline_mode = #tpu.pipeline_mode<synchronous>, transform_indices = @transform_5, window_bounds = array<i64: 1, 192>}, {pipeline_mode = #tpu.pipeline_mode<synchronous>, transform_indices = @transform_6, window_bounds = array<i64: 64, 192>}, {pipeline_mode = #tpu.pipeline_mode<synchronous>, transform_indices = @transform_7, window_bounds = array<i64: 1, 192>}, {pipeline_mode = #tpu.pipeline_mode<synchronous>, transform_indices = @transform_8, window_bounds = array<i64: 64, 192>}, {pipeline_mode = #tpu.pipeline_mode<synchronous>, transform_indices = @transform_9, window_bounds = array<i64: 1, 192>}, {pipeline_mode = #tpu.pipeline_mode<synchronous>, transform_indices = @transform_10, window_bounds = array<i64: 1, 64>}, {pipeline_mode = #tpu.pipeline_mode<synchronous>, transform_indices = @transform_11, window_bounds = array<i64: 1, 64>}, {pipeline_mode = #tpu.pipeline_mode<synchronous>, transform_indices = @transform_12, window_bounds = array<i64: 64, 32>}, {pipeline_mode = #tpu.pipeline_mode<synchronous>, transform_indices = @transform_13, window_bounds = array<i64: 1, 32>}, {pipeline_mode = #tpu.pipeline_mode<synchronous>, transform_indices = @transform_14, window_bounds = array<i64: 32, 5>}, {pipeline_mode = #tpu.pipeline_mode<synchronous>, transform_indices = @transform_15, window_bounds = array<i64: 1, 5>}, {transform_indices = @transform_16, window_bounds = array<i64: 1, 1, 5>}]} {
    %c0 = arith.constant 0 : index
    %c0_0 = arith.constant 0 : index
    %c0_1 = arith.constant 0 : index
    %0 = vector.load %arg2[%c0, %c0_0, %c0_1] : memref<1x64x1xf32, #tpu.memory_space<vmem>>, vector<1x64x1xf32>
    %1 = vector.shape_cast %0 : vector<1x64x1xf32> to vector<64x1xf32>
    %2 = tpu.iota {dimensions = array<i32: 1>} : vector<1x192xi32>
    %c64_i32 = arith.constant 64 : i32
    %c0_i32 = arith.constant 0 : i32
    %3 = arith.cmpi eq, %c64_i32, %c0_i32 : i32
    %c1_i32 = arith.constant 1 : i32
    %4 = arith.select %3, %c1_i32, %c64_i32 : i32
    %5 = vector.broadcast %4 : i32 to vector<1x192xi32>
    %6 = arith.remsi %2, %5 : vector<1x192xi32>
    %c0_i32_2 = arith.constant 0 : i32
    %7 = vector.broadcast %c0_i32_2 : i32 to vector<1x192xi32>
    %8 = arith.cmpi ne, %6, %7 : vector<1x192xi32>
    %c0_i32_3 = arith.constant 0 : i32
    %9 = vector.broadcast %c0_i32_3 : i32 to vector<1x192xi32>
    %10 = arith.cmpi slt, %6, %9 : vector<1x192xi32>
    %c0_i32_4 = arith.constant 0 : i32
    %11 = arith.cmpi slt, %4, %c0_i32_4 : i32
    %12 = vector.broadcast %11 : i1 to vector<1x192xi1>
    %13 = vector.broadcast %12 : vector<1x192xi1> to vector<1x192xi1>
    %14 = arith.xori %10, %13 : vector<1x192xi1>
    %15 = arith.andi %14, %8 : vector<1x192xi1>
    %16 = vector.broadcast %4 : i32 to vector<1x192xi32>
    %17 = arith.addi %6, %16 : vector<1x192xi32>
    %18 = arith.select %15, %17, %6 : vector<1x192xi1>, vector<1x192xi32>
    %c32_i32 = arith.constant 32 : i32
    %19 = vector.broadcast %c32_i32 : i32 to vector<1x192xi32>
    %20 = arith.cmpi slt, %18, %19 : vector<1x192xi32>
    %21 = tpu.iota {dimensions = array<i32: 1>} : vector<1x64xi32>
    %c32_i32_5 = arith.constant 32 : i32
    %22 = vector.broadcast %c32_i32_5 : i32 to vector<1x64xi32>
    %23 = arith.cmpi slt, %21, %22 : vector<1x64xi32>
    %c0_6 = arith.constant 0 : index
    %c0_7 = arith.constant 0 : index
    %24 = vector.load %arg5[%c0_6, %c0_7] : memref<64x192xf32, #tpu.memory_space<vmem>>, vector<64x192xf32>
    %c0_8 = arith.constant 0 : index
    %c0_9 = arith.constant 0 : index
    %25 = vector.load %arg6[%c0_8, %c0_9] : memref<1x192xf32, #tpu.memory_space<vmem>>, vector<1x192xf32>
    %c0_10 = arith.constant 0 : index
    %c0_11 = arith.constant 0 : index
    %26 = vector.load %arg4[%c0_10, %c0_11] : memref<1x192xf32, #tpu.memory_space<vmem>>, vector<1x192xf32>
    %c0_12 = arith.constant 0 : index
    %c0_13 = arith.constant 0 : index
    %c0_14 = arith.constant 0 : index
    %27 = vector.load %arg1[%c0_12, %c0_13, %c0_14] : memref<1x64x24xbf16, #tpu.memory_space<vmem>>, vector<1x64x24xbf16>
    %28 = vector.shape_cast %27 : vector<1x64x24xbf16> to vector<64x24xbf16>
    %c0_15 = arith.constant 0 : index
    %c0_16 = arith.constant 0 : index
    %29 = vector.load %arg3[%c0_15, %c0_16] : memref<24x192xbf16, #tpu.memory_space<vmem>>, vector<24x192xbf16>
    %cst = arith.constant dense<0.000000e+00> : vector<64x192xf32>
    %30 = tpu.matmul %28, %29, %cst {dimension_numbers = #tpu.dot_dimension_numbers<[1], [0], [0], [1], [0, 0, 1, 1], [], []>} : vector<64x24xbf16>, vector<24x192xbf16>, vector<64x192xf32> -> vector<64x192xf32>
    %31 = vector.broadcast %26 : vector<1x192xf32> to vector<64x192xf32>
    %32 = arith.addf %30, %31 : vector<64x192xf32>
    %cst_17 = arith.constant 0.000000e+00 : f32
    %33 = vector.broadcast %cst_17 : f32 to vector<8x64xf32>
    %34 = vector.extract_strided_slice %1 {offsets = [0, 0], sizes = [8, 1], strides = [1, 1]} : vector<64x1xf32> to vector<8x1xf32>
    %35 = vector.extract_strided_slice %1 {offsets = [56, 0], sizes = [8, 1], strides = [1, 1]} : vector<64x1xf32> to vector<8x1xf32>
    %36 = vector.extract_strided_slice %32 {offsets = [0, 0], sizes = [8, 192], strides = [1, 1]} : vector<64x192xf32> to vector<8x192xf32>
    %37 = vector.extract_strided_slice %32 {offsets = [56, 0], sizes = [8, 192], strides = [1, 1]} : vector<64x192xf32> to vector<8x192xf32>
    %38 = vector.shape_cast %20 : vector<1x192xi1> to vector<1x192xi1>
    %39 = vector.broadcast %38 : vector<1x192xi1> to vector<8x192xi1>
    %40 = arith.select %39, %36, %37 : vector<8x192xi1>, vector<8x192xf32>
    %cst_18 = arith.constant dense<0.000000e+00> : vector<8x192xf32>
    %41 = tpu.matmul %33, %24, %cst_18 {dimension_numbers = #tpu.dot_dimension_numbers<[1], [0], [0], [1], [0, 0, 1, 1], [], []>} : vector<8x64xf32>, vector<64x192xf32>, vector<8x192xf32> -> vector<8x192xf32>
    %42 = vector.broadcast %25 : vector<1x192xf32> to vector<8x192xf32>
    %43 = arith.addf %41, %42 : vector<8x192xf32>
    %44 = vector.extract_strided_slice %40 {offsets = [0, 0], sizes = [8, 128], strides = [1, 1]} : vector<8x192xf32> to vector<8x128xf32>
    %45 = vector.extract_strided_slice %43 {offsets = [0, 0], sizes = [8, 128], strides = [1, 1]} : vector<8x192xf32> to vector<8x128xf32>
    %46 = arith.addf %44, %45 : vector<8x128xf32>
    %47 = arith.negf %46 : vector<8x128xf32>
    %48 = math.exp %47 : vector<8x128xf32>
    %cst_19 = arith.constant 1.000000e+00 : f32
    %49 = vector.broadcast %cst_19 : f32 to vector<8x128xf32>
    %50 = arith.addf %49, %48 : vector<8x128xf32>
    %51 = arith.divf %49, %50 : vector<8x128xf32>
    %52 = vector.extract_strided_slice %51 {offsets = [0, 0], sizes = [8, 64], strides = [1, 1]} : vector<8x128xf32> to vector<8x64xf32>
    %53 = vector.extract_strided_slice %51 {offsets = [0, 64], sizes = [8, 64], strides = [1, 1]} : vector<8x128xf32> to vector<8x64xf32>
    %54 = vector.extract_strided_slice %40 {offsets = [0, 128], sizes = [8, 64], strides = [1, 1]} : vector<8x192xf32> to vector<8x64xf32>
    %55 = vector.extract_strided_slice %43 {offsets = [0, 128], sizes = [8, 64], strides = [1, 1]} : vector<8x192xf32> to vector<8x64xf32>
    %56 = arith.mulf %52, %55 : vector<8x64xf32>
    %57 = arith.addf %54, %56 : vector<8x64xf32>
    %58 = math.tanh %57 : vector<8x64xf32>
    %cst_20 = arith.constant 1.000000e+00 : f32
    %59 = vector.broadcast %cst_20 : f32 to vector<8x64xf32>
    %60 = arith.subf %59, %53 : vector<8x64xf32>
    %61 = arith.mulf %60, %58 : vector<8x64xf32>
    %62 = arith.mulf %53, %33 : vector<8x64xf32>
    %63 = arith.addf %61, %62 : vector<8x64xf32>
    %64 = vector.shape_cast %23 : vector<1x64xi1> to vector<1x64xi1>
    %65 = vector.broadcast %64 : vector<1x64xi1> to vector<8x64xi1>
    %66 = vector.shape_cast %34 : vector<8x1xf32> to vector<8x1xf32>
    %67 = vector.broadcast %66 : vector<8x1xf32> to vector<8x64xf32>
    %68 = vector.shape_cast %35 : vector<8x1xf32> to vector<8x1xf32>
    %69 = vector.broadcast %68 : vector<8x1xf32> to vector<8x64xf32>
    %70 = arith.select %65, %67, %69 : vector<8x64xi1>, vector<8x64xf32>
    %cst_21 = arith.constant 0.000000e+00 : f32
    %71 = vector.broadcast %cst_21 : f32 to vector<8x64xf32>
    %72 = arith.cmpf ogt, %70, %71 : vector<8x64xf32>
    %73 = arith.select %72, %63, %33 : vector<8x64xi1>, vector<8x64xf32>
    %74 = vector.extract_strided_slice %73 {offsets = [0, 0], sizes = [8, 32], strides = [1, 1]} : vector<8x64xf32> to vector<8x32xf32>
    %75 = vector.broadcast %34 : vector<8x1xf32> to vector<8x32xf32>
    %76 = arith.mulf %74, %75 : vector<8x32xf32>
    %c0_22 = arith.constant 0 : index
    %c0_23 = arith.constant 0 : index
    %77 = vector.load %arg18[%c0_22, %c0_23] : memref<64x64xf32, #tpu.memory_space<vmem>>, vector<8x32xf32>
    tpu.vector_store %arg18[%c0_22, %c0_23], %76 {strides = array<i32>} : memref<64x64xf32, #tpu.memory_space<vmem>>, vector<8x32xf32>,
    %78 = vector.extract_strided_slice %73 {offsets = [0, 32], sizes = [8, 32], strides = [1, 1]} : vector<8x64xf32> to vector<8x32xf32>
    %79 = vector.broadcast %35 : vector<8x1xf32> to vector<8x32xf32>
    %80 = arith.mulf %78, %79 : vector<8x32xf32>
    %c56 = arith.constant 56 : index
    %c32 = arith.constant 32 : index
    %81 = vector.load %arg18[%c56, %c32] : memref<64x64xf32, #tpu.memory_space<vmem>>, vector<8x32xf32>
    tpu.vector_store %arg18[%c56, %c32], %80 {strides = array<i32>} : memref<64x64xf32, #tpu.memory_space<vmem>>, vector<8x32xf32>,
    %82 = vector.extract_strided_slice %1 {offsets = [8, 0], sizes = [8, 1], strides = [1, 1]} : vector<64x1xf32> to vector<8x1xf32>
    %83 = vector.extract_strided_slice %1 {offsets = [48, 0], sizes = [8, 1], strides = [1, 1]} : vector<64x1xf32> to vector<8x1xf32>
    %84 = vector.extract_strided_slice %32 {offsets = [8, 0], sizes = [8, 192], strides = [1, 1]} : vector<64x192xf32> to vector<8x192xf32>
    %85 = vector.extract_strided_slice %32 {offsets = [48, 0], sizes = [8, 192], strides = [1, 1]} : vector<64x192xf32> to vector<8x192xf32>
    %86 = vector.shape_cast %20 : vector<1x192xi1> to vector<1x192xi1>
    %87 = vector.broadcast %86 : vector<1x192xi1> to vector<8x192xi1>
    %88 = arith.select %87, %84, %85 : vector<8x192xi1>, vector<8x192xf32>
    %cst_24 = arith.constant dense<0.000000e+00> : vector<8x192xf32>
    %89 = tpu.matmul %73, %24, %cst_24 {dimension_numbers = #tpu.dot_dimension_numbers<[1], [0], [0], [1], [0, 0, 1, 1], [], []>} : vector<8x64xf32>, vector<64x192xf32>, vector<8x192xf32> -> vector<8x192xf32>
    %90 = vector.broadcast %25 : vector<1x192xf32> to vector<8x192xf32>
    %91 = arith.addf %89, %90 : vector<8x192xf32>
    %92 = vector.extract_strided_slice %88 {offsets = [0, 0], sizes = [8, 128], strides = [1, 1]} : vector<8x192xf32> to vector<8x128xf32>
    %93 = vector.extract_strided_slice %91 {offsets = [0, 0], sizes = [8, 128], strides = [1, 1]} : vector<8x192xf32> to vector<8x128xf32>
    %94 = arith.addf %92, %93 : vector<8x128xf32>
    %95 = arith.negf %94 : vector<8x128xf32>
    %96 = math.exp %95 : vector<8x128xf32>
    %cst_25 = arith.constant 1.000000e+00 : f32
    %97 = vector.broadcast %cst_25 : f32 to vector<8x128xf32>
    %98 = arith.addf %97, %96 : vector<8x128xf32>
    %99 = arith.divf %97, %98 : vector<8x128xf32>
    %100 = vector.extract_strided_slice %99 {offsets = [0, 0], sizes = [8, 64], strides = [1, 1]} : vector<8x128xf32> to vector<8x64xf32>
    %101 = vector.extract_strided_slice %99 {offsets = [0, 64], sizes = [8, 64], strides = [1, 1]} : vector<8x128xf32> to vector<8x64xf32>
    %102 = vector.extract_strided_slice %88 {offsets = [0, 128], sizes = [8, 64], strides = [1, 1]} : vector<8x192xf32> to vector<8x64xf32>
    %103 = vector.extract_strided_slice %91 {offsets = [0, 128], sizes = [8, 64], strides = [1, 1]} : vector<8x192xf32> to vector<8x64xf32>
    %104 = arith.mulf %100, %103 : vector<8x64xf32>
    %105 = arith.addf %102, %104 : vector<8x64xf32>
    %106 = math.tanh %105 : vector<8x64xf32>
    %cst_26 = arith.constant 1.000000e+00 : f32
    %107 = vector.broadcast %cst_26 : f32 to vector<8x64xf32>
    %108 = arith.subf %107, %101 : vector<8x64xf32>
    %109 = arith.mulf %108, %106 : vector<8x64xf32>
    %110 = arith.mulf %101, %73 : vector<8x64xf32>
    %111 = arith.addf %109, %110 : vector<8x64xf32>
    %112 = vector.shape_cast %23 : vector<1x64xi1> to vector<1x64xi1>
    %113 = vector.broadcast %112 : vector<1x64xi1> to vector<8x64xi1>
    %114 = vector.shape_cast %82 : vector<8x1xf32> to vector<8x1xf32>
    %115 = vector.broadcast %114 : vector<8x1xf32> to vector<8x64xf32>
    %116 = vector.shape_cast %83 : vector<8x1xf32> to vector<8x1xf32>
    %117 = vector.broadcast %116 : vector<8x1xf32> to vector<8x64xf32>
    %118 = arith.select %113, %115, %117 : vector<8x64xi1>, vector<8x64xf32>
    %cst_27 = arith.constant 0.000000e+00 : f32
    %119 = vector.broadcast %cst_27 : f32 to vector<8x64xf32>
    %120 = arith.cmpf ogt, %118, %119 : vector<8x64xf32>
    %121 = arith.select %120, %111, %73 : vector<8x64xi1>, vector<8x64xf32>
    %122 = vector.extract_strided_slice %121 {offsets = [0, 0], sizes = [8, 32], strides = [1, 1]} : vector<8x64xf32> to vector<8x32xf32>
    %123 = vector.broadcast %82 : vector<8x1xf32> to vector<8x32xf32>
    %124 = arith.mulf %122, %123 : vector<8x32xf32>
    %c8 = arith.constant 8 : index
    %c0_28 = arith.constant 0 : index
    %125 = vector.load %arg18[%c8, %c0_28] : memref<64x64xf32, #tpu.memory_space<vmem>>, vector<8x32xf32>
    tpu.vector_store %arg18[%c8, %c0_28], %124 {strides = array<i32>} : memref<64x64xf32, #tpu.memory_space<vmem>>, vector<8x32xf32>,
    %126 = vector.extract_strided_slice %121 {offsets = [0, 32], sizes = [8, 32], strides = [1, 1]} : vector<8x64xf32> to vector<8x32xf32>
    %127 = vector.broadcast %83 : vector<8x1xf32> to vector<8x32xf32>
    %128 = arith.mulf %126, %127 : vector<8x32xf32>
    %c48 = arith.constant 48 : index
    %c32_29 = arith.constant 32 : index
    %129 = vector.load %arg18[%c48, %c32_29] : memref<64x64xf32, #tpu.memory_space<vmem>>, vector<8x32xf32>
    tpu.vector_store %arg18[%c48, %c32_29], %128 {strides = array<i32>} : memref<64x64xf32, #tpu.memory_space<vmem>>, vector<8x32xf32>,
    %130 = vector.extract_strided_slice %1 {offsets = [16, 0], sizes = [8, 1], strides = [1, 1]} : vector<64x1xf32> to vector<8x1xf32>
    %131 = vector.extract_strided_slice %1 {offsets = [40, 0], sizes = [8, 1], strides = [1, 1]} : vector<64x1xf32> to vector<8x1xf32>
    %132 = vector.extract_strided_slice %32 {offsets = [16, 0], sizes = [8, 192], strides = [1, 1]} : vector<64x192xf32> to vector<8x192xf32>
    %133 = vector.extract_strided_slice %32 {offsets = [40, 0], sizes = [8, 192], strides = [1, 1]} : vector<64x192xf32> to vector<8x192xf32>
    %134 = vector.shape_cast %20 : vector<1x192xi1> to vector<1x192xi1>
    %135 = vector.broadcast %134 : vector<1x192xi1> to vector<8x192xi1>
    %136 = arith.select %135, %132, %133 : vector<8x192xi1>, vector<8x192xf32>
    %cst_30 = arith.constant dense<0.000000e+00> : vector<8x192xf32>
    %137 = tpu.matmul %121, %24, %cst_30 {dimension_numbers = #tpu.dot_dimension_numbers<[1], [0], [0], [1], [0, 0, 1, 1], [], []>} : vector<8x64xf32>, vector<64x192xf32>, vector<8x192xf32> -> vector<8x192xf32>
    %138 = vector.broadcast %25 : vector<1x192xf32> to vector<8x192xf32>
    %139 = arith.addf %137, %138 : vector<8x192xf32>
    %140 = vector.extract_strided_slice %136 {offsets = [0, 0], sizes = [8, 128], strides = [1, 1]} : vector<8x192xf32> to vector<8x128xf32>
    %141 = vector.extract_strided_slice %139 {offsets = [0, 0], sizes = [8, 128], strides = [1, 1]} : vector<8x192xf32> to vector<8x128xf32>
    %142 = arith.addf %140, %141 : vector<8x128xf32>
    %143 = arith.negf %142 : vector<8x128xf32>
    %144 = math.exp %143 : vector<8x128xf32>
    %cst_31 = arith.constant 1.000000e+00 : f32
    %145 = vector.broadcast %cst_31 : f32 to vector<8x128xf32>
    %146 = arith.addf %145, %144 : vector<8x128xf32>
    %147 = arith.divf %145, %146 : vector<8x128xf32>
    %148 = vector.extract_strided_slice %147 {offsets = [0, 0], sizes = [8, 64], strides = [1, 1]} : vector<8x128xf32> to vector<8x64xf32>
    %149 = vector.extract_strided_slice %147 {offsets = [0, 64], sizes = [8, 64], strides = [1, 1]} : vector<8x128xf32> to vector<8x64xf32>
    %150 = vector.extract_strided_slice %136 {offsets = [0, 128], sizes = [8, 64], strides = [1, 1]} : vector<8x192xf32> to vector<8x64xf32>
    %151 = vector.extract_strided_slice %139 {offsets = [0, 128], sizes = [8, 64], strides = [1, 1]} : vector<8x192xf32> to vector<8x64xf32>
    %152 = arith.mulf %148, %151 : vector<8x64xf32>
    %153 = arith.addf %150, %152 : vector<8x64xf32>
    %154 = math.tanh %153 : vector<8x64xf32>
    %cst_32 = arith.constant 1.000000e+00 : f32
    %155 = vector.broadcast %cst_32 : f32 to vector<8x64xf32>
    %156 = arith.subf %155, %149 : vector<8x64xf32>
    %157 = arith.mulf %156, %154 : vector<8x64xf32>
    %158 = arith.mulf %149, %121 : vector<8x64xf32>
    %159 = arith.addf %157, %158 : vector<8x64xf32>
    %160 = vector.shape_cast %23 : vector<1x64xi1> to vector<1x64xi1>
    %161 = vector.broadcast %160 : vector<1x64xi1> to vector<8x64xi1>
    %162 = vector.shape_cast %130 : vector<8x1xf32> to vector<8x1xf32>
    %163 = vector.broadcast %162 : vector<8x1xf32> to vector<8x64xf32>
    %164 = vector.shape_cast %131 : vector<8x1xf32> to vector<8x1xf32>
    %165 = vector.broadcast %164 : vector<8x1xf32> to vector<8x64xf32>
    %166 = arith.select %161, %163, %165 : vector<8x64xi1>, vector<8x64xf32>
    %cst_33 = arith.constant 0.000000e+00 : f32
    %167 = vector.broadcast %cst_33 : f32 to vector<8x64xf32>
    %168 = arith.cmpf ogt, %166, %167 : vector<8x64xf32>
    %169 = arith.select %168, %159, %121 : vector<8x64xi1>, vector<8x64xf32>
    %170 = vector.extract_strided_slice %169 {offsets = [0, 0], sizes = [8, 32], strides = [1, 1]} : vector<8x64xf32> to vector<8x32xf32>
    %171 = vector.broadcast %130 : vector<8x1xf32> to vector<8x32xf32>
    %172 = arith.mulf %170, %171 : vector<8x32xf32>
    %c16 = arith.constant 16 : index
    %c0_34 = arith.constant 0 : index
    %173 = vector.load %arg18[%c16, %c0_34] : memref<64x64xf32, #tpu.memory_space<vmem>>, vector<8x32xf32>
    tpu.vector_store %arg18[%c16, %c0_34], %172 {strides = array<i32>} : memref<64x64xf32, #tpu.memory_space<vmem>>, vector<8x32xf32>,
    %174 = vector.extract_strided_slice %169 {offsets = [0, 32], sizes = [8, 32], strides = [1, 1]} : vector<8x64xf32> to vector<8x32xf32>
    %175 = vector.broadcast %131 : vector<8x1xf32> to vector<8x32xf32>
    %176 = arith.mulf %174, %175 : vector<8x32xf32>
    %c40 = arith.constant 40 : index
    %c32_35 = arith.constant 32 : index
    %177 = vector.load %arg18[%c40, %c32_35] : memref<64x64xf32, #tpu.memory_space<vmem>>, vector<8x32xf32>
    tpu.vector_store %arg18[%c40, %c32_35], %176 {strides = array<i32>} : memref<64x64xf32, #tpu.memory_space<vmem>>, vector<8x32xf32>,
    %178 = vector.extract_strided_slice %1 {offsets = [24, 0], sizes = [8, 1], strides = [1, 1]} : vector<64x1xf32> to vector<8x1xf32>
    %179 = vector.extract_strided_slice %1 {offsets = [32, 0], sizes = [8, 1], strides = [1, 1]} : vector<64x1xf32> to vector<8x1xf32>
    %180 = vector.extract_strided_slice %32 {offsets = [24, 0], sizes = [8, 192], strides = [1, 1]} : vector<64x192xf32> to vector<8x192xf32>
    %181 = vector.extract_strided_slice %32 {offsets = [32, 0], sizes = [8, 192], strides = [1, 1]} : vector<64x192xf32> to vector<8x192xf32>
    %182 = vector.shape_cast %20 : vector<1x192xi1> to vector<1x192xi1>
    %183 = vector.broadcast %182 : vector<1x192xi1> to vector<8x192xi1>
    %184 = arith.select %183, %180, %181 : vector<8x192xi1>, vector<8x192xf32>
    %cst_36 = arith.constant dense<0.000000e+00> : vector<8x192xf32>
    %185 = tpu.matmul %169, %24, %cst_36 {dimension_numbers = #tpu.dot_dimension_numbers<[1], [0], [0], [1], [0, 0, 1, 1], [], []>} : vector<8x64xf32>, vector<64x192xf32>, vector<8x192xf32> -> vector<8x192xf32>
    %186 = vector.broadcast %25 : vector<1x192xf32> to vector<8x192xf32>
    %187 = arith.addf %185, %186 : vector<8x192xf32>
    %188 = vector.extract_strided_slice %184 {offsets = [0, 0], sizes = [8, 128], strides = [1, 1]} : vector<8x192xf32> to vector<8x128xf32>
    %189 = vector.extract_strided_slice %187 {offsets = [0, 0], sizes = [8, 128], strides = [1, 1]} : vector<8x192xf32> to vector<8x128xf32>
    %190 = arith.addf %188, %189 : vector<8x128xf32>
    %191 = arith.negf %190 : vector<8x128xf32>
    %192 = math.exp %191 : vector<8x128xf32>
    %cst_37 = arith.constant 1.000000e+00 : f32
    %193 = vector.broadcast %cst_37 : f32 to vector<8x128xf32>
    %194 = arith.addf %193, %192 : vector<8x128xf32>
    %195 = arith.divf %193, %194 : vector<8x128xf32>
    %196 = vector.extract_strided_slice %195 {offsets = [0, 0], sizes = [8, 64], strides = [1, 1]} : vector<8x128xf32> to vector<8x64xf32>
    %197 = vector.extract_strided_slice %195 {offsets = [0, 64], sizes = [8, 64], strides = [1, 1]} : vector<8x128xf32> to vector<8x64xf32>
    %198 = vector.extract_strided_slice %184 {offsets = [0, 128], sizes = [8, 64], strides = [1, 1]} : vector<8x192xf32> to vector<8x64xf32>
    %199 = vector.extract_strided_slice %187 {offsets = [0, 128], sizes = [8, 64], strides = [1, 1]} : vector<8x192xf32> to vector<8x64xf32>
    %200 = arith.mulf %196, %199 : vector<8x64xf32>
    %201 = arith.addf %198, %200 : vector<8x64xf32>
    %202 = math.tanh %201 : vector<8x64xf32>
    %cst_38 = arith.constant 1.000000e+00 : f32
    %203 = vector.broadcast %cst_38 : f32 to vector<8x64xf32>
    %204 = arith.subf %203, %197 : vector<8x64xf32>
    %205 = arith.mulf %204, %202 : vector<8x64xf32>
    %206 = arith.mulf %197, %169 : vector<8x64xf32>
    %207 = arith.addf %205, %206 : vector<8x64xf32>
    %208 = vector.shape_cast %23 : vector<1x64xi1> to vector<1x64xi1>
    %209 = vector.broadcast %208 : vector<1x64xi1> to vector<8x64xi1>
    %210 = vector.shape_cast %178 : vector<8x1xf32> to vector<8x1xf32>
    %211 = vector.broadcast %210 : vector<8x1xf32> to vector<8x64xf32>
    %212 = vector.shape_cast %179 : vector<8x1xf32> to vector<8x1xf32>
    %213 = vector.broadcast %212 : vector<8x1xf32> to vector<8x64xf32>
    %214 = arith.select %209, %211, %213 : vector<8x64xi1>, vector<8x64xf32>
    %cst_39 = arith.constant 0.000000e+00 : f32
    %215 = vector.broadcast %cst_39 : f32 to vector<8x64xf32>
    %216 = arith.cmpf ogt, %214, %215 : vector<8x64xf32>
    %217 = arith.select %216, %207, %169 : vector<8x64xi1>, vector<8x64xf32>
    %218 = vector.extract_strided_slice %217 {offsets = [0, 0], sizes = [8, 32], strides = [1, 1]} : vector<8x64xf32> to vector<8x32xf32>
    %219 = vector.broadcast %178 : vector<8x1xf32> to vector<8x32xf32>
    %220 = arith.mulf %218, %219 : vector<8x32xf32>
    %c24 = arith.constant 24 : index
    %c0_40 = arith.constant 0 : index
    %221 = vector.load %arg18[%c24, %c0_40] : memref<64x64xf32, #tpu.memory_space<vmem>>, vector<8x32xf32>
    tpu.vector_store %arg18[%c24, %c0_40], %220 {strides = array<i32>} : memref<64x64xf32, #tpu.memory_space<vmem>>, vector<8x32xf32>,
    %222 = vector.extract_strided_slice %217 {offsets = [0, 32], sizes = [8, 32], strides = [1, 1]} : vector<8x64xf32> to vector<8x32xf32>
    %223 = vector.broadcast %179 : vector<8x1xf32> to vector<8x32xf32>
    %224 = arith.mulf %222, %223 : vector<8x32xf32>
    %c32_41 = arith.constant 32 : index
    %c32_42 = arith.constant 32 : index
    %225 = vector.load %arg18[%c32_41, %c32_42] : memref<64x64xf32, #tpu.memory_space<vmem>>, vector<8x32xf32>
    tpu.vector_store %arg18[%c32_41, %c32_42], %224 {strides = array<i32>} : memref<64x64xf32, #tpu.memory_space<vmem>>, vector<8x32xf32>,
    %226 = vector.extract_strided_slice %1 {offsets = [32, 0], sizes = [8, 1], strides = [1, 1]} : vector<64x1xf32> to vector<8x1xf32>
    %227 = vector.extract_strided_slice %1 {offsets = [24, 0], sizes = [8, 1], strides = [1, 1]} : vector<64x1xf32> to vector<8x1xf32>
    %228 = vector.extract_strided_slice %32 {offsets = [32, 0], sizes = [8, 192], strides = [1, 1]} : vector<64x192xf32> to vector<8x192xf32>
    %229 = vector.extract_strided_slice %32 {offsets = [24, 0], sizes = [8, 192], strides = [1, 1]} : vector<64x192xf32> to vector<8x192xf32>
    %230 = vector.shape_cast %20 : vector<1x192xi1> to vector<1x192xi1>
    %231 = vector.broadcast %230 : vector<1x192xi1> to vector<8x192xi1>
    %232 = arith.select %231, %228, %229 : vector<8x192xi1>, vector<8x192xf32>
    %cst_43 = arith.constant dense<0.000000e+00> : vector<8x192xf32>
    %233 = tpu.matmul %217, %24, %cst_43 {dimension_numbers = #tpu.dot_dimension_numbers<[1], [0], [0], [1], [0, 0, 1, 1], [], []>} : vector<8x64xf32>, vector<64x192xf32>, vector<8x192xf32> -> vector<8x192xf32>
    %234 = vector.broadcast %25 : vector<1x192xf32> to vector<8x192xf32>
    %235 = arith.addf %233, %234 : vector<8x192xf32>
    %236 = vector.extract_strided_slice %232 {offsets = [0, 0], sizes = [8, 128], strides = [1, 1]} : vector<8x192xf32> to vector<8x128xf32>
    %237 = vector.extract_strided_slice %235 {offsets = [0, 0], sizes = [8, 128], strides = [1, 1]} : vector<8x192xf32> to vector<8x128xf32>
    %238 = arith.addf %236, %237 : vector<8x128xf32>
    %239 = arith.negf %238 : vector<8x128xf32>
    %240 = math.exp %239 : vector<8x128xf32>
    %cst_44 = arith.constant 1.000000e+00 : f32
    %241 = vector.broadcast %cst_44 : f32 to vector<8x128xf32>
    %242 = arith.addf %241, %240 : vector<8x128xf32>
    %243 = arith.divf %241, %242 : vector<8x128xf32>
    %244 = vector.extract_strided_slice %243 {offsets = [0, 0], sizes = [8, 64], strides = [1, 1]} : vector<8x128xf32> to vector<8x64xf32>
    %245 = vector.extract_strided_slice %243 {offsets = [0, 64], sizes = [8, 64], strides = [1, 1]} : vector<8x128xf32> to vector<8x64xf32>
    %246 = vector.extract_strided_slice %232 {offsets = [0, 128], sizes = [8, 64], strides = [1, 1]} : vector<8x192xf32> to vector<8x64xf32>
    %247 = vector.extract_strided_slice %235 {offsets = [0, 128], sizes = [8, 64], strides = [1, 1]} : vector<8x192xf32> to vector<8x64xf32>
    %248 = arith.mulf %244, %247 : vector<8x64xf32>
    %249 = arith.addf %246, %248 : vector<8x64xf32>
    %250 = math.tanh %249 : vector<8x64xf32>
    %cst_45 = arith.constant 1.000000e+00 : f32
    %251 = vector.broadcast %cst_45 : f32 to vector<8x64xf32>
    %252 = arith.subf %251, %245 : vector<8x64xf32>
    %253 = arith.mulf %252, %250 : vector<8x64xf32>
    %254 = arith.mulf %245, %217 : vector<8x64xf32>
    %255 = arith.addf %253, %254 : vector<8x64xf32>
    %256 = vector.shape_cast %23 : vector<1x64xi1> to vector<1x64xi1>
    %257 = vector.broadcast %256 : vector<1x64xi1> to vector<8x64xi1>
    %258 = vector.shape_cast %226 : vector<8x1xf32> to vector<8x1xf32>
    %259 = vector.broadcast %258 : vector<8x1xf32> to vector<8x64xf32>
    %260 = vector.shape_cast %227 : vector<8x1xf32> to vector<8x1xf32>
    %261 = vector.broadcast %260 : vector<8x1xf32> to vector<8x64xf32>
    %262 = arith.select %257, %259, %261 : vector<8x64xi1>, vector<8x64xf32>
    %cst_46 = arith.constant 0.000000e+00 : f32
    %263 = vector.broadcast %cst_46 : f32 to vector<8x64xf32>
    %264 = arith.cmpf ogt, %262, %263 : vector<8x64xf32>
    %265 = arith.select %264, %255, %217 : vector<8x64xi1>, vector<8x64xf32>
    %266 = vector.extract_strided_slice %265 {offsets = [0, 0], sizes = [8, 32], strides = [1, 1]} : vector<8x64xf32> to vector<8x32xf32>
    %267 = vector.broadcast %226 : vector<8x1xf32> to vector<8x32xf32>
    %268 = arith.mulf %266, %267 : vector<8x32xf32>
    %c32_47 = arith.constant 32 : index
    %c0_48 = arith.constant 0 : index
    %269 = vector.load %arg18[%c32_47, %c0_48] : memref<64x64xf32, #tpu.memory_space<vmem>>, vector<8x32xf32>
    tpu.vector_store %arg18[%c32_47, %c0_48], %268 {strides = array<i32>} : memref<64x64xf32, #tpu.memory_space<vmem>>, vector<8x32xf32>,
    %270 = vector.extract_strided_slice %265 {offsets = [0, 32], sizes = [8, 32], strides = [1, 1]} : vector<8x64xf32> to vector<8x32xf32>
    %271 = vector.broadcast %227 : vector<8x1xf32> to vector<8x32xf32>
    %272 = arith.mulf %270, %271 : vector<8x32xf32>
    %c24_49 = arith.constant 24 : index
    %c32_50 = arith.constant 32 : index
    %273 = vector.load %arg18[%c24_49, %c32_50] : memref<64x64xf32, #tpu.memory_space<vmem>>, vector<8x32xf32>
    tpu.vector_store %arg18[%c24_49, %c32_50], %272 {strides = array<i32>} : memref<64x64xf32, #tpu.memory_space<vmem>>, vector<8x32xf32>,
    %274 = vector.extract_strided_slice %1 {offsets = [40, 0], sizes = [8, 1], strides = [1, 1]} : vector<64x1xf32> to vector<8x1xf32>
    %275 = vector.extract_strided_slice %1 {offsets = [16, 0], sizes = [8, 1], strides = [1, 1]} : vector<64x1xf32> to vector<8x1xf32>
    %276 = vector.extract_strided_slice %32 {offsets = [40, 0], sizes = [8, 192], strides = [1, 1]} : vector<64x192xf32> to vector<8x192xf32>
    %277 = vector.extract_strided_slice %32 {offsets = [16, 0], sizes = [8, 192], strides = [1, 1]} : vector<64x192xf32> to vector<8x192xf32>
    %278 = vector.shape_cast %20 : vector<1x192xi1> to vector<1x192xi1>
    %279 = vector.broadcast %278 : vector<1x192xi1> to vector<8x192xi1>
    %280 = arith.select %279, %276, %277 : vector<8x192xi1>, vector<8x192xf32>
    %cst_51 = arith.constant dense<0.000000e+00> : vector<8x192xf32>
    %281 = tpu.matmul %265, %24, %cst_51 {dimension_numbers = #tpu.dot_dimension_numbers<[1], [0], [0], [1], [0, 0, 1, 1], [], []>} : vector<8x64xf32>, vector<64x192xf32>, vector<8x192xf32> -> vector<8x192xf32>
    %282 = vector.broadcast %25 : vector<1x192xf32> to vector<8x192xf32>
    %283 = arith.addf %281, %282 : vector<8x192xf32>
    %284 = vector.extract_strided_slice %280 {offsets = [0, 0], sizes = [8, 128], strides = [1, 1]} : vector<8x192xf32> to vector<8x128xf32>
    %285 = vector.extract_strided_slice %283 {offsets = [0, 0], sizes = [8, 128], strides = [1, 1]} : vector<8x192xf32> to vector<8x128xf32>
    %286 = arith.addf %284, %285 : vector<8x128xf32>
    %287 = arith.negf %286 : vector<8x128xf32>
    %288 = math.exp %287 : vector<8x128xf32>
    %cst_52 = arith.constant 1.000000e+00 : f32
    %289 = vector.broadcast %cst_52 : f32 to vector<8x128xf32>
    %290 = arith.addf %289, %288 : vector<8x128xf32>
    %291 = arith.divf %289, %290 : vector<8x128xf32>
    %292 = vector.extract_strided_slice %291 {offsets = [0, 0], sizes = [8, 64], strides = [1, 1]} : vector<8x128xf32> to vector<8x64xf32>
    %293 = vector.extract_strided_slice %291 {offsets = [0, 64], sizes = [8, 64], strides = [1, 1]} : vector<8x128xf32> to vector<8x64xf32>
    %294 = vector.extract_strided_slice %280 {offsets = [0, 128], sizes = [8, 64], strides = [1, 1]} : vector<8x192xf32> to vector<8x64xf32>
    %295 = vector.extract_strided_slice %283 {offsets = [0, 128], sizes = [8, 64], strides = [1, 1]} : vector<8x192xf32> to vector<8x64xf32>
    %296 = arith.mulf %292, %295 : vector<8x64xf32>
    %297 = arith.addf %294, %296 : vector<8x64xf32>
    %298 = math.tanh %297 : vector<8x64xf32>
    %cst_53 = arith.constant 1.000000e+00 : f32
    %299 = vector.broadcast %cst_53 : f32 to vector<8x64xf32>
    %300 = arith.subf %299, %293 : vector<8x64xf32>
    %301 = arith.mulf %300, %298 : vector<8x64xf32>
    %302 = arith.mulf %293, %265 : vector<8x64xf32>
    %303 = arith.addf %301, %302 : vector<8x64xf32>
    %304 = vector.shape_cast %23 : vector<1x64xi1> to vector<1x64xi1>
    %305 = vector.broadcast %304 : vector<1x64xi1> to vector<8x64xi1>
    %306 = vector.shape_cast %274 : vector<8x1xf32> to vector<8x1xf32>
    %307 = vector.broadcast %306 : vector<8x1xf32> to vector<8x64xf32>
    %308 = vector.shape_cast %275 : vector<8x1xf32> to vector<8x1xf32>
    %309 = vector.broadcast %308 : vector<8x1xf32> to vector<8x64xf32>
    %310 = arith.select %305, %307, %309 : vector<8x64xi1>, vector<8x64xf32>
    %cst_54 = arith.constant 0.000000e+00 : f32
    %311 = vector.broadcast %cst_54 : f32 to vector<8x64xf32>
    %312 = arith.cmpf ogt, %310, %311 : vector<8x64xf32>
    %313 = arith.select %312, %303, %265 : vector<8x64xi1>, vector<8x64xf32>
    %314 = vector.extract_strided_slice %313 {offsets = [0, 0], sizes = [8, 32], strides = [1, 1]} : vector<8x64xf32> to vector<8x32xf32>
    %315 = vector.broadcast %274 : vector<8x1xf32> to vector<8x32xf32>
    %316 = arith.mulf %314, %315 : vector<8x32xf32>
    %c40_55 = arith.constant 40 : index
    %c0_56 = arith.constant 0 : index
    %317 = vector.load %arg18[%c40_55, %c0_56] : memref<64x64xf32, #tpu.memory_space<vmem>>, vector<8x32xf32>
    tpu.vector_store %arg18[%c40_55, %c0_56], %316 {strides = array<i32>} : memref<64x64xf32, #tpu.memory_space<vmem>>, vector<8x32xf32>,
    %318 = vector.extract_strided_slice %313 {offsets = [0, 32], sizes = [8, 32], strides = [1, 1]} : vector<8x64xf32> to vector<8x32xf32>
    %319 = vector.broadcast %275 : vector<8x1xf32> to vector<8x32xf32>
    %320 = arith.mulf %318, %319 : vector<8x32xf32>
    %c16_57 = arith.constant 16 : index
    %c32_58 = arith.constant 32 : index
    %321 = vector.load %arg18[%c16_57, %c32_58] : memref<64x64xf32, #tpu.memory_space<vmem>>, vector<8x32xf32>
    tpu.vector_store %arg18[%c16_57, %c32_58], %320 {strides = array<i32>} : memref<64x64xf32, #tpu.memory_space<vmem>>, vector<8x32xf32>,
    %322 = vector.extract_strided_slice %1 {offsets = [48, 0], sizes = [8, 1], strides = [1, 1]} : vector<64x1xf32> to vector<8x1xf32>
    %323 = vector.extract_strided_slice %1 {offsets = [8, 0], sizes = [8, 1], strides = [1, 1]} : vector<64x1xf32> to vector<8x1xf32>
    %324 = vector.extract_strided_slice %32 {offsets = [48, 0], sizes = [8, 192], strides = [1, 1]} : vector<64x192xf32> to vector<8x192xf32>
    %325 = vector.extract_strided_slice %32 {offsets = [8, 0], sizes = [8, 192], strides = [1, 1]} : vector<64x192xf32> to vector<8x192xf32>
    %326 = vector.shape_cast %20 : vector<1x192xi1> to vector<1x192xi1>
    %327 = vector.broadcast %326 : vector<1x192xi1> to vector<8x192xi1>
    %328 = arith.select %327, %324, %325 : vector<8x192xi1>, vector<8x192xf32>
    %cst_59 = arith.constant dense<0.000000e+00> : vector<8x192xf32>
    %329 = tpu.matmul %313, %24, %cst_59 {dimension_numbers = #tpu.dot_dimension_numbers<[1], [0], [0], [1], [0, 0, 1, 1], [], []>} : vector<8x64xf32>, vector<64x192xf32>, vector<8x192xf32> -> vector<8x192xf32>
    %330 = vector.broadcast %25 : vector<1x192xf32> to vector<8x192xf32>
    %331 = arith.addf %329, %330 : vector<8x192xf32>
    %332 = vector.extract_strided_slice %328 {offsets = [0, 0], sizes = [8, 128], strides = [1, 1]} : vector<8x192xf32> to vector<8x128xf32>
    %333 = vector.extract_strided_slice %331 {offsets = [0, 0], sizes = [8, 128], strides = [1, 1]} : vector<8x192xf32> to vector<8x128xf32>
    %334 = arith.addf %332, %333 : vector<8x128xf32>
    %335 = arith.negf %334 : vector<8x128xf32>
    %336 = math.exp %335 : vector<8x128xf32>
    %cst_60 = arith.constant 1.000000e+00 : f32
    %337 = vector.broadcast %cst_60 : f32 to vector<8x128xf32>
    %338 = arith.addf %337, %336 : vector<8x128xf32>
    %339 = arith.divf %337, %338 : vector<8x128xf32>
    %340 = vector.extract_strided_slice %339 {offsets = [0, 0], sizes = [8, 64], strides = [1, 1]} : vector<8x128xf32> to vector<8x64xf32>
    %341 = vector.extract_strided_slice %339 {offsets = [0, 64], sizes = [8, 64], strides = [1, 1]} : vector<8x128xf32> to vector<8x64xf32>
    %342 = vector.extract_strided_slice %328 {offsets = [0, 128], sizes = [8, 64], strides = [1, 1]} : vector<8x192xf32> to vector<8x64xf32>
    %343 = vector.extract_strided_slice %331 {offsets = [0, 128], sizes = [8, 64], strides = [1, 1]} : vector<8x192xf32> to vector<8x64xf32>
    %344 = arith.mulf %340, %343 : vector<8x64xf32>
    %345 = arith.addf %342, %344 : vector<8x64xf32>
    %346 = math.tanh %345 : vector<8x64xf32>
    %cst_61 = arith.constant 1.000000e+00 : f32
    %347 = vector.broadcast %cst_61 : f32 to vector<8x64xf32>
    %348 = arith.subf %347, %341 : vector<8x64xf32>
    %349 = arith.mulf %348, %346 : vector<8x64xf32>
    %350 = arith.mulf %341, %313 : vector<8x64xf32>
    %351 = arith.addf %349, %350 : vector<8x64xf32>
    %352 = vector.shape_cast %23 : vector<1x64xi1> to vector<1x64xi1>
    %353 = vector.broadcast %352 : vector<1x64xi1> to vector<8x64xi1>
    %354 = vector.shape_cast %322 : vector<8x1xf32> to vector<8x1xf32>
    %355 = vector.broadcast %354 : vector<8x1xf32> to vector<8x64xf32>
    %356 = vector.shape_cast %323 : vector<8x1xf32> to vector<8x1xf32>
    %357 = vector.broadcast %356 : vector<8x1xf32> to vector<8x64xf32>
    %358 = arith.select %353, %355, %357 : vector<8x64xi1>, vector<8x64xf32>
    %cst_62 = arith.constant 0.000000e+00 : f32
    %359 = vector.broadcast %cst_62 : f32 to vector<8x64xf32>
    %360 = arith.cmpf ogt, %358, %359 : vector<8x64xf32>
    %361 = arith.select %360, %351, %313 : vector<8x64xi1>, vector<8x64xf32>
    %362 = vector.extract_strided_slice %361 {offsets = [0, 0], sizes = [8, 32], strides = [1, 1]} : vector<8x64xf32> to vector<8x32xf32>
    %363 = vector.broadcast %322 : vector<8x1xf32> to vector<8x32xf32>
    %364 = arith.mulf %362, %363 : vector<8x32xf32>
    %c48_63 = arith.constant 48 : index
    %c0_64 = arith.constant 0 : index
    %365 = vector.load %arg18[%c48_63, %c0_64] : memref<64x64xf32, #tpu.memory_space<vmem>>, vector<8x32xf32>
    tpu.vector_store %arg18[%c48_63, %c0_64], %364 {strides = array<i32>} : memref<64x64xf32, #tpu.memory_space<vmem>>, vector<8x32xf32>,
    %366 = vector.extract_strided_slice %361 {offsets = [0, 32], sizes = [8, 32], strides = [1, 1]} : vector<8x64xf32> to vector<8x32xf32>
    %367 = vector.broadcast %323 : vector<8x1xf32> to vector<8x32xf32>
    %368 = arith.mulf %366, %367 : vector<8x32xf32>
    %c8_65 = arith.constant 8 : index
    %c32_66 = arith.constant 32 : index
    %369 = vector.load %arg18[%c8_65, %c32_66] : memref<64x64xf32, #tpu.memory_space<vmem>>, vector<8x32xf32>
    tpu.vector_store %arg18[%c8_65, %c32_66], %368 {strides = array<i32>} : memref<64x64xf32, #tpu.memory_space<vmem>>, vector<8x32xf32>,
    %370 = vector.extract_strided_slice %1 {offsets = [56, 0], sizes = [8, 1], strides = [1, 1]} : vector<64x1xf32> to vector<8x1xf32>
    %371 = vector.extract_strided_slice %1 {offsets = [0, 0], sizes = [8, 1], strides = [1, 1]} : vector<64x1xf32> to vector<8x1xf32>
    %372 = vector.extract_strided_slice %32 {offsets = [56, 0], sizes = [8, 192], strides = [1, 1]} : vector<64x192xf32> to vector<8x192xf32>
    %373 = vector.extract_strided_slice %32 {offsets = [0, 0], sizes = [8, 192], strides = [1, 1]} : vector<64x192xf32> to vector<8x192xf32>
    %374 = vector.shape_cast %20 : vector<1x192xi1> to vector<1x192xi1>
    %375 = vector.broadcast %374 : vector<1x192xi1> to vector<8x192xi1>
    %376 = arith.select %375, %372, %373 : vector<8x192xi1>, vector<8x192xf32>
    %cst_67 = arith.constant dense<0.000000e+00> : vector<8x192xf32>
    %377 = tpu.matmul %361, %24, %cst_67 {dimension_numbers = #tpu.dot_dimension_numbers<[1], [0], [0], [1], [0, 0, 1, 1], [], []>} : vector<8x64xf32>, vector<64x192xf32>, vector<8x192xf32> -> vector<8x192xf32>
    %378 = vector.broadcast %25 : vector<1x192xf32> to vector<8x192xf32>
    %379 = arith.addf %377, %378 : vector<8x192xf32>
    %380 = vector.extract_strided_slice %376 {offsets = [0, 0], sizes = [8, 128], strides = [1, 1]} : vector<8x192xf32> to vector<8x128xf32>
    %381 = vector.extract_strided_slice %379 {offsets = [0, 0], sizes = [8, 128], strides = [1, 1]} : vector<8x192xf32> to vector<8x128xf32>
    %382 = arith.addf %380, %381 : vector<8x128xf32>
    %383 = arith.negf %382 : vector<8x128xf32>
    %384 = math.exp %383 : vector<8x128xf32>
    %cst_68 = arith.constant 1.000000e+00 : f32
    %385 = vector.broadcast %cst_68 : f32 to vector<8x128xf32>
    %386 = arith.addf %385, %384 : vector<8x128xf32>
    %387 = arith.divf %385, %386 : vector<8x128xf32>
    %388 = vector.extract_strided_slice %387 {offsets = [0, 0], sizes = [8, 64], strides = [1, 1]} : vector<8x128xf32> to vector<8x64xf32>
    %389 = vector.extract_strided_slice %387 {offsets = [0, 64], sizes = [8, 64], strides = [1, 1]} : vector<8x128xf32> to vector<8x64xf32>
    %390 = vector.extract_strided_slice %376 {offsets = [0, 128], sizes = [8, 64], strides = [1, 1]} : vector<8x192xf32> to vector<8x64xf32>
    %391 = vector.extract_strided_slice %379 {offsets = [0, 128], sizes = [8, 64], strides = [1, 1]} : vector<8x192xf32> to vector<8x64xf32>
    %392 = arith.mulf %388, %391 : vector<8x64xf32>
    %393 = arith.addf %390, %392 : vector<8x64xf32>
    %394 = math.tanh %393 : vector<8x64xf32>
    %cst_69 = arith.constant 1.000000e+00 : f32
    %395 = vector.broadcast %cst_69 : f32 to vector<8x64xf32>
    %396 = arith.subf %395, %389 : vector<8x64xf32>
    %397 = arith.mulf %396, %394 : vector<8x64xf32>
    %398 = arith.mulf %389, %361 : vector<8x64xf32>
    %399 = arith.addf %397, %398 : vector<8x64xf32>
    %400 = vector.shape_cast %23 : vector<1x64xi1> to vector<1x64xi1>
    %401 = vector.broadcast %400 : vector<1x64xi1> to vector<8x64xi1>
    %402 = vector.shape_cast %370 : vector<8x1xf32> to vector<8x1xf32>
    %403 = vector.broadcast %402 : vector<8x1xf32> to vector<8x64xf32>
    %404 = vector.shape_cast %371 : vector<8x1xf32> to vector<8x1xf32>
    %405 = vector.broadcast %404 : vector<8x1xf32> to vector<8x64xf32>
    %406 = arith.select %401, %403, %405 : vector<8x64xi1>, vector<8x64xf32>
    %cst_70 = arith.constant 0.000000e+00 : f32
    %407 = vector.broadcast %cst_70 : f32 to vector<8x64xf32>
    %408 = arith.cmpf ogt, %406, %407 : vector<8x64xf32>
    %409 = arith.select %408, %399, %361 : vector<8x64xi1>, vector<8x64xf32>
    %410 = vector.extract_strided_slice %409 {offsets = [0, 0], sizes = [8, 32], strides = [1, 1]} : vector<8x64xf32> to vector<8x32xf32>
    %411 = vector.broadcast %370 : vector<8x1xf32> to vector<8x32xf32>
    %412 = arith.mulf %410, %411 : vector<8x32xf32>
    %c56_71 = arith.constant 56 : index
    %c0_72 = arith.constant 0 : index
    %413 = vector.load %arg18[%c56_71, %c0_72] : memref<64x64xf32, #tpu.memory_space<vmem>>, vector<8x32xf32>
    tpu.vector_store %arg18[%c56_71, %c0_72], %412 {strides = array<i32>} : memref<64x64xf32, #tpu.memory_space<vmem>>, vector<8x32xf32>,
    %414 = vector.extract_strided_slice %409 {offsets = [0, 32], sizes = [8, 32], strides = [1, 1]} : vector<8x64xf32> to vector<8x32xf32>
    %415 = vector.broadcast %371 : vector<8x1xf32> to vector<8x32xf32>
    %416 = arith.mulf %414, %415 : vector<8x32xf32>
    %c0_73 = arith.constant 0 : index
    %c32_74 = arith.constant 32 : index
    %417 = vector.load %arg18[%c0_73, %c32_74] : memref<64x64xf32, #tpu.memory_space<vmem>>, vector<8x32xf32>
    tpu.vector_store %arg18[%c0_73, %c32_74], %416 {strides = array<i32>} : memref<64x64xf32, #tpu.memory_space<vmem>>, vector<8x32xf32>,
    %c0_75 = arith.constant 0 : index
    %c0_76 = arith.constant 0 : index
    %418 = vector.load %arg9[%c0_75, %c0_76] : memref<64x192xf32, #tpu.memory_space<vmem>>, vector<64x192xf32>
    %c0_77 = arith.constant 0 : index
    %c0_78 = arith.constant 0 : index
    %419 = vector.load %arg10[%c0_77, %c0_78] : memref<1x192xf32, #tpu.memory_space<vmem>>, vector<1x192xf32>
    %c0_79 = arith.constant 0 : index
    %c0_80 = arith.constant 0 : index
    %420 = vector.load %arg8[%c0_79, %c0_80] : memref<1x192xf32, #tpu.memory_space<vmem>>, vector<1x192xf32>
    %c0_81 = arith.constant 0 : index
    %c0_82 = arith.constant 0 : index
    %421 = vector.load %arg18[%c0_81, %c0_82] : memref<64x64xf32, #tpu.memory_space<vmem>>, vector<64x64xf32>
    %422 = arith.truncf %421 : vector<64x64xf32> to vector<64x64xbf16>
    %c0_83 = arith.constant 0 : index
    %c0_84 = arith.constant 0 : index
    %423 = vector.load %arg7[%c0_83, %c0_84] : memref<64x192xbf16, #tpu.memory_space<vmem>>, vector<64x192xbf16>
    %cst_85 = arith.constant dense<0.000000e+00> : vector<64x192xf32>
    %424 = tpu.matmul %422, %423, %cst_85 {dimension_numbers = #tpu.dot_dimension_numbers<[1], [0], [0], [1], [0, 0, 1, 1], [], []>} : vector<64x64xbf16>, vector<64x192xbf16>, vector<64x192xf32> -> vector<64x192xf32>
    %425 = vector.broadcast %420 : vector<1x192xf32> to vector<64x192xf32>
    %426 = arith.addf %424, %425 : vector<64x192xf32>
    %cst_86 = arith.constant 0.000000e+00 : f32
    %427 = vector.broadcast %cst_86 : f32 to vector<8x64xf32>
    %428 = vector.extract_strided_slice %1 {offsets = [0, 0], sizes = [8, 1], strides = [1, 1]} : vector<64x1xf32> to vector<8x1xf32>
    %429 = vector.extract_strided_slice %1 {offsets = [56, 0], sizes = [8, 1], strides = [1, 1]} : vector<64x1xf32> to vector<8x1xf32>
    %430 = vector.extract_strided_slice %426 {offsets = [0, 0], sizes = [8, 192], strides = [1, 1]} : vector<64x192xf32> to vector<8x192xf32>
    %431 = vector.extract_strided_slice %426 {offsets = [56, 0], sizes = [8, 192], strides = [1, 1]} : vector<64x192xf32> to vector<8x192xf32>
    %432 = vector.shape_cast %20 : vector<1x192xi1> to vector<1x192xi1>
    %433 = vector.broadcast %432 : vector<1x192xi1> to vector<8x192xi1>
    %434 = arith.select %433, %430, %431 : vector<8x192xi1>, vector<8x192xf32>
    %cst_87 = arith.constant dense<0.000000e+00> : vector<8x192xf32>
    %435 = tpu.matmul %427, %418, %cst_87 {dimension_numbers = #tpu.dot_dimension_numbers<[1], [0], [0], [1], [0, 0, 1, 1], [], []>} : vector<8x64xf32>, vector<64x192xf32>, vector<8x192xf32> -> vector<8x192xf32>
    %436 = vector.broadcast %419 : vector<1x192xf32> to vector<8x192xf32>
    %437 = arith.addf %435, %436 : vector<8x192xf32>
    %438 = vector.extract_strided_slice %434 {offsets = [0, 0], sizes = [8, 128], strides = [1, 1]} : vector<8x192xf32> to vector<8x128xf32>
    %439 = vector.extract_strided_slice %437 {offsets = [0, 0], sizes = [8, 128], strides = [1, 1]} : vector<8x192xf32> to vector<8x128xf32>
    %440 = arith.addf %438, %439 : vector<8x128xf32>
    %441 = arith.negf %440 : vector<8x128xf32>
    %442 = math.exp %441 : vector<8x128xf32>
    %cst_88 = arith.constant 1.000000e+00 : f32
    %443 = vector.broadcast %cst_88 : f32 to vector<8x128xf32>
    %444 = arith.addf %443, %442 : vector<8x128xf32>
    %445 = arith.divf %443, %444 : vector<8x128xf32>
    %446 = vector.extract_strided_slice %445 {offsets = [0, 0], sizes = [8, 64], strides = [1, 1]} : vector<8x128xf32> to vector<8x64xf32>
    %447 = vector.extract_strided_slice %445 {offsets = [0, 64], sizes = [8, 64], strides = [1, 1]} : vector<8x128xf32> to vector<8x64xf32>
    %448 = vector.extract_strided_slice %434 {offsets = [0, 128], sizes = [8, 64], strides = [1, 1]} : vector<8x192xf32> to vector<8x64xf32>
    %449 = vector.extract_strided_slice %437 {offsets = [0, 128], sizes = [8, 64], strides = [1, 1]} : vector<8x192xf32> to vector<8x64xf32>
    %450 = arith.mulf %446, %449 : vector<8x64xf32>
    %451 = arith.addf %448, %450 : vector<8x64xf32>
    %452 = math.tanh %451 : vector<8x64xf32>
    %cst_89 = arith.constant 1.000000e+00 : f32
    %453 = vector.broadcast %cst_89 : f32 to vector<8x64xf32>
    %454 = arith.subf %453, %447 : vector<8x64xf32>
    %455 = arith.mulf %454, %452 : vector<8x64xf32>
    %456 = arith.mulf %447, %427 : vector<8x64xf32>
    %457 = arith.addf %455, %456 : vector<8x64xf32>
    %458 = vector.shape_cast %23 : vector<1x64xi1> to vector<1x64xi1>
    %459 = vector.broadcast %458 : vector<1x64xi1> to vector<8x64xi1>
    %460 = vector.shape_cast %428 : vector<8x1xf32> to vector<8x1xf32>
    %461 = vector.broadcast %460 : vector<8x1xf32> to vector<8x64xf32>
    %462 = vector.shape_cast %429 : vector<8x1xf32> to vector<8x1xf32>
    %463 = vector.broadcast %462 : vector<8x1xf32> to vector<8x64xf32>
    %464 = arith.select %459, %461, %463 : vector<8x64xi1>, vector<8x64xf32>
    %cst_90 = arith.constant 0.000000e+00 : f32
    %465 = vector.broadcast %cst_90 : f32 to vector<8x64xf32>
    %466 = arith.cmpf ogt, %464, %465 : vector<8x64xf32>
    %467 = arith.select %466, %457, %427 : vector<8x64xi1>, vector<8x64xf32>
    %468 = vector.extract_strided_slice %467 {offsets = [0, 0], sizes = [8, 32], strides = [1, 1]} : vector<8x64xf32> to vector<8x32xf32>
    %469 = vector.broadcast %428 : vector<8x1xf32> to vector<8x32xf32>
    %470 = arith.mulf %468, %469 : vector<8x32xf32>
    %c0_91 = arith.constant 0 : index
    %c0_92 = arith.constant 0 : index
    %471 = vector.load %arg18[%c0_91, %c0_92] : memref<64x64xf32, #tpu.memory_space<vmem>>, vector<8x32xf32>
    tpu.vector_store %arg18[%c0_91, %c0_92], %470 {strides = array<i32>} : memref<64x64xf32, #tpu.memory_space<vmem>>, vector<8x32xf32>,
    %472 = vector.extract_strided_slice %467 {offsets = [0, 32], sizes = [8, 32], strides = [1, 1]} : vector<8x64xf32> to vector<8x32xf32>
    %473 = vector.broadcast %429 : vector<8x1xf32> to vector<8x32xf32>
    %474 = arith.mulf %472, %473 : vector<8x32xf32>
    %c56_93 = arith.constant 56 : index
    %c32_94 = arith.constant 32 : index
    %475 = vector.load %arg18[%c56_93, %c32_94] : memref<64x64xf32, #tpu.memory_space<vmem>>, vector<8x32xf32>
    tpu.vector_store %arg18[%c56_93, %c32_94], %474 {strides = array<i32>} : memref<64x64xf32, #tpu.memory_space<vmem>>, vector<8x32xf32>,
    %476 = vector.extract_strided_slice %1 {offsets = [8, 0], sizes = [8, 1], strides = [1, 1]} : vector<64x1xf32> to vector<8x1xf32>
    %477 = vector.extract_strided_slice %1 {offsets = [48, 0], sizes = [8, 1], strides = [1, 1]} : vector<64x1xf32> to vector<8x1xf32>
    %478 = vector.extract_strided_slice %426 {offsets = [8, 0], sizes = [8, 192], strides = [1, 1]} : vector<64x192xf32> to vector<8x192xf32>
    %479 = vector.extract_strided_slice %426 {offsets = [48, 0], sizes = [8, 192], strides = [1, 1]} : vector<64x192xf32> to vector<8x192xf32>
    %480 = vector.shape_cast %20 : vector<1x192xi1> to vector<1x192xi1>
    %481 = vector.broadcast %480 : vector<1x192xi1> to vector<8x192xi1>
    %482 = arith.select %481, %478, %479 : vector<8x192xi1>, vector<8x192xf32>
    %cst_95 = arith.constant dense<0.000000e+00> : vector<8x192xf32>
    %483 = tpu.matmul %467, %418, %cst_95 {dimension_numbers = #tpu.dot_dimension_numbers<[1], [0], [0], [1], [0, 0, 1, 1], [], []>} : vector<8x64xf32>, vector<64x192xf32>, vector<8x192xf32> -> vector<8x192xf32>
    %484 = vector.broadcast %419 : vector<1x192xf32> to vector<8x192xf32>
    %485 = arith.addf %483, %484 : vector<8x192xf32>
    %486 = vector.extract_strided_slice %482 {offsets = [0, 0], sizes = [8, 128], strides = [1, 1]} : vector<8x192xf32> to vector<8x128xf32>
    %487 = vector.extract_strided_slice %485 {offsets = [0, 0], sizes = [8, 128], strides = [1, 1]} : vector<8x192xf32> to vector<8x128xf32>
    %488 = arith.addf %486, %487 : vector<8x128xf32>
    %489 = arith.negf %488 : vector<8x128xf32>
    %490 = math.exp %489 : vector<8x128xf32>
    %cst_96 = arith.constant 1.000000e+00 : f32
    %491 = vector.broadcast %cst_96 : f32 to vector<8x128xf32>
    %492 = arith.addf %491, %490 : vector<8x128xf32>
    %493 = arith.divf %491, %492 : vector<8x128xf32>
    %494 = vector.extract_strided_slice %493 {offsets = [0, 0], sizes = [8, 64], strides = [1, 1]} : vector<8x128xf32> to vector<8x64xf32>
    %495 = vector.extract_strided_slice %493 {offsets = [0, 64], sizes = [8, 64], strides = [1, 1]} : vector<8x128xf32> to vector<8x64xf32>
    %496 = vector.extract_strided_slice %482 {offsets = [0, 128], sizes = [8, 64], strides = [1, 1]} : vector<8x192xf32> to vector<8x64xf32>
    %497 = vector.extract_strided_slice %485 {offsets = [0, 128], sizes = [8, 64], strides = [1, 1]} : vector<8x192xf32> to vector<8x64xf32>
    %498 = arith.mulf %494, %497 : vector<8x64xf32>
    %499 = arith.addf %496, %498 : vector<8x64xf32>
    %500 = math.tanh %499 : vector<8x64xf32>
    %cst_97 = arith.constant 1.000000e+00 : f32
    %501 = vector.broadcast %cst_97 : f32 to vector<8x64xf32>
    %502 = arith.subf %501, %495 : vector<8x64xf32>
    %503 = arith.mulf %502, %500 : vector<8x64xf32>
    %504 = arith.mulf %495, %467 : vector<8x64xf32>
    %505 = arith.addf %503, %504 : vector<8x64xf32>
    %506 = vector.shape_cast %23 : vector<1x64xi1> to vector<1x64xi1>
    %507 = vector.broadcast %506 : vector<1x64xi1> to vector<8x64xi1>
    %508 = vector.shape_cast %476 : vector<8x1xf32> to vector<8x1xf32>
    %509 = vector.broadcast %508 : vector<8x1xf32> to vector<8x64xf32>
    %510 = vector.shape_cast %477 : vector<8x1xf32> to vector<8x1xf32>
    %511 = vector.broadcast %510 : vector<8x1xf32> to vector<8x64xf32>
    %512 = arith.select %507, %509, %511 : vector<8x64xi1>, vector<8x64xf32>
    %cst_98 = arith.constant 0.000000e+00 : f32
    %513 = vector.broadcast %cst_98 : f32 to vector<8x64xf32>
    %514 = arith.cmpf ogt, %512, %513 : vector<8x64xf32>
    %515 = arith.select %514, %505, %467 : vector<8x64xi1>, vector<8x64xf32>
    %516 = vector.extract_strided_slice %515 {offsets = [0, 0], sizes = [8, 32], strides = [1, 1]} : vector<8x64xf32> to vector<8x32xf32>
    %517 = vector.broadcast %476 : vector<8x1xf32> to vector<8x32xf32>
    %518 = arith.mulf %516, %517 : vector<8x32xf32>
    %c8_99 = arith.constant 8 : index
    %c0_100 = arith.constant 0 : index
    %519 = vector.load %arg18[%c8_99, %c0_100] : memref<64x64xf32, #tpu.memory_space<vmem>>, vector<8x32xf32>
    tpu.vector_store %arg18[%c8_99, %c0_100], %518 {strides = array<i32>} : memref<64x64xf32, #tpu.memory_space<vmem>>, vector<8x32xf32>,
    %520 = vector.extract_strided_slice %515 {offsets = [0, 32], sizes = [8, 32], strides = [1, 1]} : vector<8x64xf32> to vector<8x32xf32>
    %521 = vector.broadcast %477 : vector<8x1xf32> to vector<8x32xf32>
    %522 = arith.mulf %520, %521 : vector<8x32xf32>
    %c48_101 = arith.constant 48 : index
    %c32_102 = arith.constant 32 : index
    %523 = vector.load %arg18[%c48_101, %c32_102] : memref<64x64xf32, #tpu.memory_space<vmem>>, vector<8x32xf32>
    tpu.vector_store %arg18[%c48_101, %c32_102], %522 {strides = array<i32>} : memref<64x64xf32, #tpu.memory_space<vmem>>, vector<8x32xf32>,
    %524 = vector.extract_strided_slice %1 {offsets = [16, 0], sizes = [8, 1], strides = [1, 1]} : vector<64x1xf32> to vector<8x1xf32>
    %525 = vector.extract_strided_slice %1 {offsets = [40, 0], sizes = [8, 1], strides = [1, 1]} : vector<64x1xf32> to vector<8x1xf32>
    %526 = vector.extract_strided_slice %426 {offsets = [16, 0], sizes = [8, 192], strides = [1, 1]} : vector<64x192xf32> to vector<8x192xf32>
    %527 = vector.extract_strided_slice %426 {offsets = [40, 0], sizes = [8, 192], strides = [1, 1]} : vector<64x192xf32> to vector<8x192xf32>
    %528 = vector.shape_cast %20 : vector<1x192xi1> to vector<1x192xi1>
    %529 = vector.broadcast %528 : vector<1x192xi1> to vector<8x192xi1>
    %530 = arith.select %529, %526, %527 : vector<8x192xi1>, vector<8x192xf32>
    %cst_103 = arith.constant dense<0.000000e+00> : vector<8x192xf32>
    %531 = tpu.matmul %515, %418, %cst_103 {dimension_numbers = #tpu.dot_dimension_numbers<[1], [0], [0], [1], [0, 0, 1, 1], [], []>} : vector<8x64xf32>, vector<64x192xf32>, vector<8x192xf32> -> vector<8x192xf32>
    %532 = vector.broadcast %419 : vector<1x192xf32> to vector<8x192xf32>
    %533 = arith.addf %531, %532 : vector<8x192xf32>
    %534 = vector.extract_strided_slice %530 {offsets = [0, 0], sizes = [8, 128], strides = [1, 1]} : vector<8x192xf32> to vector<8x128xf32>
    %535 = vector.extract_strided_slice %533 {offsets = [0, 0], sizes = [8, 128], strides = [1, 1]} : vector<8x192xf32> to vector<8x128xf32>
    %536 = arith.addf %534, %535 : vector<8x128xf32>
    %537 = arith.negf %536 : vector<8x128xf32>
    %538 = math.exp %537 : vector<8x128xf32>
    %cst_104 = arith.constant 1.000000e+00 : f32
    %539 = vector.broadcast %cst_104 : f32 to vector<8x128xf32>
    %540 = arith.addf %539, %538 : vector<8x128xf32>
    %541 = arith.divf %539, %540 : vector<8x128xf32>
    %542 = vector.extract_strided_slice %541 {offsets = [0, 0], sizes = [8, 64], strides = [1, 1]} : vector<8x128xf32> to vector<8x64xf32>
    %543 = vector.extract_strided_slice %541 {offsets = [0, 64], sizes = [8, 64], strides = [1, 1]} : vector<8x128xf32> to vector<8x64xf32>
    %544 = vector.extract_strided_slice %530 {offsets = [0, 128], sizes = [8, 64], strides = [1, 1]} : vector<8x192xf32> to vector<8x64xf32>
    %545 = vector.extract_strided_slice %533 {offsets = [0, 128], sizes = [8, 64], strides = [1, 1]} : vector<8x192xf32> to vector<8x64xf32>
    %546 = arith.mulf %542, %545 : vector<8x64xf32>
    %547 = arith.addf %544, %546 : vector<8x64xf32>
    %548 = math.tanh %547 : vector<8x64xf32>
    %cst_105 = arith.constant 1.000000e+00 : f32
    %549 = vector.broadcast %cst_105 : f32 to vector<8x64xf32>
    %550 = arith.subf %549, %543 : vector<8x64xf32>
    %551 = arith.mulf %550, %548 : vector<8x64xf32>
    %552 = arith.mulf %543, %515 : vector<8x64xf32>
    %553 = arith.addf %551, %552 : vector<8x64xf32>
    %554 = vector.shape_cast %23 : vector<1x64xi1> to vector<1x64xi1>
    %555 = vector.broadcast %554 : vector<1x64xi1> to vector<8x64xi1>
    %556 = vector.shape_cast %524 : vector<8x1xf32> to vector<8x1xf32>
    %557 = vector.broadcast %556 : vector<8x1xf32> to vector<8x64xf32>
    %558 = vector.shape_cast %525 : vector<8x1xf32> to vector<8x1xf32>
    %559 = vector.broadcast %558 : vector<8x1xf32> to vector<8x64xf32>
    %560 = arith.select %555, %557, %559 : vector<8x64xi1>, vector<8x64xf32>
    %cst_106 = arith.constant 0.000000e+00 : f32
    %561 = vector.broadcast %cst_106 : f32 to vector<8x64xf32>
    %562 = arith.cmpf ogt, %560, %561 : vector<8x64xf32>
    %563 = arith.select %562, %553, %515 : vector<8x64xi1>, vector<8x64xf32>
    %564 = vector.extract_strided_slice %563 {offsets = [0, 0], sizes = [8, 32], strides = [1, 1]} : vector<8x64xf32> to vector<8x32xf32>
    %565 = vector.broadcast %524 : vector<8x1xf32> to vector<8x32xf32>
    %566 = arith.mulf %564, %565 : vector<8x32xf32>
    %c16_107 = arith.constant 16 : index
    %c0_108 = arith.constant 0 : index
    %567 = vector.load %arg18[%c16_107, %c0_108] : memref<64x64xf32, #tpu.memory_space<vmem>>, vector<8x32xf32>
    tpu.vector_store %arg18[%c16_107, %c0_108], %566 {strides = array<i32>} : memref<64x64xf32, #tpu.memory_space<vmem>>, vector<8x32xf32>,
    %568 = vector.extract_strided_slice %563 {offsets = [0, 32], sizes = [8, 32], strides = [1, 1]} : vector<8x64xf32> to vector<8x32xf32>
    %569 = vector.broadcast %525 : vector<8x1xf32> to vector<8x32xf32>
    %570 = arith.mulf %568, %569 : vector<8x32xf32>
    %c40_109 = arith.constant 40 : index
    %c32_110 = arith.constant 32 : index
    %571 = vector.load %arg18[%c40_109, %c32_110] : memref<64x64xf32, #tpu.memory_space<vmem>>, vector<8x32xf32>
    tpu.vector_store %arg18[%c40_109, %c32_110], %570 {strides = array<i32>} : memref<64x64xf32, #tpu.memory_space<vmem>>, vector<8x32xf32>,
    %572 = vector.extract_strided_slice %1 {offsets = [24, 0], sizes = [8, 1], strides = [1, 1]} : vector<64x1xf32> to vector<8x1xf32>
    %573 = vector.extract_strided_slice %1 {offsets = [32, 0], sizes = [8, 1], strides = [1, 1]} : vector<64x1xf32> to vector<8x1xf32>
    %574 = vector.extract_strided_slice %426 {offsets = [24, 0], sizes = [8, 192], strides = [1, 1]} : vector<64x192xf32> to vector<8x192xf32>
    %575 = vector.extract_strided_slice %426 {offsets = [32, 0], sizes = [8, 192], strides = [1, 1]} : vector<64x192xf32> to vector<8x192xf32>
    %576 = vector.shape_cast %20 : vector<1x192xi1> to vector<1x192xi1>
    %577 = vector.broadcast %576 : vector<1x192xi1> to vector<8x192xi1>
    %578 = arith.select %577, %574, %575 : vector<8x192xi1>, vector<8x192xf32>
    %cst_111 = arith.constant dense<0.000000e+00> : vector<8x192xf32>
    %579 = tpu.matmul %563, %418, %cst_111 {dimension_numbers = #tpu.dot_dimension_numbers<[1], [0], [0], [1], [0, 0, 1, 1], [], []>} : vector<8x64xf32>, vector<64x192xf32>, vector<8x192xf32> -> vector<8x192xf32>
    %580 = vector.broadcast %419 : vector<1x192xf32> to vector<8x192xf32>
    %581 = arith.addf %579, %580 : vector<8x192xf32>
    %582 = vector.extract_strided_slice %578 {offsets = [0, 0], sizes = [8, 128], strides = [1, 1]} : vector<8x192xf32> to vector<8x128xf32>
    %583 = vector.extract_strided_slice %581 {offsets = [0, 0], sizes = [8, 128], strides = [1, 1]} : vector<8x192xf32> to vector<8x128xf32>
    %584 = arith.addf %582, %583 : vector<8x128xf32>
    %585 = arith.negf %584 : vector<8x128xf32>
    %586 = math.exp %585 : vector<8x128xf32>
    %cst_112 = arith.constant 1.000000e+00 : f32
    %587 = vector.broadcast %cst_112 : f32 to vector<8x128xf32>
    %588 = arith.addf %587, %586 : vector<8x128xf32>
    %589 = arith.divf %587, %588 : vector<8x128xf32>
    %590 = vector.extract_strided_slice %589 {offsets = [0, 0], sizes = [8, 64], strides = [1, 1]} : vector<8x128xf32> to vector<8x64xf32>
    %591 = vector.extract_strided_slice %589 {offsets = [0, 64], sizes = [8, 64], strides = [1, 1]} : vector<8x128xf32> to vector<8x64xf32>
    %592 = vector.extract_strided_slice %578 {offsets = [0, 128], sizes = [8, 64], strides = [1, 1]} : vector<8x192xf32> to vector<8x64xf32>
    %593 = vector.extract_strided_slice %581 {offsets = [0, 128], sizes = [8, 64], strides = [1, 1]} : vector<8x192xf32> to vector<8x64xf32>
    %594 = arith.mulf %590, %593 : vector<8x64xf32>
    %595 = arith.addf %592, %594 : vector<8x64xf32>
    %596 = math.tanh %595 : vector<8x64xf32>
    %cst_113 = arith.constant 1.000000e+00 : f32
    %597 = vector.broadcast %cst_113 : f32 to vector<8x64xf32>
    %598 = arith.subf %597, %591 : vector<8x64xf32>
    %599 = arith.mulf %598, %596 : vector<8x64xf32>
    %600 = arith.mulf %591, %563 : vector<8x64xf32>
    %601 = arith.addf %599, %600 : vector<8x64xf32>
    %602 = vector.shape_cast %23 : vector<1x64xi1> to vector<1x64xi1>
    %603 = vector.broadcast %602 : vector<1x64xi1> to vector<8x64xi1>
    %604 = vector.shape_cast %572 : vector<8x1xf32> to vector<8x1xf32>
    %605 = vector.broadcast %604 : vector<8x1xf32> to vector<8x64xf32>
    %606 = vector.shape_cast %573 : vector<8x1xf32> to vector<8x1xf32>
    %607 = vector.broadcast %606 : vector<8x1xf32> to vector<8x64xf32>
    %608 = arith.select %603, %605, %607 : vector<8x64xi1>, vector<8x64xf32>
    %cst_114 = arith.constant 0.000000e+00 : f32
    %609 = vector.broadcast %cst_114 : f32 to vector<8x64xf32>
    %610 = arith.cmpf ogt, %608, %609 : vector<8x64xf32>
    %611 = arith.select %610, %601, %563 : vector<8x64xi1>, vector<8x64xf32>
    %612 = vector.extract_strided_slice %611 {offsets = [0, 0], sizes = [8, 32], strides = [1, 1]} : vector<8x64xf32> to vector<8x32xf32>
    %613 = vector.broadcast %572 : vector<8x1xf32> to vector<8x32xf32>
    %614 = arith.mulf %612, %613 : vector<8x32xf32>
    %c24_115 = arith.constant 24 : index
    %c0_116 = arith.constant 0 : index
    %615 = vector.load %arg18[%c24_115, %c0_116] : memref<64x64xf32, #tpu.memory_space<vmem>>, vector<8x32xf32>
    tpu.vector_store %arg18[%c24_115, %c0_116], %614 {strides = array<i32>} : memref<64x64xf32, #tpu.memory_space<vmem>>, vector<8x32xf32>,
    %616 = vector.extract_strided_slice %611 {offsets = [0, 32], sizes = [8, 32], strides = [1, 1]} : vector<8x64xf32> to vector<8x32xf32>
    %617 = vector.broadcast %573 : vector<8x1xf32> to vector<8x32xf32>
    %618 = arith.mulf %616, %617 : vector<8x32xf32>
    %c32_117 = arith.constant 32 : index
    %c32_118 = arith.constant 32 : index
    %619 = vector.load %arg18[%c32_117, %c32_118] : memref<64x64xf32, #tpu.memory_space<vmem>>, vector<8x32xf32>
    tpu.vector_store %arg18[%c32_117, %c32_118], %618 {strides = array<i32>} : memref<64x64xf32, #tpu.memory_space<vmem>>, vector<8x32xf32>,
    %620 = vector.extract_strided_slice %1 {offsets = [32, 0], sizes = [8, 1], strides = [1, 1]} : vector<64x1xf32> to vector<8x1xf32>
    %621 = vector.extract_strided_slice %1 {offsets = [24, 0], sizes = [8, 1], strides = [1, 1]} : vector<64x1xf32> to vector<8x1xf32>
    %622 = vector.extract_strided_slice %426 {offsets = [32, 0], sizes = [8, 192], strides = [1, 1]} : vector<64x192xf32> to vector<8x192xf32>
    %623 = vector.extract_strided_slice %426 {offsets = [24, 0], sizes = [8, 192], strides = [1, 1]} : vector<64x192xf32> to vector<8x192xf32>
    %624 = vector.shape_cast %20 : vector<1x192xi1> to vector<1x192xi1>
    %625 = vector.broadcast %624 : vector<1x192xi1> to vector<8x192xi1>
    %626 = arith.select %625, %622, %623 : vector<8x192xi1>, vector<8x192xf32>
    %cst_119 = arith.constant dense<0.000000e+00> : vector<8x192xf32>
    %627 = tpu.matmul %611, %418, %cst_119 {dimension_numbers = #tpu.dot_dimension_numbers<[1], [0], [0], [1], [0, 0, 1, 1], [], []>} : vector<8x64xf32>, vector<64x192xf32>, vector<8x192xf32> -> vector<8x192xf32>
    %628 = vector.broadcast %419 : vector<1x192xf32> to vector<8x192xf32>
    %629 = arith.addf %627, %628 : vector<8x192xf32>
    %630 = vector.extract_strided_slice %626 {offsets = [0, 0], sizes = [8, 128], strides = [1, 1]} : vector<8x192xf32> to vector<8x128xf32>
    %631 = vector.extract_strided_slice %629 {offsets = [0, 0], sizes = [8, 128], strides = [1, 1]} : vector<8x192xf32> to vector<8x128xf32>
    %632 = arith.addf %630, %631 : vector<8x128xf32>
    %633 = arith.negf %632 : vector<8x128xf32>
    %634 = math.exp %633 : vector<8x128xf32>
    %cst_120 = arith.constant 1.000000e+00 : f32
    %635 = vector.broadcast %cst_120 : f32 to vector<8x128xf32>
    %636 = arith.addf %635, %634 : vector<8x128xf32>
    %637 = arith.divf %635, %636 : vector<8x128xf32>
    %638 = vector.extract_strided_slice %637 {offsets = [0, 0], sizes = [8, 64], strides = [1, 1]} : vector<8x128xf32> to vector<8x64xf32>
    %639 = vector.extract_strided_slice %637 {offsets = [0, 64], sizes = [8, 64], strides = [1, 1]} : vector<8x128xf32> to vector<8x64xf32>
    %640 = vector.extract_strided_slice %626 {offsets = [0, 128], sizes = [8, 64], strides = [1, 1]} : vector<8x192xf32> to vector<8x64xf32>
    %641 = vector.extract_strided_slice %629 {offsets = [0, 128], sizes = [8, 64], strides = [1, 1]} : vector<8x192xf32> to vector<8x64xf32>
    %642 = arith.mulf %638, %641 : vector<8x64xf32>
    %643 = arith.addf %640, %642 : vector<8x64xf32>
    %644 = math.tanh %643 : vector<8x64xf32>
    %cst_121 = arith.constant 1.000000e+00 : f32
    %645 = vector.broadcast %cst_121 : f32 to vector<8x64xf32>
    %646 = arith.subf %645, %639 : vector<8x64xf32>
    %647 = arith.mulf %646, %644 : vector<8x64xf32>
    %648 = arith.mulf %639, %611 : vector<8x64xf32>
    %649 = arith.addf %647, %648 : vector<8x64xf32>
    %650 = vector.shape_cast %23 : vector<1x64xi1> to vector<1x64xi1>
    %651 = vector.broadcast %650 : vector<1x64xi1> to vector<8x64xi1>
    %652 = vector.shape_cast %620 : vector<8x1xf32> to vector<8x1xf32>
    %653 = vector.broadcast %652 : vector<8x1xf32> to vector<8x64xf32>
    %654 = vector.shape_cast %621 : vector<8x1xf32> to vector<8x1xf32>
    %655 = vector.broadcast %654 : vector<8x1xf32> to vector<8x64xf32>
    %656 = arith.select %651, %653, %655 : vector<8x64xi1>, vector<8x64xf32>
    %cst_122 = arith.constant 0.000000e+00 : f32
    %657 = vector.broadcast %cst_122 : f32 to vector<8x64xf32>
    %658 = arith.cmpf ogt, %656, %657 : vector<8x64xf32>
    %659 = arith.select %658, %649, %611 : vector<8x64xi1>, vector<8x64xf32>
    %660 = vector.extract_strided_slice %659 {offsets = [0, 0], sizes = [8, 32], strides = [1, 1]} : vector<8x64xf32> to vector<8x32xf32>
    %661 = vector.broadcast %620 : vector<8x1xf32> to vector<8x32xf32>
    %662 = arith.mulf %660, %661 : vector<8x32xf32>
    %c32_123 = arith.constant 32 : index
    %c0_124 = arith.constant 0 : index
    %663 = vector.load %arg18[%c32_123, %c0_124] : memref<64x64xf32, #tpu.memory_space<vmem>>, vector<8x32xf32>
    tpu.vector_store %arg18[%c32_123, %c0_124], %662 {strides = array<i32>} : memref<64x64xf32, #tpu.memory_space<vmem>>, vector<8x32xf32>,
    %664 = vector.extract_strided_slice %659 {offsets = [0, 32], sizes = [8, 32], strides = [1, 1]} : vector<8x64xf32> to vector<8x32xf32>
    %665 = vector.broadcast %621 : vector<8x1xf32> to vector<8x32xf32>
    %666 = arith.mulf %664, %665 : vector<8x32xf32>
    %c24_125 = arith.constant 24 : index
    %c32_126 = arith.constant 32 : index
    %667 = vector.load %arg18[%c24_125, %c32_126] : memref<64x64xf32, #tpu.memory_space<vmem>>, vector<8x32xf32>
    tpu.vector_store %arg18[%c24_125, %c32_126], %666 {strides = array<i32>} : memref<64x64xf32, #tpu.memory_space<vmem>>, vector<8x32xf32>,
    %668 = vector.extract_strided_slice %1 {offsets = [40, 0], sizes = [8, 1], strides = [1, 1]} : vector<64x1xf32> to vector<8x1xf32>
    %669 = vector.extract_strided_slice %1 {offsets = [16, 0], sizes = [8, 1], strides = [1, 1]} : vector<64x1xf32> to vector<8x1xf32>
    %670 = vector.extract_strided_slice %426 {offsets = [40, 0], sizes = [8, 192], strides = [1, 1]} : vector<64x192xf32> to vector<8x192xf32>
    %671 = vector.extract_strided_slice %426 {offsets = [16, 0], sizes = [8, 192], strides = [1, 1]} : vector<64x192xf32> to vector<8x192xf32>
    %672 = vector.shape_cast %20 : vector<1x192xi1> to vector<1x192xi1>
    %673 = vector.broadcast %672 : vector<1x192xi1> to vector<8x192xi1>
    %674 = arith.select %673, %670, %671 : vector<8x192xi1>, vector<8x192xf32>
    %cst_127 = arith.constant dense<0.000000e+00> : vector<8x192xf32>
    %675 = tpu.matmul %659, %418, %cst_127 {dimension_numbers = #tpu.dot_dimension_numbers<[1], [0], [0], [1], [0, 0, 1, 1], [], []>} : vector<8x64xf32>, vector<64x192xf32>, vector<8x192xf32> -> vector<8x192xf32>
    %676 = vector.broadcast %419 : vector<1x192xf32> to vector<8x192xf32>
    %677 = arith.addf %675, %676 : vector<8x192xf32>
    %678 = vector.extract_strided_slice %674 {offsets = [0, 0], sizes = [8, 128], strides = [1, 1]} : vector<8x192xf32> to vector<8x128xf32>
    %679 = vector.extract_strided_slice %677 {offsets = [0, 0], sizes = [8, 128], strides = [1, 1]} : vector<8x192xf32> to vector<8x128xf32>
    %680 = arith.addf %678, %679 : vector<8x128xf32>
    %681 = arith.negf %680 : vector<8x128xf32>
    %682 = math.exp %681 : vector<8x128xf32>
    %cst_128 = arith.constant 1.000000e+00 : f32
    %683 = vector.broadcast %cst_128 : f32 to vector<8x128xf32>
    %684 = arith.addf %683, %682 : vector<8x128xf32>
    %685 = arith.divf %683, %684 : vector<8x128xf32>
    %686 = vector.extract_strided_slice %685 {offsets = [0, 0], sizes = [8, 64], strides = [1, 1]} : vector<8x128xf32> to vector<8x64xf32>
    %687 = vector.extract_strided_slice %685 {offsets = [0, 64], sizes = [8, 64], strides = [1, 1]} : vector<8x128xf32> to vector<8x64xf32>
    %688 = vector.extract_strided_slice %674 {offsets = [0, 128], sizes = [8, 64], strides = [1, 1]} : vector<8x192xf32> to vector<8x64xf32>
    %689 = vector.extract_strided_slice %677 {offsets = [0, 128], sizes = [8, 64], strides = [1, 1]} : vector<8x192xf32> to vector<8x64xf32>
    %690 = arith.mulf %686, %689 : vector<8x64xf32>
    %691 = arith.addf %688, %690 : vector<8x64xf32>
    %692 = math.tanh %691 : vector<8x64xf32>
    %cst_129 = arith.constant 1.000000e+00 : f32
    %693 = vector.broadcast %cst_129 : f32 to vector<8x64xf32>
    %694 = arith.subf %693, %687 : vector<8x64xf32>
    %695 = arith.mulf %694, %692 : vector<8x64xf32>
    %696 = arith.mulf %687, %659 : vector<8x64xf32>
    %697 = arith.addf %695, %696 : vector<8x64xf32>
    %698 = vector.shape_cast %23 : vector<1x64xi1> to vector<1x64xi1>
    %699 = vector.broadcast %698 : vector<1x64xi1> to vector<8x64xi1>
    %700 = vector.shape_cast %668 : vector<8x1xf32> to vector<8x1xf32>
    %701 = vector.broadcast %700 : vector<8x1xf32> to vector<8x64xf32>
    %702 = vector.shape_cast %669 : vector<8x1xf32> to vector<8x1xf32>
    %703 = vector.broadcast %702 : vector<8x1xf32> to vector<8x64xf32>
    %704 = arith.select %699, %701, %703 : vector<8x64xi1>, vector<8x64xf32>
    %cst_130 = arith.constant 0.000000e+00 : f32
    %705 = vector.broadcast %cst_130 : f32 to vector<8x64xf32>
    %706 = arith.cmpf ogt, %704, %705 : vector<8x64xf32>
    %707 = arith.select %706, %697, %659 : vector<8x64xi1>, vector<8x64xf32>
    %708 = vector.extract_strided_slice %707 {offsets = [0, 0], sizes = [8, 32], strides = [1, 1]} : vector<8x64xf32> to vector<8x32xf32>
    %709 = vector.broadcast %668 : vector<8x1xf32> to vector<8x32xf32>
    %710 = arith.mulf %708, %709 : vector<8x32xf32>
    %c40_131 = arith.constant 40 : index
    %c0_132 = arith.constant 0 : index
    %711 = vector.load %arg18[%c40_131, %c0_132] : memref<64x64xf32, #tpu.memory_space<vmem>>, vector<8x32xf32>
    tpu.vector_store %arg18[%c40_131, %c0_132], %710 {strides = array<i32>} : memref<64x64xf32, #tpu.memory_space<vmem>>, vector<8x32xf32>,
    %712 = vector.extract_strided_slice %707 {offsets = [0, 32], sizes = [8, 32], strides = [1, 1]} : vector<8x64xf32> to vector<8x32xf32>
    %713 = vector.broadcast %669 : vector<8x1xf32> to vector<8x32xf32>
    %714 = arith.mulf %712, %713 : vector<8x32xf32>
    %c16_133 = arith.constant 16 : index
    %c32_134 = arith.constant 32 : index
    %715 = vector.load %arg18[%c16_133, %c32_134] : memref<64x64xf32, #tpu.memory_space<vmem>>, vector<8x32xf32>
    tpu.vector_store %arg18[%c16_133, %c32_134], %714 {strides = array<i32>} : memref<64x64xf32, #tpu.memory_space<vmem>>, vector<8x32xf32>,
    %716 = vector.extract_strided_slice %1 {offsets = [48, 0], sizes = [8, 1], strides = [1, 1]} : vector<64x1xf32> to vector<8x1xf32>
    %717 = vector.extract_strided_slice %1 {offsets = [8, 0], sizes = [8, 1], strides = [1, 1]} : vector<64x1xf32> to vector<8x1xf32>
    %718 = vector.extract_strided_slice %426 {offsets = [48, 0], sizes = [8, 192], strides = [1, 1]} : vector<64x192xf32> to vector<8x192xf32>
    %719 = vector.extract_strided_slice %426 {offsets = [8, 0], sizes = [8, 192], strides = [1, 1]} : vector<64x192xf32> to vector<8x192xf32>
    %720 = vector.shape_cast %20 : vector<1x192xi1> to vector<1x192xi1>
    %721 = vector.broadcast %720 : vector<1x192xi1> to vector<8x192xi1>
    %722 = arith.select %721, %718, %719 : vector<8x192xi1>, vector<8x192xf32>
    %cst_135 = arith.constant dense<0.000000e+00> : vector<8x192xf32>
    %723 = tpu.matmul %707, %418, %cst_135 {dimension_numbers = #tpu.dot_dimension_numbers<[1], [0], [0], [1], [0, 0, 1, 1], [], []>} : vector<8x64xf32>, vector<64x192xf32>, vector<8x192xf32> -> vector<8x192xf32>
    %724 = vector.broadcast %419 : vector<1x192xf32> to vector<8x192xf32>
    %725 = arith.addf %723, %724 : vector<8x192xf32>
    %726 = vector.extract_strided_slice %722 {offsets = [0, 0], sizes = [8, 128], strides = [1, 1]} : vector<8x192xf32> to vector<8x128xf32>
    %727 = vector.extract_strided_slice %725 {offsets = [0, 0], sizes = [8, 128], strides = [1, 1]} : vector<8x192xf32> to vector<8x128xf32>
    %728 = arith.addf %726, %727 : vector<8x128xf32>
    %729 = arith.negf %728 : vector<8x128xf32>
    %730 = math.exp %729 : vector<8x128xf32>
    %cst_136 = arith.constant 1.000000e+00 : f32
    %731 = vector.broadcast %cst_136 : f32 to vector<8x128xf32>
    %732 = arith.addf %731, %730 : vector<8x128xf32>
    %733 = arith.divf %731, %732 : vector<8x128xf32>
    %734 = vector.extract_strided_slice %733 {offsets = [0, 0], sizes = [8, 64], strides = [1, 1]} : vector<8x128xf32> to vector<8x64xf32>
    %735 = vector.extract_strided_slice %733 {offsets = [0, 64], sizes = [8, 64], strides = [1, 1]} : vector<8x128xf32> to vector<8x64xf32>
    %736 = vector.extract_strided_slice %722 {offsets = [0, 128], sizes = [8, 64], strides = [1, 1]} : vector<8x192xf32> to vector<8x64xf32>
    %737 = vector.extract_strided_slice %725 {offsets = [0, 128], sizes = [8, 64], strides = [1, 1]} : vector<8x192xf32> to vector<8x64xf32>
    %738 = arith.mulf %734, %737 : vector<8x64xf32>
    %739 = arith.addf %736, %738 : vector<8x64xf32>
    %740 = math.tanh %739 : vector<8x64xf32>
    %cst_137 = arith.constant 1.000000e+00 : f32
    %741 = vector.broadcast %cst_137 : f32 to vector<8x64xf32>
    %742 = arith.subf %741, %735 : vector<8x64xf32>
    %743 = arith.mulf %742, %740 : vector<8x64xf32>
    %744 = arith.mulf %735, %707 : vector<8x64xf32>
    %745 = arith.addf %743, %744 : vector<8x64xf32>
    %746 = vector.shape_cast %23 : vector<1x64xi1> to vector<1x64xi1>
    %747 = vector.broadcast %746 : vector<1x64xi1> to vector<8x64xi1>
    %748 = vector.shape_cast %716 : vector<8x1xf32> to vector<8x1xf32>
    %749 = vector.broadcast %748 : vector<8x1xf32> to vector<8x64xf32>
    %750 = vector.shape_cast %717 : vector<8x1xf32> to vector<8x1xf32>
    %751 = vector.broadcast %750 : vector<8x1xf32> to vector<8x64xf32>
    %752 = arith.select %747, %749, %751 : vector<8x64xi1>, vector<8x64xf32>
    %cst_138 = arith.constant 0.000000e+00 : f32
    %753 = vector.broadcast %cst_138 : f32 to vector<8x64xf32>
    %754 = arith.cmpf ogt, %752, %753 : vector<8x64xf32>
    %755 = arith.select %754, %745, %707 : vector<8x64xi1>, vector<8x64xf32>
    %756 = vector.extract_strided_slice %755 {offsets = [0, 0], sizes = [8, 32], strides = [1, 1]} : vector<8x64xf32> to vector<8x32xf32>
    %757 = vector.broadcast %716 : vector<8x1xf32> to vector<8x32xf32>
    %758 = arith.mulf %756, %757 : vector<8x32xf32>
    %c48_139 = arith.constant 48 : index
    %c0_140 = arith.constant 0 : index
    %759 = vector.load %arg18[%c48_139, %c0_140] : memref<64x64xf32, #tpu.memory_space<vmem>>, vector<8x32xf32>
    tpu.vector_store %arg18[%c48_139, %c0_140], %758 {strides = array<i32>} : memref<64x64xf32, #tpu.memory_space<vmem>>, vector<8x32xf32>,
    %760 = vector.extract_strided_slice %755 {offsets = [0, 32], sizes = [8, 32], strides = [1, 1]} : vector<8x64xf32> to vector<8x32xf32>
    %761 = vector.broadcast %717 : vector<8x1xf32> to vector<8x32xf32>
    %762 = arith.mulf %760, %761 : vector<8x32xf32>
    %c8_141 = arith.constant 8 : index
    %c32_142 = arith.constant 32 : index
    %763 = vector.load %arg18[%c8_141, %c32_142] : memref<64x64xf32, #tpu.memory_space<vmem>>, vector<8x32xf32>
    tpu.vector_store %arg18[%c8_141, %c32_142], %762 {strides = array<i32>} : memref<64x64xf32, #tpu.memory_space<vmem>>, vector<8x32xf32>,
    %764 = vector.extract_strided_slice %1 {offsets = [56, 0], sizes = [8, 1], strides = [1, 1]} : vector<64x1xf32> to vector<8x1xf32>
    %765 = vector.extract_strided_slice %1 {offsets = [0, 0], sizes = [8, 1], strides = [1, 1]} : vector<64x1xf32> to vector<8x1xf32>
    %766 = vector.extract_strided_slice %426 {offsets = [56, 0], sizes = [8, 192], strides = [1, 1]} : vector<64x192xf32> to vector<8x192xf32>
    %767 = vector.extract_strided_slice %426 {offsets = [0, 0], sizes = [8, 192], strides = [1, 1]} : vector<64x192xf32> to vector<8x192xf32>
    %768 = vector.shape_cast %20 : vector<1x192xi1> to vector<1x192xi1>
    %769 = vector.broadcast %768 : vector<1x192xi1> to vector<8x192xi1>
    %770 = arith.select %769, %766, %767 : vector<8x192xi1>, vector<8x192xf32>
    %cst_143 = arith.constant dense<0.000000e+00> : vector<8x192xf32>
    %771 = tpu.matmul %755, %418, %cst_143 {dimension_numbers = #tpu.dot_dimension_numbers<[1], [0], [0], [1], [0, 0, 1, 1], [], []>} : vector<8x64xf32>, vector<64x192xf32>, vector<8x192xf32> -> vector<8x192xf32>
    %772 = vector.broadcast %419 : vector<1x192xf32> to vector<8x192xf32>
    %773 = arith.addf %771, %772 : vector<8x192xf32>
    %774 = vector.extract_strided_slice %770 {offsets = [0, 0], sizes = [8, 128], strides = [1, 1]} : vector<8x192xf32> to vector<8x128xf32>
    %775 = vector.extract_strided_slice %773 {offsets = [0, 0], sizes = [8, 128], strides = [1, 1]} : vector<8x192xf32> to vector<8x128xf32>
    %776 = arith.addf %774, %775 : vector<8x128xf32>
    %777 = arith.negf %776 : vector<8x128xf32>
    %778 = math.exp %777 : vector<8x128xf32>
    %cst_144 = arith.constant 1.000000e+00 : f32
    %779 = vector.broadcast %cst_144 : f32 to vector<8x128xf32>
    %780 = arith.addf %779, %778 : vector<8x128xf32>
    %781 = arith.divf %779, %780 : vector<8x128xf32>
    %782 = vector.extract_strided_slice %781 {offsets = [0, 0], sizes = [8, 64], strides = [1, 1]} : vector<8x128xf32> to vector<8x64xf32>
    %783 = vector.extract_strided_slice %781 {offsets = [0, 64], sizes = [8, 64], strides = [1, 1]} : vector<8x128xf32> to vector<8x64xf32>
    %784 = vector.extract_strided_slice %770 {offsets = [0, 128], sizes = [8, 64], strides = [1, 1]} : vector<8x192xf32> to vector<8x64xf32>
    %785 = vector.extract_strided_slice %773 {offsets = [0, 128], sizes = [8, 64], strides = [1, 1]} : vector<8x192xf32> to vector<8x64xf32>
    %786 = arith.mulf %782, %785 : vector<8x64xf32>
    %787 = arith.addf %784, %786 : vector<8x64xf32>
    %788 = math.tanh %787 : vector<8x64xf32>
    %cst_145 = arith.constant 1.000000e+00 : f32
    %789 = vector.broadcast %cst_145 : f32 to vector<8x64xf32>
    %790 = arith.subf %789, %783 : vector<8x64xf32>
    %791 = arith.mulf %790, %788 : vector<8x64xf32>
    %792 = arith.mulf %783, %755 : vector<8x64xf32>
    %793 = arith.addf %791, %792 : vector<8x64xf32>
    %794 = vector.shape_cast %23 : vector<1x64xi1> to vector<1x64xi1>
    %795 = vector.broadcast %794 : vector<1x64xi1> to vector<8x64xi1>
    %796 = vector.shape_cast %764 : vector<8x1xf32> to vector<8x1xf32>
    %797 = vector.broadcast %796 : vector<8x1xf32> to vector<8x64xf32>
    %798 = vector.shape_cast %765 : vector<8x1xf32> to vector<8x1xf32>
    %799 = vector.broadcast %798 : vector<8x1xf32> to vector<8x64xf32>
    %800 = arith.select %795, %797, %799 : vector<8x64xi1>, vector<8x64xf32>
    %cst_146 = arith.constant 0.000000e+00 : f32
    %801 = vector.broadcast %cst_146 : f32 to vector<8x64xf32>
    %802 = arith.cmpf ogt, %800, %801 : vector<8x64xf32>
    %803 = arith.select %802, %793, %755 : vector<8x64xi1>, vector<8x64xf32>
    %804 = vector.extract_strided_slice %803 {offsets = [0, 0], sizes = [8, 32], strides = [1, 1]} : vector<8x64xf32> to vector<8x32xf32>
    %805 = vector.broadcast %764 : vector<8x1xf32> to vector<8x32xf32>
    %806 = arith.mulf %804, %805 : vector<8x32xf32>
    %c56_147 = arith.constant 56 : index
    %c0_148 = arith.constant 0 : index
    %807 = vector.load %arg18[%c56_147, %c0_148] : memref<64x64xf32, #tpu.memory_space<vmem>>, vector<8x32xf32>
    tpu.vector_store %arg18[%c56_147, %c0_148], %806 {strides = array<i32>} : memref<64x64xf32, #tpu.memory_space<vmem>>, vector<8x32xf32>,
    %808 = vector.extract_strided_slice %803 {offsets = [0, 32], sizes = [8, 32], strides = [1, 1]} : vector<8x64xf32> to vector<8x32xf32>
    %809 = vector.broadcast %765 : vector<8x1xf32> to vector<8x32xf32>
    %810 = arith.mulf %808, %809 : vector<8x32xf32>
    %c0_149 = arith.constant 0 : index
    %c32_150 = arith.constant 32 : index
    %811 = vector.load %arg18[%c0_149, %c32_150] : memref<64x64xf32, #tpu.memory_space<vmem>>, vector<8x32xf32>
    tpu.vector_store %arg18[%c0_149, %c32_150], %810 {strides = array<i32>} : memref<64x64xf32, #tpu.memory_space<vmem>>, vector<8x32xf32>,
    %c0_151 = arith.constant 0 : index
    %c0_152 = arith.constant 0 : index
    %812 = vector.load %arg18[%c0_151, %c0_152] : memref<64x64xf32, #tpu.memory_space<vmem>>, vector<64x64xf32>
    %c0_153 = arith.constant 0 : index
    %c0_154 = arith.constant 0 : index
    %813 = vector.load %arg11[%c0_153, %c0_154] : memref<1x64xf32, #tpu.memory_space<vmem>>, vector<1x64xf32>
    %814 = vector.broadcast %813 : vector<1x64xf32> to vector<64x64xf32>
    %815 = arith.mulf %812, %814 : vector<64x64xf32>
    %cst_155 = arith.constant dense<0.000000e+00> : vector<64xf32>
    %816 = vector.multi_reduction <add>, %815, %cst_155 [1] : vector<64x64xf32> to vector<64xf32>
    %817 = vector.shape_cast %816 : vector<64xf32> to vector<64x1xf32>
    %818 = vector.extract_strided_slice %817 {offsets = [0, 0], sizes = [8, 1], strides = [1, 1]} : vector<64x1xf32> to vector<8x1xf32>
    %819 = vector.extract_strided_slice %817 {offsets = [8, 0], sizes = [8, 1], strides = [1, 1]} : vector<64x1xf32> to vector<8x1xf32>
    %820 = arith.maximumf %818, %819 : vector<8x1xf32>
    %821 = vector.extract_strided_slice %817 {offsets = [16, 0], sizes = [8, 1], strides = [1, 1]} : vector<64x1xf32> to vector<8x1xf32>
    %822 = arith.maximumf %820, %821 : vector<8x1xf32>
    %823 = vector.extract_strided_slice %817 {offsets = [24, 0], sizes = [8, 1], strides = [1, 1]} : vector<64x1xf32> to vector<8x1xf32>
    %824 = arith.maximumf %822, %823 : vector<8x1xf32>
    %825 = vector.extract_strided_slice %817 {offsets = [32, 0], sizes = [8, 1], strides = [1, 1]} : vector<64x1xf32> to vector<8x1xf32>
    %826 = arith.maximumf %824, %825 : vector<8x1xf32>
    %827 = vector.extract_strided_slice %817 {offsets = [40, 0], sizes = [8, 1], strides = [1, 1]} : vector<64x1xf32> to vector<8x1xf32>
    %828 = arith.maximumf %826, %827 : vector<8x1xf32>
    %829 = vector.extract_strided_slice %817 {offsets = [48, 0], sizes = [8, 1], strides = [1, 1]} : vector<64x1xf32> to vector<8x1xf32>
    %830 = arith.maximumf %828, %829 : vector<8x1xf32>
    %831 = vector.extract_strided_slice %817 {offsets = [56, 0], sizes = [8, 1], strides = [1, 1]} : vector<64x1xf32> to vector<8x1xf32>
    %832 = arith.maximumf %830, %831 : vector<8x1xf32>
    %cst_156 = arith.constant 0.000000e+00 : f32
    %833 = vector.broadcast %cst_156 : f32 to vector<8x1xf32>
    %834 = vector.extract_strided_slice %817 {offsets = [0, 0], sizes = [8, 1], strides = [1, 1]} : vector<64x1xf32> to vector<8x1xf32>
    %835 = arith.subf %834, %832 : vector<8x1xf32>
    %836 = math.exp %835 : vector<8x1xf32>
    %837 = vector.extract_strided_slice %1 {offsets = [0, 0], sizes = [8, 1], strides = [1, 1]} : vector<64x1xf32> to vector<8x1xf32>
    %838 = arith.mulf %836, %837 : vector<8x1xf32>
    %839 = arith.addf %833, %838 : vector<8x1xf32>
    %840 = vector.extract_strided_slice %817 {offsets = [8, 0], sizes = [8, 1], strides = [1, 1]} : vector<64x1xf32> to vector<8x1xf32>
    %841 = arith.subf %840, %832 : vector<8x1xf32>
    %842 = math.exp %841 : vector<8x1xf32>
    %843 = vector.extract_strided_slice %1 {offsets = [8, 0], sizes = [8, 1], strides = [1, 1]} : vector<64x1xf32> to vector<8x1xf32>
    %844 = arith.mulf %842, %843 : vector<8x1xf32>
    %845 = arith.addf %839, %844 : vector<8x1xf32>
    %846 = vector.extract_strided_slice %817 {offsets = [16, 0], sizes = [8, 1], strides = [1, 1]} : vector<64x1xf32> to vector<8x1xf32>
    %847 = arith.subf %846, %832 : vector<8x1xf32>
    %848 = math.exp %847 : vector<8x1xf32>
    %849 = vector.extract_strided_slice %1 {offsets = [16, 0], sizes = [8, 1], strides = [1, 1]} : vector<64x1xf32> to vector<8x1xf32>
    %850 = arith.mulf %848, %849 : vector<8x1xf32>
    %851 = arith.addf %845, %850 : vector<8x1xf32>
    %852 = vector.extract_strided_slice %817 {offsets = [24, 0], sizes = [8, 1], strides = [1, 1]} : vector<64x1xf32> to vector<8x1xf32>
    %853 = arith.subf %852, %832 : vector<8x1xf32>
    %854 = math.exp %853 : vector<8x1xf32>
    %855 = vector.extract_strided_slice %1 {offsets = [24, 0], sizes = [8, 1], strides = [1, 1]} : vector<64x1xf32> to vector<8x1xf32>
    %856 = arith.mulf %854, %855 : vector<8x1xf32>
    %857 = arith.addf %851, %856 : vector<8x1xf32>
    %858 = vector.extract_strided_slice %817 {offsets = [32, 0], sizes = [8, 1], strides = [1, 1]} : vector<64x1xf32> to vector<8x1xf32>
    %859 = arith.subf %858, %832 : vector<8x1xf32>
    %860 = math.exp %859 : vector<8x1xf32>
    %861 = vector.extract_strided_slice %1 {offsets = [32, 0], sizes = [8, 1], strides = [1, 1]} : vector<64x1xf32> to vector<8x1xf32>
    %862 = arith.mulf %860, %861 : vector<8x1xf32>
    %863 = arith.addf %857, %862 : vector<8x1xf32>
    %864 = vector.extract_strided_slice %817 {offsets = [40, 0], sizes = [8, 1], strides = [1, 1]} : vector<64x1xf32> to vector<8x1xf32>
    %865 = arith.subf %864, %832 : vector<8x1xf32>
    %866 = math.exp %865 : vector<8x1xf32>
    %867 = vector.extract_strided_slice %1 {offsets = [40, 0], sizes = [8, 1], strides = [1, 1]} : vector<64x1xf32> to vector<8x1xf32>
    %868 = arith.mulf %866, %867 : vector<8x1xf32>
    %869 = arith.addf %863, %868 : vector<8x1xf32>
    %870 = vector.extract_strided_slice %817 {offsets = [48, 0], sizes = [8, 1], strides = [1, 1]} : vector<64x1xf32> to vector<8x1xf32>
    %871 = arith.subf %870, %832 : vector<8x1xf32>
    %872 = math.exp %871 : vector<8x1xf32>
    %873 = vector.extract_strided_slice %1 {offsets = [48, 0], sizes = [8, 1], strides = [1, 1]} : vector<64x1xf32> to vector<8x1xf32>
    %874 = arith.mulf %872, %873 : vector<8x1xf32>
    %875 = arith.addf %869, %874 : vector<8x1xf32>
    %876 = vector.extract_strided_slice %817 {offsets = [56, 0], sizes = [8, 1], strides = [1, 1]} : vector<64x1xf32> to vector<8x1xf32>
    %877 = arith.subf %876, %832 : vector<8x1xf32>
    %878 = math.exp %877 : vector<8x1xf32>
    %879 = vector.extract_strided_slice %1 {offsets = [56, 0], sizes = [8, 1], strides = [1, 1]} : vector<64x1xf32> to vector<8x1xf32>
    %880 = arith.mulf %878, %879 : vector<8x1xf32>
    %881 = arith.addf %875, %880 : vector<8x1xf32>
    %cst_157 = arith.constant 0.000000e+00 : f32
    %882 = vector.broadcast %cst_157 : f32 to vector<8x1xf32>
    %883 = arith.cmpf oeq, %881, %882 : vector<8x1xf32>
    %884 = arith.extui %883 : vector<8x1xi1> to vector<8x1xi32>
    %885 = arith.sitofp %884 : vector<8x1xi32> to vector<8x1xf32>
    %886 = arith.addf %881, %885 : vector<8x1xf32>
    %cst_158 = arith.constant 1.000000e+00 : f32
    %887 = vector.broadcast %cst_158 : f32 to vector<8x1xf32>
    %888 = arith.divf %887, %886 : vector<8x1xf32>
    %cst_159 = arith.constant 0.000000e+00 : f32
    %889 = vector.broadcast %cst_159 : f32 to vector<8x64xf32>
    %890 = vector.extract_strided_slice %817 {offsets = [0, 0], sizes = [8, 1], strides = [1, 1]} : vector<64x1xf32> to vector<8x1xf32>
    %891 = arith.subf %890, %832 : vector<8x1xf32>
    %892 = math.exp %891 : vector<8x1xf32>
    %893 = vector.extract_strided_slice %1 {offsets = [0, 0], sizes = [8, 1], strides = [1, 1]} : vector<64x1xf32> to vector<8x1xf32>
    %894 = arith.mulf %892, %893 : vector<8x1xf32>
    %895 = arith.mulf %894, %888 : vector<8x1xf32>
    %896 = vector.extract_strided_slice %812 {offsets = [0, 0], sizes = [8, 64], strides = [1, 1]} : vector<64x64xf32> to vector<8x64xf32>
    %897 = vector.broadcast %895 : vector<8x1xf32> to vector<8x64xf32>
    %898 = arith.mulf %896, %897 : vector<8x64xf32>
    %899 = arith.addf %889, %898 : vector<8x64xf32>
    %900 = vector.extract_strided_slice %817 {offsets = [8, 0], sizes = [8, 1], strides = [1, 1]} : vector<64x1xf32> to vector<8x1xf32>
    %901 = arith.subf %900, %832 : vector<8x1xf32>
    %902 = math.exp %901 : vector<8x1xf32>
    %903 = vector.extract_strided_slice %1 {offsets = [8, 0], sizes = [8, 1], strides = [1, 1]} : vector<64x1xf32> to vector<8x1xf32>
    %904 = arith.mulf %902, %903 : vector<8x1xf32>
    %905 = arith.mulf %904, %888 : vector<8x1xf32>
    %906 = vector.extract_strided_slice %812 {offsets = [8, 0], sizes = [8, 64], strides = [1, 1]} : vector<64x64xf32> to vector<8x64xf32>
    %907 = vector.broadcast %905 : vector<8x1xf32> to vector<8x64xf32>
    %908 = arith.mulf %906, %907 : vector<8x64xf32>
    %909 = arith.addf %899, %908 : vector<8x64xf32>
    %910 = vector.extract_strided_slice %817 {offsets = [16, 0], sizes = [8, 1], strides = [1, 1]} : vector<64x1xf32> to vector<8x1xf32>
    %911 = arith.subf %910, %832 : vector<8x1xf32>
    %912 = math.exp %911 : vector<8x1xf32>
    %913 = vector.extract_strided_slice %1 {offsets = [16, 0], sizes = [8, 1], strides = [1, 1]} : vector<64x1xf32> to vector<8x1xf32>
    %914 = arith.mulf %912, %913 : vector<8x1xf32>
    %915 = arith.mulf %914, %888 : vector<8x1xf32>
    %916 = vector.extract_strided_slice %812 {offsets = [16, 0], sizes = [8, 64], strides = [1, 1]} : vector<64x64xf32> to vector<8x64xf32>
    %917 = vector.broadcast %915 : vector<8x1xf32> to vector<8x64xf32>
    %918 = arith.mulf %916, %917 : vector<8x64xf32>
    %919 = arith.addf %909, %918 : vector<8x64xf32>
    %920 = vector.extract_strided_slice %817 {offsets = [24, 0], sizes = [8, 1], strides = [1, 1]} : vector<64x1xf32> to vector<8x1xf32>
    %921 = arith.subf %920, %832 : vector<8x1xf32>
    %922 = math.exp %921 : vector<8x1xf32>
    %923 = vector.extract_strided_slice %1 {offsets = [24, 0], sizes = [8, 1], strides = [1, 1]} : vector<64x1xf32> to vector<8x1xf32>
    %924 = arith.mulf %922, %923 : vector<8x1xf32>
    %925 = arith.mulf %924, %888 : vector<8x1xf32>
    %926 = vector.extract_strided_slice %812 {offsets = [24, 0], sizes = [8, 64], strides = [1, 1]} : vector<64x64xf32> to vector<8x64xf32>
    %927 = vector.broadcast %925 : vector<8x1xf32> to vector<8x64xf32>
    %928 = arith.mulf %926, %927 : vector<8x64xf32>
    %929 = arith.addf %919, %928 : vector<8x64xf32>
    %930 = vector.extract_strided_slice %817 {offsets = [32, 0], sizes = [8, 1], strides = [1, 1]} : vector<64x1xf32> to vector<8x1xf32>
    %931 = arith.subf %930, %832 : vector<8x1xf32>
    %932 = math.exp %931 : vector<8x1xf32>
    %933 = vector.extract_strided_slice %1 {offsets = [32, 0], sizes = [8, 1], strides = [1, 1]} : vector<64x1xf32> to vector<8x1xf32>
    %934 = arith.mulf %932, %933 : vector<8x1xf32>
    %935 = arith.mulf %934, %888 : vector<8x1xf32>
    %936 = vector.extract_strided_slice %812 {offsets = [32, 0], sizes = [8, 64], strides = [1, 1]} : vector<64x64xf32> to vector<8x64xf32>
    %937 = vector.broadcast %935 : vector<8x1xf32> to vector<8x64xf32>
    %938 = arith.mulf %936, %937 : vector<8x64xf32>
    %939 = arith.addf %929, %938 : vector<8x64xf32>
    %940 = vector.extract_strided_slice %817 {offsets = [40, 0], sizes = [8, 1], strides = [1, 1]} : vector<64x1xf32> to vector<8x1xf32>
    %941 = arith.subf %940, %832 : vector<8x1xf32>
    %942 = math.exp %941 : vector<8x1xf32>
    %943 = vector.extract_strided_slice %1 {offsets = [40, 0], sizes = [8, 1], strides = [1, 1]} : vector<64x1xf32> to vector<8x1xf32>
    %944 = arith.mulf %942, %943 : vector<8x1xf32>
    %945 = arith.mulf %944, %888 : vector<8x1xf32>
    %946 = vector.extract_strided_slice %812 {offsets = [40, 0], sizes = [8, 64], strides = [1, 1]} : vector<64x64xf32> to vector<8x64xf32>
    %947 = vector.broadcast %945 : vector<8x1xf32> to vector<8x64xf32>
    %948 = arith.mulf %946, %947 : vector<8x64xf32>
    %949 = arith.addf %939, %948 : vector<8x64xf32>
    %950 = vector.extract_strided_slice %817 {offsets = [48, 0], sizes = [8, 1], strides = [1, 1]} : vector<64x1xf32> to vector<8x1xf32>
    %951 = arith.subf %950, %832 : vector<8x1xf32>
    %952 = math.exp %951 : vector<8x1xf32>
    %953 = vector.extract_strided_slice %1 {offsets = [48, 0], sizes = [8, 1], strides = [1, 1]} : vector<64x1xf32> to vector<8x1xf32>
    %954 = arith.mulf %952, %953 : vector<8x1xf32>
    %955 = arith.mulf %954, %888 : vector<8x1xf32>
    %956 = vector.extract_strided_slice %812 {offsets = [48, 0], sizes = [8, 64], strides = [1, 1]} : vector<64x64xf32> to vector<8x64xf32>
    %957 = vector.broadcast %955 : vector<8x1xf32> to vector<8x64xf32>
    %958 = arith.mulf %956, %957 : vector<8x64xf32>
    %959 = arith.addf %949, %958 : vector<8x64xf32>
    %960 = vector.extract_strided_slice %817 {offsets = [56, 0], sizes = [8, 1], strides = [1, 1]} : vector<64x1xf32> to vector<8x1xf32>
    %961 = arith.subf %960, %832 : vector<8x1xf32>
    %962 = math.exp %961 : vector<8x1xf32>
    %963 = vector.extract_strided_slice %1 {offsets = [56, 0], sizes = [8, 1], strides = [1, 1]} : vector<64x1xf32> to vector<8x1xf32>
    %964 = arith.mulf %962, %963 : vector<8x1xf32>
    %965 = arith.mulf %964, %888 : vector<8x1xf32>
    %966 = vector.extract_strided_slice %812 {offsets = [56, 0], sizes = [8, 64], strides = [1, 1]} : vector<64x64xf32> to vector<8x64xf32>
    %967 = vector.broadcast %965 : vector<8x1xf32> to vector<8x64xf32>
    %968 = arith.mulf %966, %967 : vector<8x64xf32>
    %969 = arith.addf %959, %968 : vector<8x64xf32>
    %c0_160 = arith.constant 0 : index
    %c0_161 = arith.constant 0 : index
    %970 = vector.load %arg12[%c0_160, %c0_161] : memref<1x64xf32, #tpu.memory_space<vmem>>, vector<1x64xf32>
    %971 = vector.broadcast %970 : vector<1x64xf32> to vector<8x64xf32>
    %972 = arith.mulf %969, %971 : vector<8x64xf32>
    %cst_162 = arith.constant dense<0.000000e+00> : vector<8xf32>
    %973 = vector.multi_reduction <add>, %972, %cst_162 [1] : vector<8x64xf32> to vector<8xf32>
    %974 = vector.shape_cast %973 : vector<8xf32> to vector<8x1xf32>
    %cst_163 = arith.constant dense<0xFF800000> : vector<1xf32>
    %975 = vector.multi_reduction <maximumf>, %974, %cst_163 [0] : vector<8x1xf32> to vector<1xf32>
    %976 = vector.shape_cast %975 : vector<1xf32> to vector<1x1xf32>
    %977 = vector.broadcast %976 : vector<1x1xf32> to vector<8x1xf32>
    %978 = arith.subf %974, %977 : vector<8x1xf32>
    %979 = vector.extract_strided_slice %1 {offsets = [0, 0], sizes = [8, 1], strides = [1, 1]} : vector<64x1xf32> to vector<8x1xf32>
    %980 = vector.extract_strided_slice %1 {offsets = [8, 0], sizes = [8, 1], strides = [1, 1]} : vector<64x1xf32> to vector<8x1xf32>
    %981 = arith.maximumf %979, %980 : vector<8x1xf32>
    %982 = vector.extract_strided_slice %1 {offsets = [16, 0], sizes = [8, 1], strides = [1, 1]} : vector<64x1xf32> to vector<8x1xf32>
    %983 = arith.maximumf %981, %982 : vector<8x1xf32>
    %984 = vector.extract_strided_slice %1 {offsets = [24, 0], sizes = [8, 1], strides = [1, 1]} : vector<64x1xf32> to vector<8x1xf32>
    %985 = arith.maximumf %983, %984 : vector<8x1xf32>
    %986 = vector.extract_strided_slice %1 {offsets = [32, 0], sizes = [8, 1], strides = [1, 1]} : vector<64x1xf32> to vector<8x1xf32>
    %987 = arith.maximumf %985, %986 : vector<8x1xf32>
    %988 = vector.extract_strided_slice %1 {offsets = [40, 0], sizes = [8, 1], strides = [1, 1]} : vector<64x1xf32> to vector<8x1xf32>
    %989 = arith.maximumf %987, %988 : vector<8x1xf32>
    %990 = vector.extract_strided_slice %1 {offsets = [48, 0], sizes = [8, 1], strides = [1, 1]} : vector<64x1xf32> to vector<8x1xf32>
    %991 = arith.maximumf %989, %990 : vector<8x1xf32>
    %992 = vector.extract_strided_slice %1 {offsets = [56, 0], sizes = [8, 1], strides = [1, 1]} : vector<64x1xf32> to vector<8x1xf32>
    %993 = arith.maximumf %991, %992 : vector<8x1xf32>
    %994 = math.exp %978 : vector<8x1xf32>
    %995 = arith.mulf %994, %993 : vector<8x1xf32>
    %cst_164 = arith.constant dense<0.000000e+00> : vector<1xf32>
    %996 = vector.multi_reduction <add>, %995, %cst_164 [0] : vector<8x1xf32> to vector<1xf32>
    %997 = vector.shape_cast %996 : vector<1xf32> to vector<1x1xf32>
    %998 = vector.broadcast %997 : vector<1x1xf32> to vector<8x1xf32>
    %999 = arith.divf %995, %998 : vector<8x1xf32>
    %1000 = vector.broadcast %999 : vector<8x1xf32> to vector<8x64xf32>
    %1001 = arith.mulf %969, %1000 : vector<8x64xf32>
    %cst_165 = arith.constant dense<0.000000e+00> : vector<64xf32>
    %1002 = vector.multi_reduction <add>, %1001, %cst_165 [0] : vector<8x64xf32> to vector<64xf32>
    %1003 = vector.shape_cast %1002 : vector<64xf32> to vector<1x64xf32>
    %c0_166 = arith.constant 0 : index
    %c0_167 = arith.constant 0 : index
    %1004 = vector.load %arg13[%c0_166, %c0_167] : memref<64x32xf32, #tpu.memory_space<vmem>>, vector<64x32xf32>
    %cst_168 = arith.constant dense<0.000000e+00> : vector<1x32xf32>
    %1005 = tpu.matmul %1003, %1004, %cst_168 {dimension_numbers = #tpu.dot_dimension_numbers<[1], [0], [0], [1], [0, 0, 1, 1], [], []>} : vector<1x64xf32>, vector<64x32xf32>, vector<1x32xf32> -> vector<1x32xf32>
    %c0_169 = arith.constant 0 : index
    %c0_170 = arith.constant 0 : index
    %1006 = vector.load %arg14[%c0_169, %c0_170] : memref<1x32xf32, #tpu.memory_space<vmem>>, vector<1x32xf32>
    %1007 = arith.addf %1005, %1006 : vector<1x32xf32>
    %cst_171 = arith.constant 0.000000e+00 : f32
    %1008 = vector.broadcast %cst_171 : f32 to vector<1x32xf32>
    %1009 = arith.maximumf %1007, %1008 : vector<1x32xf32>
    %c0_172 = arith.constant 0 : index
    %c0_173 = arith.constant 0 : index
    %1010 = vector.load %arg15[%c0_172, %c0_173] : memref<32x5xf32, #tpu.memory_space<vmem>>, vector<32x5xf32>
    %cst_174 = arith.constant dense<0.000000e+00> : vector<1x5xf32>
    %1011 = tpu.matmul %1009, %1010, %cst_174 {dimension_numbers = #tpu.dot_dimension_numbers<[1], [0], [0], [1], [0, 0, 1, 1], [], []>} : vector<1x32xf32>, vector<32x5xf32>, vector<1x5xf32> -> vector<1x5xf32>
    %c0_175 = arith.constant 0 : index
    %c0_176 = arith.constant 0 : index
    %1012 = vector.load %arg16[%c0_175, %c0_176] : memref<1x5xf32, #tpu.memory_space<vmem>>, vector<1x5xf32>
    %1013 = arith.addf %1011, %1012 : vector<1x5xf32>
    %c0_177 = arith.constant 0 : index
    %c0_178 = arith.constant 0 : index
    %c0_179 = arith.constant 0 : index
    %1014 = vector.load %arg17[%c0_177, %c0_178, %c0_179] : memref<1x1x5xf32, #tpu.memory_space<vmem>>, vector<1x1x5xf32>
    %1015 = vector.shape_cast %1014 : vector<1x1x5xf32> to vector<1x5xf32>
    %1016 = vector.shape_cast %1013 : vector<1x5xf32> to vector<1x1x5xf32>
    tpu.vector_store %arg17[%c0_177, %c0_178, %c0_179], %1016 {strides = array<i32>} : memref<1x1x5xf32, #tpu.memory_space<vmem>>, vector<1x1x5xf32>,
    return
  }
  func.func @transform_0(%arg0: i32) -> (i32, i32, i32) {
    %c0_i32 = arith.constant 0 : i32
    %c0_i32_0 = arith.constant 0 : i32
    %c0_i32_1 = arith.constant 0 : i32
    return %arg0, %c0_i32, %c0_i32_0 : i32, i32, i32
  }
  func.func @transform_1(%arg0: i32) -> (i32, i32, i32) {
    %c0_i32 = arith.constant 0 : i32
    %c0_i32_0 = arith.constant 0 : i32
    %c0_i32_1 = arith.constant 0 : i32
    return %arg0, %c0_i32, %c0_i32_0 : i32, i32, i32
  }
  func.func @transform_2(%arg0: i32) -> (i32, i32) {
    %c0_i32 = arith.constant 0 : i32
    %c0_i32_0 = arith.constant 0 : i32
    %c0_i32_1 = arith.constant 0 : i32
    return %c0_i32, %c0_i32_0 : i32, i32
  }
  func.func @transform_3(%arg0: i32) -> (i32, i32) {
    %c0_i32 = arith.constant 0 : i32
    %c0_i32_0 = arith.constant 0 : i32
    %c0_i32_1 = arith.constant 0 : i32
    return %c0_i32, %c0_i32_0 : i32, i32
  }
  func.func @transform_4(%arg0: i32) -> (i32, i32) {
    %c0_i32 = arith.constant 0 : i32
    %c0_i32_0 = arith.constant 0 : i32
    %c0_i32_1 = arith.constant 0 : i32
    return %c0_i32, %c0_i32_0 : i32, i32
  }
  func.func @transform_5(%arg0: i32) -> (i32, i32) {
    %c0_i32 = arith.constant 0 : i32
    %c0_i32_0 = arith.constant 0 : i32
    %c0_i32_1 = arith.constant 0 : i32
    return %c0_i32, %c0_i32_0 : i32, i32
  }
  func.func @transform_6(%arg0: i32) -> (i32, i32) {
    %c0_i32 = arith.constant 0 : i32
    %c0_i32_0 = arith.constant 0 : i32
    %c0_i32_1 = arith.constant 0 : i32
    return %c0_i32, %c0_i32_0 : i32, i32
  }
  func.func @transform_7(%arg0: i32) -> (i32, i32) {
    %c0_i32 = arith.constant 0 : i32
    %c0_i32_0 = arith.constant 0 : i32
    %c0_i32_1 = arith.constant 0 : i32
    return %c0_i32, %c0_i32_0 : i32, i32
  }
  func.func @transform_8(%arg0: i32) -> (i32, i32) {
    %c0_i32 = arith.constant 0 : i32
    %c0_i32_0 = arith.constant 0 : i32
    %c0_i32_1 = arith.constant 0 : i32
    return %c0_i32, %c0_i32_0 : i32, i32
  }
  func.func @transform_9(%arg0: i32) -> (i32, i32) {
    %c0_i32 = arith.constant 0 : i32
    %c0_i32_0 = arith.constant 0 : i32
    %c0_i32_1 = arith.constant 0 : i32
    return %c0_i32, %c0_i32_0 : i32, i32
  }
  func.func @transform_10(%arg0: i32) -> (i32, i32) {
    %c0_i32 = arith.constant 0 : i32
    %c0_i32_0 = arith.constant 0 : i32
    %c0_i32_1 = arith.constant 0 : i32
    return %c0_i32, %c0_i32_0 : i32, i32
  }
  func.func @transform_11(%arg0: i32) -> (i32, i32) {
    %c0_i32 = arith.constant 0 : i32
    %c0_i32_0 = arith.constant 0 : i32
    %c0_i32_1 = arith.constant 0 : i32
    return %c0_i32, %c0_i32_0 : i32, i32
  }
  func.func @transform_12(%arg0: i32) -> (i32, i32) {
    %c0_i32 = arith.constant 0 : i32
    %c0_i32_0 = arith.constant 0 : i32
    %c0_i32_1 = arith.constant 0 : i32
    return %c0_i32, %c0_i32_0 : i32, i32
  }
  func.func @transform_13(%arg0: i32) -> (i32, i32) {
    %c0_i32 = arith.constant 0 : i32
    %c0_i32_0 = arith.constant 0 : i32
    %c0_i32_1 = arith.constant 0 : i32
    return %c0_i32, %c0_i32_0 : i32, i32
  }
  func.func @transform_14(%arg0: i32) -> (i32, i32) {
    %c0_i32 = arith.constant 0 : i32
    %c0_i32_0 = arith.constant 0 : i32
    %c0_i32_1 = arith.constant 0 : i32
    return %c0_i32, %c0_i32_0 : i32, i32
  }
  func.func @transform_15(%arg0: i32) -> (i32, i32) {
    %c0_i32 = arith.constant 0 : i32
    %c0_i32_0 = arith.constant 0 : i32
    %c0_i32_1 = arith.constant 0 : i32
    return %c0_i32, %c0_i32_0 : i32, i32
  }
  func.func @transform_16(%arg0: i32) -> (i32, i32, i32) {
    %c0_i32 = arith.constant 0 : i32
    %c0_i32_0 = arith.constant 0 : i32
    %c0_i32_1 = arith.constant 0 : i32
    return %arg0, %c0_i32, %c0_i32_0 : i32, i32, i32
  }
}

</mosaic_0001>

<llo_original>
// kernel: dds_forward.1
$region0: #{dds_forward.1}
  #allocation0 [shape = 'u32[]', space=smem, size = 0x4, offset = 0x4, fixed_abs, tag = 'smem constant byte address 0x4 - core index']
  #allocation1 [shape = 'u32[144,128]{1,0:T(1,128)}', space=vmem, size = 0x12000, scoped, tag = 'internal scratch']
  #allocation2 [shape = 'f32[64,64]{1,0:T(8,128)}', space=vmem, size = 0x8000, scoped, tag = 'scratch operand']
  %s0 = inlined_call_operand.vmem [shape: bf16[4,64,24], index: 0, kind: input, shape index: {}]
  %s1 = inlined_call_operand.vmem [shape: f32[4,64,1], index: 1, kind: input, shape index: {}]
  %s2 = inlined_call_operand.vmem [shape: bf16[24,192], index: 2, kind: input, shape index: {}]
  %s3 = inlined_call_operand.vmem [shape: f32[1,192], index: 3, kind: input, shape index: {}]
  %s4 = inlined_call_operand.vmem [shape: f32[64,192], index: 4, kind: input, shape index: {}]
  %s5 = inlined_call_operand.vmem [shape: f32[1,192], index: 5, kind: input, shape index: {}]
  %s6 = inlined_call_operand.vmem [shape: bf16[64,192], index: 6, kind: input, shape index: {}]
  %s7 = inlined_call_operand.vmem [shape: f32[1,192], index: 7, kind: input, shape index: {}]
  %s8 = inlined_call_operand.vmem [shape: f32[64,192], index: 8, kind: input, shape index: {}]
  %s9 = inlined_call_operand.vmem [shape: f32[1,192], index: 9, kind: input, shape index: {}]
  %s10 = inlined_call_operand.vmem [shape: f32[1,64], index: 10, kind: input, shape index: {}]
  %s11 = inlined_call_operand.vmem [shape: f32[1,64], index: 11, kind: input, shape index: {}]
  %s12 = inlined_call_operand.vmem [shape: f32[64,32], index: 12, kind: input, shape index: {}]
  %s13 = inlined_call_operand.vmem [shape: f32[1,32], index: 13, kind: input, shape index: {}]
  %s14 = inlined_call_operand.vmem [shape: f32[32,5], index: 14, kind: input, shape index: {}]
  %s15 = inlined_call_operand.vmem [shape: f32[1,5], index: 15, kind: input, shape index: {}]
  %s16 = inlined_call_operand.hbm [shape: f32[4,1,5], index: 16, kind: output, shape index: {}]
  %s17 = sld [smem:[#allocation0]]
  $region97: #{dds_forward.1} parent=0
    _
  %s19 = ssub.s32 1, %s17
  %s20 = scalar_select 0, %s19, %s17
  $region1: #{dds_forward.1} parent=0
    #allocation3 [shape = 'u8[1024]{0}', space=vmem, size = 0x400, scoped, tag = 'output window, operand 0']
    #allocation4 [shape = 's32[2]{0}', space=sflag, size = 0x8, scoped, tag = 'scoped memory for dds_forward.1']
    %21 = vsyncpa [#allocation4], 0
    %s22 = scalar_lea.sflag [#allocation4], 1
    %23 = vsyncpa %s22, 0
    loop: start=0, step=1, limit=6
    $region2: #{dds_forward.1} parent=1 // loop_pre_header
      _
    $region3: #{dds_forward.1} parent=1 // loop_header
      %s25 = sphi 0, %s29
      %p26 = scmp.ge.s32.totalorder %s25, 6
      %s35 = sphi 0, %s37
      %s38 = sphi 0, %s35
      %s39 = sphi 0, %s38
      %s55 = sphi 0, %s39
      %s61 = sphi 0, %s63
      %s64 = sphi 0, %s61
      %s65 = sphi 0, %s64
      %s81 = sphi 0, %s65
      %s85 = sphi 0, %s85
      %s87 = sphi 0, %s85
      %s88 = sphi 0, %s87
      %s102 = sphi 0, %s88
      %s106 = sphi 0, %s106
      %s108 = sphi 0, %s106
      %s109 = sphi 0, %s108
      %s123 = sphi 0, %s109
      %s127 = sphi 0, %s127
      %s129 = sphi 0, %s127
      %s130 = sphi 0, %s129
      %s144 = sphi 0, %s130
      %s148 = sphi 0, %s148
      %s150 = sphi 0, %s148
      %s151 = sphi 0, %s150
      %s165 = sphi 0, %s151
      %s169 = sphi 0, %s169
      %s171 = sphi 0, %s169
      %s172 = sphi 0, %s171
      %s186 = sphi 0, %s172
      %s190 = sphi 0, %s190
      %s192 = sphi 0, %s190
      %s193 = sphi 0, %s192
      %s207 = sphi 0, %s193
      %s211 = sphi 0, %s211
      %s213 = sphi 0, %s211
      %s214 = sphi 0, %s213
      %s228 = sphi 0, %s214
      %s232 = sphi 0, %s232
      %s234 = sphi 0, %s232
      %s235 = sphi 0, %s234
      %s249 = sphi 0, %s235
      %s253 = sphi 0, %s253
      %s255 = sphi 0, %s253
      %s256 = sphi 0, %s255
      %s270 = sphi 0, %s256
      %s274 = sphi 0, %s274
      %s276 = sphi 0, %s274
      %s277 = sphi 0, %s276
      %s291 = sphi 0, %s277
      %s295 = sphi 0, %s295
      %s297 = sphi 0, %s295
      %s298 = sphi 0, %s297
      %s312 = sphi 0, %s298
      %s316 = sphi 0, %s316
      %s318 = sphi 0, %s316
      %s319 = sphi 0, %s318
      %s333 = sphi 0, %s319
      %s337 = sphi 0, %s337
      %s339 = sphi 0, %s337
      %s340 = sphi 0, %s339
      %s354 = sphi 0, %s340
      %s358 = sphi 0, %s358
      %s360 = sphi 0, %s358
      %s361 = sphi 0, %s360
      %s375 = sphi 0, %s361
      %s381 = sphi 0, %s383
      %s384 = sphi 0, %s381
      %s385 = sphi 0, %s384
      %s401 = sphi 0, %s385
    $region4: #{dds_forward.1} parent=1 // loop_header_branch
      %28 = sbr.rel (%p26) target = $region8
    $region5: #{dds_forward.1} parent=1 // loop_body
      %s30 = ssub.s32 %s25, 1
      %s31 = ssub.s32 %s25, 2
      %s32 = sadd.s32 %s25, 1
      %s33 = ssub.s32 %s25, %s32
      %p34 = scmp.eq.s32.totalorder %s33, 0
      %s36 = sadd.s32 %s35, 1
      %s37 = scalar_select %p34, %s35, %s36
      %p40 = pneg %p34
      %p41 = scmp.eq.s32.totalorder %s25, 3
      %p42 = por %p40, %p41
      %p43 = scmp.ne.s32.totalorder %s35, %s38
      %p44 = scmp.eq.s32.totalorder %s25, 0
      %p45 = por %p43, %p44
      %p46 = scmp.ne.s32.totalorder %s35, %s38
      %p47 = scmp.eq.s32.totalorder %s30, 3
      %p48 = por %p46, %p47
      %p49 = scmp.ne.s32.totalorder %s38, %s39
      %p50 = scmp.eq.s32.totalorder %s30, 0
      %p51 = por %p49, %p50
      %p52 = scmp.ne.s32.totalorder %s38, %s39
      %p53 = scmp.eq.s32.totalorder %s31, 3
      %p54 = por %p52, %p53
      %p56 = scmp.ne.s32.totalorder %s39, %s55
      %p57 = scmp.eq.s32.totalorder %s31, 0
      %p58 = por %p56, %p57
      %s59 = ssub.s32 %s25, %s32
      %p60 = scmp.eq.s32.totalorder %s59, 0
      %s62 = sadd.s32 %s61, 1
      %s63 = scalar_select %p60, %s61, %s62
      %p66 = pneg %p60
      %p67 = scmp.eq.s32.totalorder %s25, 3
      %p68 = por %p66, %p67
      %p69 = scmp.ne.s32.totalorder %s61, %s64
      %p70 = scmp.eq.s32.totalorder %s25, 0
      %p71 = por %p69, %p70
      %p72 = scmp.ne.s32.totalorder %s61, %s64
      %p73 = scmp.eq.s32.totalorder %s30, 3
      %p74 = por %p72, %p73
      %p75 = scmp.ne.s32.totalorder %s64, %s65
      %p76 = scmp.eq.s32.totalorder %s30, 0
      %p77 = por %p75, %p76
      %p78 = scmp.ne.s32.totalorder %s64, %s65
      %p79 = scmp.eq.s32.totalorder %s31, 3
      %p80 = por %p78, %p79
      %p82 = scmp.ne.s32.totalorder %s65, %s81
      %p83 = scmp.eq.s32.totalorder %s31, 0
      %p84 = por %p82, %p83
      %s86 = sadd.s32 %s85, 1
      %p89 = scmp.eq.s32.totalorder %s25, 3
      %p90 = scmp.ne.s32.totalorder %s85, %s87
      %p91 = scmp.eq.s32.totalorder %s25, 0
      %p92 = por %p90, %p91
      %p93 = scmp.ne.s32.totalorder %s85, %s87
      %p94 = scmp.eq.s32.totalorder %s30, 3
      %p95 = por %p93, %p94
      %p96 = scmp.ne.s32.totalorder %s87, %s88
      %p97 = scmp.eq.s32.totalorder %s30, 0
      %p98 = por %p96, %p97
      %p99 = scmp.ne.s32.totalorder %s87, %s88
      %p100 = scmp.eq.s32.totalorder %s31, 3
      %p101 = por %p99, %p100
      %p103 = scmp.ne.s32.totalorder %s88, %s102
      %p104 = scmp.eq.s32.totalorder %s31, 0
      %p105 = por %p103, %p104
      %s107 = sadd.s32 %s106, 1
      %p110 = scmp.eq.s32.totalorder %s25, 3
      %p111 = scmp.ne.s32.totalorder %s106, %s108
      %p112 = scmp.eq.s32.totalorder %s25, 0
      %p113 = por %p111, %p112
      %p114 = scmp.ne.s32.totalorder %s106, %s108
      %p115 = scmp.eq.s32.totalorder %s30, 3
      %p116 = por %p114, %p115
      %p117 = scmp.ne.s32.totalorder %s108, %s109
      %p118 = scmp.eq.s32.totalorder %s30, 0
      %p119 = por %p117, %p118
      %p120 = scmp.ne.s32.totalorder %s108, %s109
      %p121 = scmp.eq.s32.totalorder %s31, 3
      %p122 = por %p120, %p121
      %p124 = scmp.ne.s32.totalorder %s109, %s123
      %p125 = scmp.eq.s32.totalorder %s31, 0
      %p126 = por %p124, %p125
      %s128 = sadd.s32 %s127, 1
      %p131 = scmp.eq.s32.totalorder %s25, 3
      %p132 = scmp.ne.s32.totalorder %s127, %s129
      %p133 = scmp.eq.s32.totalorder %s25, 0
      %p134 = por %p132, %p133
      %p135 = scmp.ne.s32.totalorder %s127, %s129
      %p136 = scmp.eq.s32.totalorder %s30, 3
      %p137 = por %p135, %p136
      %p138 = scmp.ne.s32.totalorder %s129, %s130
      %p139 = scmp.eq.s32.totalorder %s30, 0
      %p140 = por %p138, %p139
      %p141 = scmp.ne.s32.totalorder %s129, %s130
      %p142 = scmp.eq.s32.totalorder %s31, 3
      %p143 = por %p141, %p142
      %p145 = scmp.ne.s32.totalorder %s130, %s144
      %p146 = scmp.eq.s32.totalorder %s31, 0
      %p147 = por %p145, %p146
      %s149 = sadd.s32 %s148, 1
      %p152 = scmp.eq.s32.totalorder %s25, 3
      %p153 = scmp.ne.s32.totalorder %s148, %s150
      %p154 = scmp.eq.s32.totalorder %s25, 0
      %p155 = por %p153, %p154
      %p156 = scmp.ne.s32.totalorder %s148, %s150
      %p157 = scmp.eq.s32.totalorder %s30, 3
      %p158 = por %p156, %p157
      %p159 = scmp.ne.s32.totalorder %s150, %s151
      %p160 = scmp.eq.s32.totalorder %s30, 0
      %p161 = por %p159, %p160
      %p162 = scmp.ne.s32.totalorder %s150, %s151
      %p163 = scmp.eq.s32.totalorder %s31, 3
      %p164 = por %p162, %p163
      %p166 = scmp.ne.s32.totalorder %s151, %s165
      %p167 = scmp.eq.s32.totalorder %s31, 0
      %p168 = por %p166, %p167
      %s170 = sadd.s32 %s169, 1
      %p173 = scmp.eq.s32.totalorder %s25, 3
      %p174 = scmp.ne.s32.totalorder %s169, %s171
      %p175 = scmp.eq.s32.totalorder %s25, 0
      %p176 = por %p174, %p175
      %p177 = scmp.ne.s32.totalorder %s169, %s171
      %p178 = scmp.eq.s32.totalorder %s30, 3
      %p179 = por %p177, %p178
      %p180 = scmp.ne.s32.totalorder %s171, %s172
      %p181 = scmp.eq.s32.totalorder %s30, 0
      %p182 = por %p180, %p181
      %p183 = scmp.ne.s32.totalorder %s171, %s172
      %p184 = scmp.eq.s32.totalorder %s31, 3
      %p185 = por %p183, %p184
      %p187 = scmp.ne.s32.totalorder %s172, %s186
      %p188 = scmp.eq.s32.totalorder %s31, 0
      %p189 = por %p187, %p188
      %s191 = sadd.s32 %s190, 1
      %p194 = scmp.eq.s32.totalorder %s25, 3
      %p195 = scmp.ne.s32.totalorder %s190, %s192
      %p196 = scmp.eq.s32.totalorder %s25, 0
      %p197 = por %p195, %p196
      %p198 = scmp.ne.s32.totalorder %s190, %s192
      %p199 = scmp.eq.s32.totalorder %s30, 3
      %p200 = por %p198, %p199
      %p201 = scmp.ne.s32.totalorder %s192, %s193
      %p202 = scmp.eq.s32.totalorder %s30, 0
      %p203 = por %p201, %p202
      %p204 = scmp.ne.s32.totalorder %s192, %s193
      %p205 = scmp.eq.s32.totalorder %s31, 3
      %p206 = por %p204, %p205
      %p208 = scmp.ne.s32.totalorder %s193, %s207
      %p209 = scmp.eq.s32.totalorder %s31, 0
      %p210 = por %p208, %p209
      %s212 = sadd.s32 %s211, 1
      %p215 = scmp.eq.s32.totalorder %s25, 3
      %p216 = scmp.ne.s32.totalorder %s211, %s213
      %p217 = scmp.eq.s32.totalorder %s25, 0
      %p218 = por %p216, %p217
      %p219 = scmp.ne.s32.totalorder %s211, %s213
      %p220 = scmp.eq.s32.totalorder %s30, 3
      %p221 = por %p219, %p220
      %p222 = scmp.ne.s32.totalorder %s213, %s214
      %p223 = scmp.eq.s32.totalorder %s30, 0
      %p224 = por %p222, %p223
      %p225 = scmp.ne.s32.totalorder %s213, %s214
      %p226 = scmp.eq.s32.totalorder %s31, 3
      %p227 = por %p225, %p226
      %p229 = scmp.ne.s32.totalorder %s214, %s228
      %p230 = scmp.eq.s32.totalorder %s31, 0
      %p231 = por %p229, %p230
      %s233 = sadd.s32 %s232, 1
      %p236 = scmp.eq.s32.totalorder %s25, 3
      %p237 = scmp.ne.s32.totalorder %s232, %s234
      %p238 = scmp.eq.s32.totalorder %s25, 0
      %p239 = por %p237, %p238
      %p240 = scmp.ne.s32.totalorder %s232, %s234
      %p241 = scmp.eq.s32.totalorder %s30, 3
      %p242 = por %p240, %p241
      %p243 = scmp.ne.s32.totalorder %s234, %s235
      %p244 = scmp.eq.s32.totalorder %s30, 0
      %p245 = por %p243, %p244
      %p246 = scmp.ne.s32.totalorder %s234, %s235
      %p247 = scmp.eq.s32.totalorder %s31, 3
      %p248 = por %p246, %p247
      %p250 = scmp.ne.s32.totalorder %s235, %s249
      %p251 = scmp.eq.s32.totalorder %s31, 0
      %p252 = por %p250, %p251
      %s254 = sadd.s32 %s253, 1
      %p257 = scmp.eq.s32.totalorder %s25, 3
      %p258 = scmp.ne.s32.totalorder %s253, %s255
      %p259 = scmp.eq.s32.totalorder %s25, 0
      %p260 = por %p258, %p259
      %p261 = scmp.ne.s32.totalorder %s253, %s255
      %p262 = scmp.eq.s32.totalorder %s30, 3
      %p263 = por %p261, %p262
      %p264 = scmp.ne.s32.totalorder %s255, %s256
      %p265 = scmp.eq.s32.totalorder %s30, 0
      %p266 = por %p264, %p265
      %p267 = scmp.ne.s32.totalorder %s255, %s256
      %p268 = scmp.eq.s32.totalorder %s31, 3
      %p269 = por %p267, %p268
      %p271 = scmp.ne.s32.totalorder %s256, %s270
      %p272 = scmp.eq.s32.totalorder %s31, 0
      %p273 = por %p271, %p272
      %s275 = sadd.s32 %s274, 1
      %p278 = scmp.eq.s32.totalorder %s25, 3
      %p279 = scmp.ne.s32.totalorder %s274, %s276
      %p280 = scmp.eq.s32.totalorder %s25, 0
      %p281 = por %p279, %p280
      %p282 = scmp.ne.s32.totalorder %s274, %s276
      %p283 = scmp.eq.s32.totalorder %s30, 3
      %p284 = por %p282, %p283
      %p285 = scmp.ne.s32.totalorder %s276, %s277
      %p286 = scmp.eq.s32.totalorder %s30, 0
      %p287 = por %p285, %p286
      %p288 = scmp.ne.s32.totalorder %s276, %s277
      %p289 = scmp.eq.s32.totalorder %s31, 3
      %p290 = por %p288, %p289
      %p292 = scmp.ne.s32.totalorder %s277, %s291
      %p293 = scmp.eq.s32.totalorder %s31, 0
      %p294 = por %p292, %p293
      %s296 = sadd.s32 %s295, 1
      %p299 = scmp.eq.s32.totalorder %s25, 3
      %p300 = scmp.ne.s32.totalorder %s295, %s297
      %p301 = scmp.eq.s32.totalorder %s25, 0
      %p302 = por %p300, %p301
      %p303 = scmp.ne.s32.totalorder %s295, %s297
      %p304 = scmp.eq.s32.totalorder %s30, 3
      %p305 = por %p303, %p304
      %p306 = scmp.ne.s32.totalorder %s297, %s298
      %p307 = scmp.eq.s32.totalorder %s30, 0
      %p308 = por %p306, %p307
      %p309 = scmp.ne.s32.totalorder %s297, %s298
      %p310 = scmp.eq.s32.totalorder %s31, 3
      %p311 = por %p309, %p310
      %p313 = scmp.ne.s32.totalorder %s298, %s312
      %p314 = scmp.eq.s32.totalorder %s31, 0
      %p315 = por %p313, %p314
      %s317 = sadd.s32 %s316, 1
      %p320 = scmp.eq.s32.totalorder %s25, 3
      %p321 = scmp.ne.s32.totalorder %s316, %s318
      %p322 = scmp.eq.s32.totalorder %s25, 0
      %p323 = por %p321, %p322
      %p324 = scmp.ne.s32.totalorder %s316, %s318
      %p325 = scmp.eq.s32.totalorder %s30, 3
      %p326 = por %p324, %p325
      %p327 = scmp.ne.s32.totalorder %s318, %s319
      %p328 = scmp.eq.s32.totalorder %s30, 0
      %p329 = por %p327, %p328
      %p330 = scmp.ne.s32.totalorder %s318, %s319
      %p331 = scmp.eq.s32.totalorder %s31, 3
      %p332 = por %p330, %p331
      %p334 = scmp.ne.s32.totalorder %s319, %s333
      %p335 = scmp.eq.s32.totalorder %s31, 0
      %p336 = por %p334, %p335
      %s338 = sadd.s32 %s337, 1
      %p341 = scmp.eq.s32.totalorder %s25, 3
      %p342 = scmp.ne.s32.totalorder %s337, %s339
      %p343 = scmp.eq.s32.totalorder %s25, 0
      %p344 = por %p342, %p343
      %p345 = scmp.ne.s32.totalorder %s337, %s339
      %p346 = scmp.eq.s32.totalorder %s30, 3
      %p347 = por %p345, %p346
      %p348 = scmp.ne.s32.totalorder %s339, %s340
      %p349 = scmp.eq.s32.totalorder %s30, 0
      %p350 = por %p348, %p349
      %p351 = scmp.ne.s32.totalorder %s339, %s340
      %p352 = scmp.eq.s32.totalorder %s31, 3
      %p353 = por %p351, %p352
      %p355 = scmp.ne.s32.totalorder %s340, %s354
      %p356 = scmp.eq.s32.totalorder %s31, 0
      %p357 = por %p355, %p356
      %s359 = sadd.s32 %s358, 1
      %p362 = scmp.eq.s32.totalorder %s25, 3
      %p363 = scmp.ne.s32.totalorder %s358, %s360
      %p364 = scmp.eq.s32.totalorder %s25, 0
      %p365 = por %p363, %p364
      %p366 = scmp.ne.s32.totalorder %s358, %s360
      %p367 = scmp.eq.s32.totalorder %s30, 3
      %p368 = por %p366, %p367
      %p369 = scmp.ne.s32.totalorder %s360, %s361
      %p370 = scmp.eq.s32.totalorder %s30, 0
      %p371 = por %p369, %p370
      %p372 = scmp.ne.s32.totalorder %s360, %s361
      %p373 = scmp.eq.s32.totalorder %s31, 3
      %p374 = por %p372, %p373
      %p376 = scmp.ne.s32.totalorder %s361, %s375
      %p377 = scmp.eq.s32.totalorder %s31, 0
      %p378 = por %p376, %p377
      %s379 = ssub.s32 %s25, %s32
      %p380 = scmp.eq.s32.totalorder %s379, 0
      %s382 = sadd.s32 %s381, 1
      %s383 = scalar_select %p380, %s381, %s382
      %p386 = pneg %p380
      %p387 = scmp.eq.s32.totalorder %s25, 3
      %p388 = por %p386, %p387
      %p389 = scmp.ne.s32.totalorder %s381, %s384
      %p390 = scmp.eq.s32.totalorder %s25, 0
      %p391 = por %p389, %p390
      %p392 = scmp.ne.s32.totalorder %s381, %s384
      %p393 = scmp.eq.s32.totalorder %s30, 3
      %p394 = por %p392, %p393
      %p395 = scmp.ne.s32.totalorder %s384, %s385
      %p396 = scmp.eq.s32.totalorder %s30, 0
      %p397 = por %p395, %p396
      %p398 = scmp.ne.s32.totalorder %s384, %s385
      %p399 = scmp.eq.s32.totalorder %s31, 3
      %p400 = por %p398, %p399
      %p402 = scmp.ne.s32.totalorder %s385, %s401
      %p403 = scmp.eq.s32.totalorder %s31, 0
      %p404 = por %p402, %p403
      %p405 = scmp.le.s32.totalorder 1, %s25
      %p406 = scmp.lt.s32.totalorder %s25, 5
      %p407 = pnand %p405, %p406
      %p408 = pneg %p407
      // Predicated region
      $region9: #{dds_forward.1} parent=5 // pred_check
        _
      $region10: #{dds_forward.1} parent=5 // pred_check_branch
        %410 = sbr.rel (%p407) target = $region12
      $region11: #{dds_forward.1} parent=5 // pred_region
        %s411 = ssub.s32 %s25, 1
        // Predicated region
        $region13: #{dds_forward.1} parent=11 // pred_check
          %p412 = pneg %p98
        $region14: #{dds_forward.1} parent=11 // pred_check_branch
          %414 = sbr.rel (%p412) target = $region16
        $region15: #{dds_forward.1} parent=11 // pred_region
          _
        $region16: #{dds_forward.1} parent=11 // pred_fallthru
          _
        // Predicated region
        $region17: #{dds_forward.1} parent=11 // pred_check
          %p415 = pneg %p119
        $region18: #{dds_forward.1} parent=11 // pred_check_branch
          %417 = sbr.rel (%p415) target = $region20
        $region19: #{dds_forward.1} parent=11 // pred_region
          _
        $region20: #{dds_forward.1} parent=11 // pred_fallthru
          _
        // Predicated region
        $region21: #{dds_forward.1} parent=11 // pred_check
          %p418 = pneg %p140
        $region22: #{dds_forward.1} parent=11 // pred_check_branch
          %420 = sbr.rel (%p418) target = $region24
        $region23: #{dds_forward.1} parent=11 // pred_region
          _
        $region24: #{dds_forward.1} parent=11 // pred_fallthru
          _
        // Predicated region
        $region25: #{dds_forward.1} parent=11 // pred_check
          %p421 = pneg %p161
        $region26: #{dds_forward.1} parent=11 // pred_check_branch
          %423 = sbr.rel (%p421) target = $region28
        $region27: #{dds_forward.1} parent=11 // pred_region
          _
        $region28: #{dds_forward.1} parent=11 // pred_fallthru
          _
        // Predicated region
        $region29: #{dds_forward.1} parent=11 // pred_check
          %p424 = pneg %p182
        $region30: #{dds_forward.1} parent=11 // pred_check_branch
          %426 = sbr.rel (%p424) target = $region32
        $region31: #{dds_forward.1} parent=11 // pred_region
          _
        $region32: #{dds_forward.1} parent=11 // pred_fallthru
          _
        // Predicated region
        $region33: #{dds_forward.1} parent=11 // pred_check
          %p427 = pneg %p203
        $region34: #{dds_forward.1} parent=11 // pred_check_branch
          %429 = sbr.rel (%p427) target = $region36
        $region35: #{dds_forward.1} parent=11 // pred_region
          _
        $region36: #{dds_forward.1} parent=11 // pred_fallthru
          _
        // Predicated region
        $region37: #{dds_forward.1} parent=11 // pred_check
          %p430 = pneg %p224
        $region38: #{dds_forward.1} parent=11 // pred_check_branch
          %432 = sbr.rel (%p430) target = $region40
        $region39: #{dds_forward.1} parent=11 // pred_region
          _
        $region40: #{dds_forward.1} parent=11 // pred_fallthru
          _
        // Predicated region
        $region41: #{dds_forward.1} parent=11 // pred_check
          %p433 = pneg %p245
        $region42: #{dds_forward.1} parent=11 // pred_check_branch
          %435 = sbr.rel (%p433) target = $region44
        $region43: #{dds_forward.1} parent=11 // pred_region
          _
        $region44: #{dds_forward.1} parent=11 // pred_fallthru
          _
        // Predicated region
        $region45: #{dds_forward.1} parent=11 // pred_check
          %p436 = pneg %p266
        $region46: #{dds_forward.1} parent=11 // pred_check_branch
          %438 = sbr.rel (%p436) target = $region48
        $region47: #{dds_forward.1} parent=11 // pred_region
          _
        $region48: #{dds_forward.1} parent=11 // pred_fallthru
          _
        // Predicated region
        $region49: #{dds_forward.1} parent=11 // pred_check
          %p439 = pneg %p287
        $region50: #{dds_forward.1} parent=11 // pred_check_branch
          %441 = sbr.rel (%p439) target = $region52
        $region51: #{dds_forward.1} parent=11 // pred_region
          _
        $region52: #{dds_forward.1} parent=11 // pred_fallthru
          _
        // Predicated region
        $region53: #{dds_forward.1} parent=11 // pred_check
          %p442 = pneg %p308
        $region54: #{dds_forward.1} parent=11 // pred_check_branch
          %444 = sbr.rel (%p442) target = $region56
        $region55: #{dds_forward.1} parent=11 // pred_region
          _
        $region56: #{dds_forward.1} parent=11 // pred_fallthru
          _
        // Predicated region
        $region57: #{dds_forward.1} parent=11 // pred_check
          %p445 = pneg %p329
        $region58: #{dds_forward.1} parent=11 // pred_check_branch
          %447 = sbr.rel (%p445) target = $region60
        $region59: #{dds_forward.1} parent=11 // pred_region
          _
        $region60: #{dds_forward.1} parent=11 // pred_fallthru
          _
        // Predicated region
        $region61: #{dds_forward.1} parent=11 // pred_check
          %p448 = pneg %p350
        $region62: #{dds_forward.1} parent=11 // pred_check_branch
          %450 = sbr.rel (%p448) target = $region64
        $region63: #{dds_forward.1} parent=11 // pred_region
          _
        $region64: #{dds_forward.1} parent=11 // pred_fallthru
          _
        // Predicated region
        $region65: #{dds_forward.1} parent=11 // pred_check
          %p451 = pneg %p371
        $region66: #{dds_forward.1} parent=11 // pred_check_branch
          %453 = sbr.rel (%p451) target = $region68
        $region67: #{dds_forward.1} parent=11 // pred_region
          _
        $region68: #{dds_forward.1} parent=11 // pred_fallthru
          _
      $region12: #{dds_forward.1} parent=5 // pred_fallthru
        _
      %p454 = scmp.lt.s32.totalorder %s25, 4
      // Predicated region
      $region69: #{dds_forward.1} parent=5 // pred_check
        %p455 = pneg %p454
      $region70: #{dds_forward.1} parent=5 // pred_check_branch
        %457 = sbr.rel (%p455) target = $region72
      $region71: #{dds_forward.1} parent=5 // pred_region
        // Predicated region
        $region73: #{dds_forward.1} parent=71 // pred_check
          %p458 = pneg %p45
        $region74: #{dds_forward.1} parent=71 // pred_check_branch
          %460 = sbr.rel (%p458) target = $region76
        $region75: #{dds_forward.1} parent=71 // pred_region
          %p461 = scmp.lt.s32.totalorder %s25, 3
          %s462 = scalar_select %p461, %s25, 3
          %s463 = smul.addr %s462, 8
          %s464 = smul.addr %s463, 4
          %s465 = scalar_lea.vmem %s0, %s464
        $region76: #{dds_forward.1} parent=71 // pred_fallthru
          _
        // Predicated region
        $region77: #{dds_forward.1} parent=71 // pred_check
          %p466 = pneg %p71
        $region78: #{dds_forward.1} parent=71 // pred_check_branch
          %468 = sbr.rel (%p466) target = $region80
        $region79: #{dds_forward.1} parent=71 // pred_region
          %p469 = scmp.lt.s32.totalorder %s25, 3
          %s470 = scalar_select %p469, %s25, 3
          %s471 = smul.addr %s470, 8
          %s472 = smul.addr %s471, 8
          %s473 = scalar_lea.vmem %s1, %s472
        $region80: #{dds_forward.1} parent=71 // pred_fallthru
          _
      $region72: #{dds_forward.1} parent=5 // pred_fallthru
        _
      %p474 = scmp.le.s32.totalorder 1, %s25
      %p475 = scmp.lt.s32.totalorder %s25, 5
      %p476 = pnand %p474, %p475
      %p477 = pneg %p476
      // Predicated region
      $region81: #{dds_forward.1} parent=5 // pred_check
        _
      $region82: #{dds_forward.1} parent=5 // pred_check_branch
        %479 = sbr.rel (%p476) target = $region84
      $region83: #{dds_forward.1} parent=5 // pred_region
        %s480 = ssub.s32 %s25, 1
        %p481 = scmp.lt.s32.totalorder %s30, 3
        %s482 = scalar_select %p481, %s30, 3
        %s483 = smul.addr %s482, 8
        %s484 = smul.addr %s483, 4
        %s485 = scalar_lea.vmem %s0, %s484
        %p486 = pneg %p51
        %p487 = pneg %p48
        %p488 = scmp.lt.s32.totalorder %s30, 3
        %s489 = scalar_select %p488, %s30, 3
        %s490 = smul.addr %s489, 8
        %s491 = smul.addr %s490, 8
        %s492 = scalar_lea.vmem %s1, %s491
        %p493 = pneg %p77
        %p494 = pneg %p74
        %p495 = pneg %p98
        %p496 = pneg %p95
        %p497 = pneg %p119
        %p498 = pneg %p116
        %p499 = pneg %p140
        %p500 = pneg %p137
        %p501 = pneg %p161
        %p502 = pneg %p158
        %p503 = pneg %p182
        %p504 = pneg %p179
        %p505 = pneg %p203
        %p506 = pneg %p200
        %p507 = pneg %p224
        %p508 = pneg %p221
        %p509 = pneg %p245
        %p510 = pneg %p242
        %p511 = pneg %p266
        %p512 = pneg %p263
        %p513 = pneg %p287
        %p514 = pneg %p284
        %p515 = pneg %p308
        %p516 = pneg %p305
        %p517 = pneg %p329
        %p518 = pneg %p326
        %p519 = pneg %p350
        %p520 = pneg %p347
        %p521 = pneg %p371
        %p522 = pneg %p368
        %p523 = pneg %p397
        %p524 = pneg %p394
        %s525 = sand.u32 %s384, 1
        %s526 = scalar_lea.sflag [#allocation4], %s525
        %s527 = sand.u32 %s384, 1
        %s528 = scalar_lea.vmem [#allocation3], %s527
        %p529 = scmp.lt.s32.totalorder %s30, 3
        %s530 = scalar_select %p529, %s30, 3
        %s531 = smul.addr %s530, 8
        %s532 = smul.addr %s531, 4
        %s533 = scalar_lea.vmem %s0, %s532
        %p534 = scmp.lt.s32.totalorder %s30, 3
        %s535 = scalar_select %p534, %s30, 3
        %s536 = smul.addr %s535, 8
        %s537 = smul.addr %s536, 8
        %s538 = scalar_lea.vmem %s1, %s537
        %v540 = vld [vmem:[%s538] sm:$0xff]
        %v541 = vld [vmem:[%s538 + $0x8] sm:$0xff]
        %v542 = vld [vmem:[%s538 + $0x10] sm:$0xff]
        %v543 = vld [vmem:[%s538 + $0x18] sm:$0xff]
        %v544 = vld [vmem:[%s538 + $0x20] sm:$0xff]
        %v545 = vld [vmem:[%s538 + $0x28] sm:$0xff]
        %v546 = vld [vmem:[%s538 + $0x30] sm:$0xff]
        %v547 = vld [vmem:[%s538 + $0x38] sm:$0xff]
        %v548 = vlaneseq
        %v549 = vand.u32 %v548, 127
        %v550 = vadd.s32 %v549, 128
        %vm551 = vcmp.lt.s32.totalorder %v549, 0
        %v552 = vsub.s32 0, %v549
        %v553 = vsel %vm551, %v552, %v549
        %v554 = vshrl.u32 %v553, 6
        %v555 = vand.u32 %v553, 63
        %v556 = vsub.s32 0, %v555
        %v557 = vsel %vm551, %v556, %v555
        %vm558 = vcmp.lt.s32.totalorder %v550, 0
        %v559 = vsub.s32 0, %v550
        %v560 = vsel %vm558, %v559, %v550
        %v561 = vshrl.u32 %v560, 6
        %v562 = vand.u32 %v560, 63
        %v563 = vsub.s32 0, %v562
        %v564 = vsel %vm558, %v563, %v562
        %vm565 = vcmp.ne.s32.totalorder %v557, 0
        %vm566 = vcmp.ne.s32.totalorder %v564, 0
        %vm567 = vcmp.lt.s32.totalorder %v557, 0
        %vm568 = vcmp.lt.s32.totalorder %v564, 0
        %vm569 = vmand %vm567, %vm565
        %vm570 = vmand %vm568, %vm566
        %v571 = vadd.s32 %v557, 64
        %v572 = vadd.s32 %v564, 64
        %v573 = vsel %vm569, %v571, %v557
        %v574 = vsel %vm570, %v572, %v564
        %vm575 = vcmp.lt.s32.totalorder %v573, 32
        %vm576 = vcmp.lt.s32.totalorder %v574, 32
        %vm577 = vcmp.lt.s32.totalorder %v549, 32
        %v578 = vld [vmem:[%s4] sm:$0xff]
        %v579 = vld [vmem:[%s4 + $0x8] sm:$0xff]
        %v580 = vld [vmem:[%s4 + $0x10] sm:$0xff]
        %v581 = vld [vmem:[%s4 + $0x18] sm:$0xff]
        %v582 = vld [vmem:[%s4 + $0x20] sm:$0xff]
        %v583 = vld [vmem:[%s4 + $0x28] sm:$0xff]
        %v584 = vld [vmem:[%s4 + $0x30] sm:$0xff]
        %v585 = vld [vmem:[%s4 + $0x38] sm:$0xff]
        %v586 = vld [vmem:[%s4 + $0x40] sm:$0xff]
        %v587 = vld [vmem:[%s4 + $0x48] sm:$0xff]
        %v588 = vld [vmem:[%s4 + $0x50] sm:$0xff]
        %v589 = vld [vmem:[%s4 + $0x58] sm:$0xff]
        %v590 = vld [vmem:[%s4 + $0x60] sm:$0xff]
        %v591 = vld [vmem:[%s4 + $0x68] sm:$0xff]
        %v592 = vld [vmem:[%s4 + $0x70] sm:$0xff]
        %v593 = vld [vmem:[%s4 + $0x78] sm:$0xff]
        %v594 = vld [vmem:[%s5] sm:$0x3]
        %v595 = vld [vmem:[%s3] sm:$0x3]
        %v596 = vld [vmem:[%s533] sm:$0xf]
        %v597 = vld [vmem:[%s533 + $0x4] sm:$0xf]
        %v598 = vld [vmem:[%s533 + $0x8] sm:$0xf]
        %v599 = vld [vmem:[%s533 + $0xc] sm:$0xf]
        %v600 = vld [vmem:[%s533 + $0x10] sm:$0xf]
        %v601 = vld [vmem:[%s533 + $0x14] sm:$0xf]
        %v602 = vld [vmem:[%s533 + $0x18] sm:$0xf]
        %v603 = vld [vmem:[%s533 + $0x1c] sm:$0xf]
        %v604 = vld [vmem:[%s2] sm:$0xff]
        %v605 = vld [vmem:[%s2 + $0x8] sm:$0xff]
        %v606 = vld [vmem:[%s2 + $0x10] sm:$0xff]
        %v608 = vlaneseq
        %v609 = vshrl.u32 %v608, 7
        %v610 = vsub.s32 0, %v609
        %v611 = vrot.slane %v595, %v610
        %v612 = vlaneseq
        %v613 = vshrl.u32 %v612, 7
        %v614 = vsub.s32 1, %v613
        %v615 = vrot.slane %v595, %v614
        %v626 = vunpack.c.l.b16 %v596
        %v627 = vunpack.c.l.b16 %v597
        %v628 = vunpack.c.l.b16 %v598
        %v629 = vunpack.c.l.b16 %v599
        %v630 = vunpack.c.l.b16 %v600
        %v631 = vunpack.c.l.b16 %v601
        %v632 = vunpack.c.l.b16 %v602
        %v633 = vunpack.c.l.b16 %v603
        %v634 = vpack.c.b16 %v627, %v626
        %v635 = vpack.c.b16 %v629, %v628
        %v636 = vpack.c.b16 %v631, %v630
        %v637 = vpack.c.b16 %v633, %v632
        %v641 = vunpack.c.l.b16 %v604
        %v642 = vunpack.c.h.b16 %v604
        %v643 = vunpack.c.l.b16 %v605
        %v644 = vunpack.c.h.b16 %v605
        %v645 = vunpack.c.l.b16 %v606
        %v646 = vunpack.c.h.b16 %v606
        %v647 = vpack.c.b16 %v643, %v641
        %v648 = vpack.c.b16 %v644, %v642
        %v649 = vpack.c.b16 %v645, %v645
        %v650 = vpack.c.b16 %v646, %v646
        %vm653 = vcmask 195584
        %v655 = vsel %vm653, %v634, 0
        %v658 = vsel %vm653, %v635, 0
        %v661 = vsel %vm653, %v636, 0
        %v664 = vsel %vm653, %v637, 0
        %vm666 = vcmask 1043456
        %v668 = vsel %vm666, %v649, 0
        %v671 = vsel %vm666, %v650, 0
        %673 = vmatprep.subr.bf16.mxu0 %v648
        %674 = vmatpush1.bf16.msra.mxu0 %v647
        %675 = vmatprep.subr.bf16.mxu0 %v671
        %676 = vmatpush1.bf16.msra.mxu0 %v668
        %677 = vmatprep.subr.bf16.mxu0 0
        %678 = vmatpush1.bf16.msra.mxu0 0
        %679 = vmatprep.subr.bf16.mxu0 0
        %680 = vmatpush1.bf16.msra.mxu0 0
        %681 = vmatprep.subr.bf16.mxu0 0
        %682 = vmatpush1.bf16.msra.mxu0 0
        %683 = vmatprep.subr.bf16.mxu0 0
        %684 = vmatpush1.bf16.msra.mxu0 0
        %685 = vmatprep.subr.bf16.mxu0 0
        %686 = vmatpush1.bf16.msra.mxu0 0
        %687 = vmatprep.subr.bf16.mxu0 0
        %688 = vmatpush1.bf16.msra.mxu0 0
        %689 = vmatprep.subr.bf16.mxu0 0
        %690 = vmatpush1.bf16.msra.mxu0 0
        %691 = vmatprep.subr.bf16.mxu0 0
        %692 = vmatpush1.bf16.msra.mxu0 0
        %693 = vmatprep.subr.bf16.mxu0 0
        %694 = vmatpush1.bf16.msra.mxu0 0
        %695 = vmatprep.subr.bf16.mxu0 0
        %696 = vmatpush1.bf16.msra.mxu0 0
        %697 = vmatprep.subr.bf16.mxu0 0
        %698 = vmatpush1.bf16.msra.mxu0 0
        %699 = vmatprep.subr.bf16.mxu0 0
        %700 = vmatpush1.bf16.msra.mxu0 0
        %701 = vmatprep.subr.bf16.mxu0 0
        %702 = vmatpush1.bf16.msra.mxu0 0
        %703 = vmatprep.subr.bf16.mxu0 0
        %704 = vmatpush1.bf16.msra.mxu0 0
        %705 = vmatprep.mubr.bf16.mxu0 0
        %706 = vmatmul.mubr.bf16.gmra.mrb[0].mxu0 %v655
        %v707 = vpop.f32.mrb[0].mxu0
        %v708 = vadd.f32 %v611, %v707
        %v709 = vpop.f32.mrb[0].mxu0
        %v710 = vadd.f32 %v615, %v709
        %v711 = vpop.f32.mrb[0].mxu0
        %v712 = vadd.f32 %v611, %v711
        %v713 = vpop.f32.mrb[0].mxu0
        %v714 = vadd.f32 %v615, %v713
        %715 = vmatprep.mubr.bf16.mxu0 0
        %716 = vmatmul.mubr.bf16.gmra.mrb[0].mxu0 %v658
        %v717 = vpop.f32.mrb[0].mxu0
        %v718 = vadd.f32 %v611, %v717
        %v719 = vpop.f32.mrb[0].mxu0
        %v720 = vadd.f32 %v615, %v719
        %v721 = vpop.f32.mrb[0].mxu0
        %v722 = vadd.f32 %v611, %v721
        %v723 = vpop.f32.mrb[0].mxu0
        %v724 = vadd.f32 %v615, %v723
        %725 = vmatprep.mubr.bf16.mxu0 0
        %726 = vmatmul.mubr.bf16.gmra.mrb[0].mxu0 %v661
        %v727 = vpop.f32.mrb[0].mxu0
        %v728 = vadd.f32 %v611, %v727
        %v729 = vpop.f32.mrb[0].mxu0
        %v730 = vadd.f32 %v615, %v729
        %v731 = vpop.f32.mrb[0].mxu0
        %v732 = vadd.f32 %v611, %v731
        %v733 = vpop.f32.mrb[0].mxu0
        %v734 = vadd.f32 %v615, %v733
        %735 = vmatprep.mubr.bf16.mxu0 0
        %736 = vmatmul.mubr.bf16.gmra.mrb[0].mxu0 %v664
        %v737 = vpop.f32.mrb[0].mxu0
        %v738 = vadd.f32 %v611, %v737
        %v739 = vpop.f32.mrb[0].mxu0
        %v740 = vadd.f32 %v615, %v739
        %v741 = vpop.f32.mrb[0].mxu0
        %v742 = vadd.f32 %v611, %v741
        %v743 = vpop.f32.mrb[0].mxu0
        %v744 = vadd.f32 %v615, %v743
        %745 = vdwg.mxu0
        %v746 = vsel %vm575, 1, 0
        %v747 = vsel %vm576, 1, 0
        %vm748 = vcmp.eq.s32.totalorder %v746, 1
        %vm749 = vcmp.eq.s32.totalorder %v747, 1
        %v750 = vsel %vm748, %v708, %v742
        %v751 = vsel %vm749, %v710, %v744
        %v753 = vlaneseq
        %v754 = vshrl.u32 %v753, 7
        %v755 = vsub.s32 0, %v754
        %v756 = vrot.slane %v594, %v755
        %v757 = vlaneseq
        %v758 = vshrl.u32 %v757, 7
        %v759 = vsub.s32 1, %v758
        %v760 = vrot.slane %v594, %v759
        %vm763 = vcmask 523264
        %v765 = vsel %vm763, 0.0, 0
        %767 = vmatprep.subr.mxu0 %v579
        %768 = vmatpush1.msra.mxu0 %v578
        %769 = vmatprep.subr.mxu0 %v581
        %770 = vmatpush1.msra.mxu0 %v580
        %771 = vmatprep.subr.mxu0 %v583
        %772 = vmatpush1.msra.mxu0 %v582
        %773 = vmatprep.subr.mxu0 %v585
        %774 = vmatpush1.msra.mxu0 %v584
        %775 = vmatprep.subr.mxu0 %v587
        %776 = vmatpush1.msra.mxu0 %v586
        %777 = vmatprep.subr.mxu0 %v589
        %778 = vmatpush1.msra.mxu0 %v588
        %779 = vmatprep.subr.mxu0 %v591
        %780 = vmatpush1.msra.mxu0 %v590
        %781 = vmatprep.subr.mxu0 %v593
        %782 = vmatpush1.msra.mxu0 %v592
        %783 = vmatprep.subr.mxu0 0.0
        %784 = vmatpush1.msra.mxu0 0.0
        %785 = vmatprep.subr.mxu0 0.0
        %786 = vmatpush1.msra.mxu0 0.0
        %787 = vmatprep.subr.mxu0 0.0
        %788 = vmatpush1.msra.mxu0 0.0
        %789 = vmatprep.subr.mxu0 0.0
        %790 = vmatpush1.msra.mxu0 0.0
        %791 = vmatprep.subr.mxu0 0.0
        %792 = vmatpush1.msra.mxu0 0.0
        %793 = vmatprep.subr.mxu0 0.0
        %794 = vmatpush1.msra.mxu0 0.0
        %795 = vmatprep.subr.mxu0 0.0
        %796 = vmatpush1.msra.mxu0 0.0
        %797 = vmatprep.subr.mxu0 0.0
        %798 = vmatpush1.msra.mxu0 0.0
        %799 = vmatprep.subr.mxu0 0.0
        %800 = vmatpush1.msra.mxu0 0.0
        %801 = vmatprep.subr.mxu0 0.0
        %802 = vmatpush1.msra.mxu0 0.0
        %803 = vmatprep.subr.mxu0 0.0
        %804 = vmatpush1.msra.mxu0 0.0
        %805 = vmatprep.subr.mxu0 0.0
        %806 = vmatpush1.msra.mxu0 0.0
        %807 = vmatprep.subr.mxu0 0.0
        %808 = vmatpush1.msra.mxu0 0.0
        %809 = vmatprep.subr.mxu0 0.0
        %810 = vmatpush1.msra.mxu0 0.0
        %811 = vmatprep.subr.mxu0 0.0
        %812 = vmatpush1.msra.mxu0 0.0
        %813 = vmatprep.subr.mxu0 0.0
        %814 = vmatpush1.msra.mxu0 0.0
        %815 = vmatprep.subr.mxu0 0.0
        %816 = vmatpush1.msra.mxu0 0.0
        %817 = vmatprep.subr.mxu0 0.0
        %818 = vmatpush1.msra.mxu0 0.0
        %819 = vmatprep.subr.mxu0 0.0
        %820 = vmatpush1.msra.mxu0 0.0
        %821 = vmatprep.subr.mxu0 0.0
        %822 = vmatpush1.msra.mxu0 0.0
        %823 = vmatprep.subr.mxu0 0.0
        %824 = vmatpush1.msra.mxu0 0.0
        %825 = vmatprep.subr.mxu0 0.0
        %826 = vmatpush1.msra.mxu0 0.0
        %827 = vmatprep.subr.mxu0 0.0
        %828 = vmatpush1.msra.mxu0 0.0
        %829 = vmatprep.subr.mxu0 0.0
        %830 = vmatpush1.msra.mxu0 0.0
        %831 = vmatprep.mubr.f32.mxu0 0.0
        %832 = vmatmul.mubr.f32.gmra.mrb[0].mxu0 %v765
        %v833 = vpop.f32.mrb[0].mxu0
        %v834 = vadd.f32 %v756, %v833
        %v835 = vpop.f32.mrb[0].mxu0
        %v836 = vadd.f32 %v760, %v835
        %837 = vdwg.mxu0
        %v838 = vadd.f32 %v750, %v834
        %v839 = vxor.u32 %v838, 2147483648
        %v840 = vmul.f32 %v839, 1.442695
        %v841 = vpow.pop %v840
        %v842 = vadd.f32 %v841, 1.0
        %v843 = vrcp.pop %v842
        %v844 = vmul.f32 1.0, %v843
        %v845 = vmul.f32 %v844, %v836
        %v846 = vadd.f32 %v751, %v845
        %v847 = vtanh.pop %v846
        %v848 = vsub.f32 1.0, %v844
        %850 = vrot.lane.b32.xlu0 %v847, 64
        %v851 = vpop.permute.xlu0 %850
        %v853 = vmul.f32 %v848, %v851
        %v854 = vmul.f32 %v844, 0.0
        %v855 = vadd.f32 %v853, %v854
        %v856 = vsel %vm577, 1, 0
        %vm857 = vcmp.eq.s32.totalorder %v856, 1
        %859 = vset.pattern.permute.xlu0 0
        %860 = vperm.xlu0 %859, %v540
        %v861 = vpop.permute.xlu0 %860
        %864 = vset.pattern.permute.xlu0 0
        %865 = vperm.xlu0 %864, %v547
        %v866 = vpop.permute.xlu0 %865
        %v868 = vsel %vm857, %v861, %v866
        %vm869 = vcmp.gt.f32.partialorder %v868, 0.0
        %871 = vrot.lane.b32.xlu0 %v855, 64
        %v872 = vpop.permute.xlu0 %871
        %v874 = vsel %vm869, %v872, 0.0
        %v875 = vmul.f32 %v874, %v861
        %vm876 = vcmask 261120
        %877 = vst.msk [vmem:[#allocation2] sm:$0xff] %vm876, %v875
        %v878 = vmul.f32 %v874, %v866
        %vm879 = vcmask 523520
        %880 = vst.msk [vmem:[#allocation2 + $0x38] sm:$0xff] %vm879, %v878
        %v881 = vsel %vm748, %v712, %v738
        %v882 = vsel %vm749, %v714, %v740
        %v884 = vsel %vm763, %v874, 0
        %886 = vmatprep.subr.mxu0 %v579
        %887 = vmatpush1.msra.mxu0 %v578
        %888 = vmatprep.subr.mxu0 %v581
        %889 = vmatpush1.msra.mxu0 %v580
        %890 = vmatprep.subr.mxu0 %v583
        %891 = vmatpush1.msra.mxu0 %v582
        %892 = vmatprep.subr.mxu0 %v585
        %893 = vmatpush1.msra.mxu0 %v584
        %894 = vmatprep.subr.mxu0 %v587
        %895 = vmatpush1.msra.mxu0 %v586
        %896 = vmatprep.subr.mxu0 %v589
        %897 = vmatpush1.msra.mxu0 %v588
        %898 = vmatprep.subr.mxu0 %v591
        %899 = vmatpush1.msra.mxu0 %v590
        %900 = vmatprep.subr.mxu0 %v593
        %901 = vmatpush1.msra.mxu0 %v592
        %902 = vmatprep.subr.mxu0 0.0
        %903 = vmatpush1.msra.mxu0 0.0
        %904 = vmatprep.subr.mxu0 0.0
        %905 = vmatpush1.msra.mxu0 0.0
        %906 = vmatprep.subr.mxu0 0.0
        %907 = vmatpush1.msra.mxu0 0.0
        %908 = vmatprep.subr.mxu0 0.0
        %909 = vmatpush1.msra.mxu0 0.0
        %910 = vmatprep.subr.mxu0 0.0
        %911 = vmatpush1.msra.mxu0 0.0
        %912 = vmatprep.subr.mxu0 0.0
        %913 = vmatpush1.msra.mxu0 0.0
        %914 = vmatprep.subr.mxu0 0.0
        %915 = vmatpush1.msra.mxu0 0.0
        %916 = vmatprep.subr.mxu0 0.0
        %917 = vmatpush1.msra.mxu0 0.0
        %918 = vmatprep.subr.mxu0 0.0
        %919 = vmatpush1.msra.mxu0 0.0
        %920 = vmatprep.subr.mxu0 0.0
        %921 = vmatpush1.msra.mxu0 0.0
        %922 = vmatprep.subr.mxu0 0.0
        %923 = vmatpush1.msra.mxu0 0.0
        %924 = vmatprep.subr.mxu0 0.0
        %925 = vmatpush1.msra.mxu0 0.0
        %926 = vmatprep.subr.mxu0 0.0
        %927 = vmatpush1.msra.mxu0 0.0
        %928 = vmatprep.subr.mxu0 0.0
        %929 = vmatpush1.msra.mxu0 0.0
        %930 = vmatprep.subr.mxu0 0.0
        %931 = vmatpush1.msra.mxu0 0.0
        %932 = vmatprep.subr.mxu0 0.0
        %933 = vmatpush1.msra.mxu0 0.0
        %934 = vmatprep.subr.mxu0 0.0
        %935 = vmatpush1.msra.mxu0 0.0
        %936 = vmatprep.subr.mxu0 0.0
        %937 = vmatpush1.msra.mxu0 0.0
        %938 = vmatprep.subr.mxu0 0.0
        %939 = vmatpush1.msra.mxu0 0.0
        %940 = vmatprep.subr.mxu0 0.0
        %941 = vmatpush1.msra.mxu0 0.0
        %942 = vmatprep.subr.mxu0 0.0
        %943 = vmatpush1.msra.mxu0 0.0
        %944 = vmatprep.subr.mxu0 0.0
        %945 = vmatpush1.msra.mxu0 0.0
        %946 = vmatprep.subr.mxu0 0.0
        %947 = vmatpush1.msra.mxu0 0.0
        %948 = vmatprep.subr.mxu0 0.0
        %949 = vmatpush1.msra.mxu0 0.0
        %950 = vmatprep.mubr.f32.mxu0 0.0
        %951 = vmatmul.mubr.f32.gmra.mrb[0].mxu0 %v884
        %v952 = vpop.f32.mrb[0].mxu0
        %v953 = vadd.f32 %v756, %v952
        %v954 = vpop.f32.mrb[0].mxu0
        %v955 = vadd.f32 %v760, %v954
        %956 = vdwg.mxu0
        %v957 = vadd.f32 %v881, %v953
        %v958 = vxor.u32 %v957, 2147483648
        %v959 = vmul.f32 %v958, 1.442695
        %v960 = vpow.pop %v959
        %v961 = vadd.f32 %v960, 1.0
        %v962 = vrcp.pop %v961
        %v963 = vmul.f32 1.0, %v962
        %v964 = vmul.f32 %v963, %v955
        %v965 = vadd.f32 %v882, %v964
        %v966 = vtanh.pop %v965
        %v967 = vsub.f32 1.0, %v963
        %969 = vrot.lane.b32.xlu0 %v966, 64
        %v970 = vpop.permute.xlu0 %969
        %v972 = vmul.f32 %v967, %v970
        %973 = vrot.lane.b32.xlu0 %v874, 64
        %v974 = vpop.permute.xlu0 %973
        %v976 = vmul.f32 %v963, %v974
        %v977 = vadd.f32 %v972, %v976
        %979 = vset.pattern.permute.xlu0 0
        %980 = vperm.xlu0 %979, %v541
        %v981 = vpop.permute.xlu0 %980
        %984 = vset.pattern.permute.xlu0 0
        %985 = vperm.xlu0 %984, %v546
        %v986 = vpop.permute.xlu0 %985
        %v988 = vsel %vm857, %v981, %v986
        %vm989 = vcmp.gt.f32.partialorder %v988, 0.0
        %991 = vrot.lane.b32.xlu0 %v977, 64
        %v992 = vpop.permute.xlu0 %991
        %v994 = vsel %vm989, %v992, %v874
        %v995 = vmul.f32 %v994, %v981
        %996 = vst.msk [vmem:[#allocation2 + $0x8] sm:$0xff] %vm876, %v995
        %v997 = vmul.f32 %v994, %v986
        %998 = vst.msk [vmem:[#allocation2 + $0x30] sm:$0xff] %vm879, %v997
        %v999 = vsel %vm748, %v718, %v732
        %v1000 = vsel %vm749, %v720, %v734
        %v1002 = vsel %vm763, %v994, 0
        %1004 = vmatprep.subr.mxu0 %v579
        %1005 = vmatpush1.msra.mxu0 %v578
        %1006 = vmatprep.subr.mxu0 %v581
        %1007 = vmatpush1.msra.mxu0 %v580
        %1008 = vmatprep.subr.mxu0 %v583
        %1009 = vmatpush1.msra.mxu0 %v582
        %1010 = vmatprep.subr.mxu0 %v585
        %1011 = vmatpush1.msra.mxu0 %v584
        %1012 = vmatprep.subr.mxu0 %v587
        %1013 = vmatpush1.msra.mxu0 %v586
        %1014 = vmatprep.subr.mxu0 %v589
        %1015 = vmatpush1.msra.mxu0 %v588
        %1016 = vmatprep.subr.mxu0 %v591
        %1017 = vmatpush1.msra.mxu0 %v590
        %1018 = vmatprep.subr.mxu0 %v593
        %1019 = vmatpush1.msra.mxu0 %v592
        %1020 = vmatprep.subr.mxu0 0.0
        %1021 = vmatpush1.msra.mxu0 0.0
        %1022 = vmatprep.subr.mxu0 0.0
        %1023 = vmatpush1.msra.mxu0 0.0
        %1024 = vmatprep.subr.mxu0 0.0
        %1025 = vmatpush1.msra.mxu0 0.0
        %1026 = vmatprep.subr.mxu0 0.0
        %1027 = vmatpush1.msra.mxu0 0.0
        %1028 = vmatprep.subr.mxu0 0.0
        %1029 = vmatpush1.msra.mxu0 0.0
        %1030 = vmatprep.subr.mxu0 0.0
        %1031 = vmatpush1.msra.mxu0 0.0
        %1032 = vmatprep.subr.mxu0 0.0
        %1033 = vmatpush1.msra.mxu0 0.0
        %1034 = vmatprep.subr.mxu0 0.0
        %1035 = vmatpush1.msra.mxu0 0.0
        %1036 = vmatprep.subr.mxu0 0.0
        %1037 = vmatpush1.msra.mxu0 0.0
        %1038 = vmatprep.subr.mxu0 0.0
        %1039 = vmatpush1.msra.mxu0 0.0
        %1040 = vmatprep.subr.mxu0 0.0
        %1041 = vmatpush1.msra.mxu0 0.0
        %1042 = vmatprep.subr.mxu0 0.0
        %1043 = vmatpush1.msra.mxu0 0.0
        %1044 = vmatprep.subr.mxu0 0.0
        %1045 = vmatpush1.msra.mxu0 0.0
        %1046 = vmatprep.subr.mxu0 0.0
        %1047 = vmatpush1.msra.mxu0 0.0
        %1048 = vmatprep.subr.mxu0 0.0
        %1049 = vmatpush1.msra.mxu0 0.0
        %1050 = vmatprep.subr.mxu0 0.0
        %1051 = vmatpush1.msra.mxu0 0.0
        %1052 = vmatprep.subr.mxu0 0.0
        %1053 = vmatpush1.msra.mxu0 0.0
        %1054 = vmatprep.subr.mxu0 0.0
        %1055 = vmatpush1.msra.mxu0 0.0
        %1056 = vmatprep.subr.mxu0 0.0
        %1057 = vmatpush1.msra.mxu0 0.0
        %1058 = vmatprep.subr.mxu0 0.0
        %1059 = vmatpush1.msra.mxu0 0.0
        %1060 = vmatprep.subr.mxu0 0.0
        %1061 = vmatpush1.msra.mxu0 0.0
        %1062 = vmatprep.subr.mxu0 0.0
        %1063 = vmatpush1.msra.mxu0 0.0
        %1064 = vmatprep.subr.mxu0 0.0
        %1065 = vmatpush1.msra.mxu0 0.0
        %1066 = vmatprep.subr.mxu0 0.0
        %1067 = vmatpush1.msra.mxu0 0.0
        %1068 = vmatprep.mubr.f32.mxu0 0.0
        %1069 = vmatmul.mubr.f32.gmra.mrb[0].mxu0 %v1002
        %v1070 = vpop.f32.mrb[0].mxu0
        %v1071 = vadd.f32 %v756, %v1070
        %v1072 = vpop.f32.mrb[0].mxu0
        %v1073 = vadd.f32 %v760, %v1072
        %1074 = vdwg.mxu0
        %v1075 = vadd.f32 %v999, %v1071
        %v1076 = vxor.u32 %v1075, 2147483648
        %v1077 = vmul.f32 %v1076, 1.442695
        %v1078 = vpow.pop %v1077
        %v1079 = vadd.f32 %v1078, 1.0
        %v1080 = vrcp.pop %v1079
        %v1081 = vmul.f32 1.0, %v1080
        %v1082 = vmul.f32 %v1081, %v1073
        %v1083 = vadd.f32 %v1000, %v1082
        %v1084 = vtanh.pop %v1083
        %v1085 = vsub.f32 1.0, %v1081
        %1087 = vrot.lane.b32.xlu0 %v1084, 64
        %v1088 = vpop.permute.xlu0 %1087
        %v1090 = vmul.f32 %v1085, %v1088
        %1091 = vrot.lane.b32.xlu0 %v994, 64
        %v1092 = vpop.permute.xlu0 %1091
        %v1094 = vmul.f32 %v1081, %v1092
        %v1095 = vadd.f32 %v1090, %v1094
        %1097 = vset.pattern.permute.xlu0 0
        %1098 = vperm.xlu0 %1097, %v542
        %v1099 = vpop.permute.xlu0 %1098
        %1102 = vset.pattern.permute.xlu0 0
        %1103 = vperm.xlu0 %1102, %v545
        %v1104 = vpop.permute.xlu0 %1103
        %v1106 = vsel %vm857, %v1099, %v1104
        %vm1107 = vcmp.gt.f32.partialorder %v1106, 0.0
        %1109 = vrot.lane.b32.xlu0 %v1095, 64
        %v1110 = vpop.permute.xlu0 %1109
        %v1112 = vsel %vm1107, %v1110, %v994
        %v1113 = vmul.f32 %v1112, %v1099
        %1114 = vst.msk [vmem:[#allocation2 + $0x10] sm:$0xff] %vm876, %v1113
        %v1115 = vmul.f32 %v1112, %v1104
        %1116 = vst.msk [vmem:[#allocation2 + $0x28] sm:$0xff] %vm879, %v1115
        %v1117 = vsel %vm748, %v722, %v728
        %v1118 = vsel %vm749, %v724, %v730
        %v1120 = vsel %vm763, %v1112, 0
        %1122 = vmatprep.subr.mxu0 %v579
        %1123 = vmatpush1.msra.mxu0 %v578
        %1124 = vmatprep.subr.mxu0 %v581
        %1125 = vmatpush1.msra.mxu0 %v580
        %1126 = vmatprep.subr.mxu0 %v583
        %1127 = vmatpush1.msra.mxu0 %v582
        %1128 = vmatprep.subr.mxu0 %v585
        %1129 = vmatpush1.msra.mxu0 %v584
        %1130 = vmatprep.subr.mxu0 %v587
        %1131 = vmatpush1.msra.mxu0 %v586
        %1132 = vmatprep.subr.mxu0 %v589
        %1133 = vmatpush1.msra.mxu0 %v588
        %1134 = vmatprep.subr.mxu0 %v591
        %1135 = vmatpush1.msra.mxu0 %v590
        %1136 = vmatprep.subr.mxu0 %v593
        %1137 = vmatpush1.msra.mxu0 %v592
        %1138 = vmatprep.subr.mxu0 0.0
        %1139 = vmatpush1.msra.mxu0 0.0
        %1140 = vmatprep.subr.mxu0 0.0
        %1141 = vmatpush1.msra.mxu0 0.0
        %1142 = vmatprep.subr.mxu0 0.0
        %1143 = vmatpush1.msra.mxu0 0.0
        %1144 = vmatprep.subr.mxu0 0.0
        %1145 = vmatpush1.msra.mxu0 0.0
        %1146 = vmatprep.subr.mxu0 0.0
        %1147 = vmatpush1.msra.mxu0 0.0
        %1148 = vmatprep.subr.mxu0 0.0
        %1149 = vmatpush1.msra.mxu0 0.0
        %1150 = vmatprep.subr.mxu0 0.0
        %1151 = vmatpush1.msra.mxu0 0.0
        %1152 = vmatprep.subr.mxu0 0.0
        %1153 = vmatpush1.msra.mxu0 0.0
        %1154 = vmatprep.subr.mxu0 0.0
        %1155 = vmatpush1.msra.mxu0 0.0
        %1156 = vmatprep.subr.mxu0 0.0
        %1157 = vmatpush1.msra.mxu0 0.0
        %1158 = vmatprep.subr.mxu0 0.0
        %1159 = vmatpush1.msra.mxu0 0.0
        %1160 = vmatprep.subr.mxu0 0.0
        %1161 = vmatpush1.msra.mxu0 0.0
        %1162 = vmatprep.subr.mxu0 0.0
        %1163 = vmatpush1.msra.mxu0 0.0
        %1164 = vmatprep.subr.mxu0 0.0
        %1165 = vmatpush1.msra.mxu0 0.0
        %1166 = vmatprep.subr.mxu0 0.0
        %1167 = vmatpush1.msra.mxu0 0.0
        %1168 = vmatprep.subr.mxu0 0.0
        %1169 = vmatpush1.msra.mxu0 0.0
        %1170 = vmatprep.subr.mxu0 0.0
        %1171 = vmatpush1.msra.mxu0 0.0
        %1172 = vmatprep.subr.mxu0 0.0
        %1173 = vmatpush1.msra.mxu0 0.0
        %1174 = vmatprep.subr.mxu0 0.0
        %1175 = vmatpush1.msra.mxu0 0.0
        %1176 = vmatprep.subr.mxu0 0.0
        %1177 = vmatpush1.msra.mxu0 0.0
        %1178 = vmatprep.subr.mxu0 0.0
        %1179 = vmatpush1.msra.mxu0 0.0
        %1180 = vmatprep.subr.mxu0 0.0
        %1181 = vmatpush1.msra.mxu0 0.0
        %1182 = vmatprep.subr.mxu0 0.0
        %1183 = vmatpush1.msra.mxu0 0.0
        %1184 = vmatprep.subr.mxu0 0.0
        %1185 = vmatpush1.msra.mxu0 0.0
        %1186 = vmatprep.mubr.f32.mxu0 0.0
        %1187 = vmatmul.mubr.f32.gmra.mrb[0].mxu0 %v1120
        %v1188 = vpop.f32.mrb[0].mxu0
        %v1189 = vadd.f32 %v756, %v1188
        %v1190 = vpop.f32.mrb[0].mxu0
        %v1191 = vadd.f32 %v760, %v1190
        %1192 = vdwg.mxu0
        %v1193 = vadd.f32 %v1117, %v1189
        %v1194 = vxor.u32 %v1193, 2147483648
        %v1195 = vmul.f32 %v1194, 1.442695
        %v1196 = vpow.pop %v1195
        %v1197 = vadd.f32 %v1196, 1.0
        %v1198 = vrcp.pop %v1197
        %v1199 = vmul.f32 1.0, %v1198
        %v1200 = vmul.f32 %v1199, %v1191
        %v1201 = vadd.f32 %v1118, %v1200
        %v1202 = vtanh.pop %v1201
        %v1203 = vsub.f32 1.0, %v1199
        %1205 = vrot.lane.b32.xlu0 %v1202, 64
        %v1206 = vpop.permute.xlu0 %1205
        %v1208 = vmul.f32 %v1203, %v1206
        %1209 = vrot.lane.b32.xlu0 %v1112, 64
        %v1210 = vpop.permute.xlu0 %1209
        %v1212 = vmul.f32 %v1199, %v1210
        %v1213 = vadd.f32 %v1208, %v1212
        %1215 = vset.pattern.permute.xlu0 0
        %1216 = vperm.xlu0 %1215, %v543
        %v1217 = vpop.permute.xlu0 %1216
        %1220 = vset.pattern.permute.xlu0 0
        %1221 = vperm.xlu0 %1220, %v544
        %v1222 = vpop.permute.xlu0 %1221
        %v1224 = vsel %vm857, %v1217, %v1222
        %vm1225 = vcmp.gt.f32.partialorder %v1224, 0.0
        %1227 = vrot.lane.b32.xlu0 %v1213, 64
        %v1228 = vpop.permute.xlu0 %1227
        %v1230 = vsel %vm1225, %v1228, %v1112
        %v1231 = vmul.f32 %v1230, %v1217
        %1232 = vst.msk [vmem:[#allocation2 + $0x18] sm:$0xff] %vm876, %v1231
        %v1233 = vmul.f32 %v1230, %v1222
        %1234 = vst.msk [vmem:[#allocation2 + $0x20] sm:$0xff] %vm879, %v1233
        %v1235 = vsel %vm748, %v728, %v722
        %v1236 = vsel %vm749, %v730, %v724
        %v1238 = vsel %vm763, %v1230, 0
        %1240 = vmatprep.subr.mxu0 %v579
        %1241 = vmatpush1.msra.mxu0 %v578
        %1242 = vmatprep.subr.mxu0 %v581
        %1243 = vmatpush1.msra.mxu0 %v580
        %1244 = vmatprep.subr.mxu0 %v583
        %1245 = vmatpush1.msra.mxu0 %v582
        %1246 = vmatprep.subr.mxu0 %v585
        %1247 = vmatpush1.msra.mxu0 %v584
        %1248 = vmatprep.subr.mxu0 %v587
        %1249 = vmatpush1.msra.mxu0 %v586
        %1250 = vmatprep.subr.mxu0 %v589
        %1251 = vmatpush1.msra.mxu0 %v588
        %1252 = vmatprep.subr.mxu0 %v591
        %1253 = vmatpush1.msra.mxu0 %v590
        %1254 = vmatprep.subr.mxu0 %v593
        %1255 = vmatpush1.msra.mxu0 %v592
        %1256 = vmatprep.subr.mxu0 0.0
        %1257 = vmatpush1.msra.mxu0 0.0
        %1258 = vmatprep.subr.mxu0 0.0
        %1259 = vmatpush1.msra.mxu0 0.0
        %1260 = vmatprep.subr.mxu0 0.0
        %1261 = vmatpush1.msra.mxu0 0.0
        %1262 = vmatprep.subr.mxu0 0.0
        %1263 = vmatpush1.msra.mxu0 0.0
        %1264 = vmatprep.subr.mxu0 0.0
        %1265 = vmatpush1.msra.mxu0 0.0
        %1266 = vmatprep.subr.mxu0 0.0
        %1267 = vmatpush1.msra.mxu0 0.0
        %1268 = vmatprep.subr.mxu0 0.0
        %1269 = vmatpush1.msra.mxu0 0.0
        %1270 = vmatprep.subr.mxu0 0.0
        %1271 = vmatpush1.msra.mxu0 0.0
        %1272 = vmatprep.subr.mxu0 0.0
        %1273 = vmatpush1.msra.mxu0 0.0
        %1274 = vmatprep.subr.mxu0 0.0
        %1275 = vmatpush1.msra.mxu0 0.0
        %1276 = vmatprep.subr.mxu0 0.0
        %1277 = vmatpush1.msra.mxu0 0.0
        %1278 = vmatprep.subr.mxu0 0.0
        %1279 = vmatpush1.msra.mxu0 0.0
        %1280 = vmatprep.subr.mxu0 0.0
        %1281 = vmatpush1.msra.mxu0 0.0
        %1282 = vmatprep.subr.mxu0 0.0
        %1283 = vmatpush1.msra.mxu0 0.0
        %1284 = vmatprep.subr.mxu0 0.0
        %1285 = vmatpush1.msra.mxu0 0.0
        %1286 = vmatprep.subr.mxu0 0.0
        %1287 = vmatpush1.msra.mxu0 0.0
        %1288 = vmatprep.subr.mxu0 0.0
        %1289 = vmatpush1.msra.mxu0 0.0
        %1290 = vmatprep.subr.mxu0 0.0
        %1291 = vmatpush1.msra.mxu0 0.0
        %1292 = vmatprep.subr.mxu0 0.0
        %1293 = vmatpush1.msra.mxu0 0.0
        %1294 = vmatprep.subr.mxu0 0.0
        %1295 = vmatpush1.msra.mxu0 0.0
        %1296 = vmatprep.subr.mxu0 0.0
        %1297 = vmatpush1.msra.mxu0 0.0
        %1298 = vmatprep.subr.mxu0 0.0
        %1299 = vmatpush1.msra.mxu0 0.0
        %1300 = vmatprep.subr.mxu0 0.0
        %1301 = vmatpush1.msra.mxu0 0.0
        %1302 = vmatprep.subr.mxu0 0.0
        %1303 = vmatpush1.msra.mxu0 0.0
        %1304 = vmatprep.mubr.f32.mxu0 0.0
        %1305 = vmatmul.mubr.f32.gmra.mrb[0].mxu0 %v1238
        %v1306 = vpop.f32.mrb[0].mxu0
        %v1307 = vadd.f32 %v756, %v1306
        %v1308 = vpop.f32.mrb[0].mxu0
        %v1309 = vadd.f32 %v760, %v1308
        %1310 = vdwg.mxu0
        %v1311 = vadd.f32 %v1235, %v1307
        %v1312 = vxor.u32 %v1311, 2147483648
        %v1313 = vmul.f32 %v1312, 1.442695
        %v1314 = vpow.pop %v1313
        %v1315 = vadd.f32 %v1314, 1.0
        %v1316 = vrcp.pop %v1315
        %v1317 = vmul.f32 1.0, %v1316
        %v1318 = vmul.f32 %v1317, %v1309
        %v1319 = vadd.f32 %v1236, %v1318
        %v1320 = vtanh.pop %v1319
        %v1321 = vsub.f32 1.0, %v1317
        %1323 = vrot.lane.b32.xlu0 %v1320, 64
        %v1324 = vpop.permute.xlu0 %1323
        %v1326 = vmul.f32 %v1321, %v1324
        %1327 = vrot.lane.b32.xlu0 %v1230, 64
        %v1328 = vpop.permute.xlu0 %1327
        %v1330 = vmul.f32 %v1317, %v1328
        %v1331 = vadd.f32 %v1326, %v1330
        %v1332 = vsel %vm857, %v1222, %v1217
        %vm1333 = vcmp.gt.f32.partialorder %v1332, 0.0
        %1335 = vrot.lane.b32.xlu0 %v1331, 64
        %v1336 = vpop.permute.xlu0 %1335
        %v1338 = vsel %vm1333, %v1336, %v1230
        %v1339 = vmul.f32 %v1338, %v1222
        %1340 = vst.msk [vmem:[#allocation2 + $0x20] sm:$0xff] %vm876, %v1339
        %v1341 = vmul.f32 %v1338, %v1217
        %1342 = vst.msk [vmem:[#allocation2 + $0x18] sm:$0xff] %vm879, %v1341
        %v1343 = vsel %vm748, %v732, %v718
        %v1344 = vsel %vm749, %v734, %v720
        %v1346 = vsel %vm763, %v1338, 0
        %1348 = vmatprep.subr.mxu0 %v579
        %1349 = vmatpush1.msra.mxu0 %v578
        %1350 = vmatprep.subr.mxu0 %v581
        %1351 = vmatpush1.msra.mxu0 %v580
        %1352 = vmatprep.subr.mxu0 %v583
        %1353 = vmatpush1.msra.mxu0 %v582
        %1354 = vmatprep.subr.mxu0 %v585
        %1355 = vmatpush1.msra.mxu0 %v584
        %1356 = vmatprep.subr.mxu0 %v587
        %1357 = vmatpush1.msra.mxu0 %v586
        %1358 = vmatprep.subr.mxu0 %v589
        %1359 = vmatpush1.msra.mxu0 %v588
        %1360 = vmatprep.subr.mxu0 %v591
        %1361 = vmatpush1.msra.mxu0 %v590
        %1362 = vmatprep.subr.mxu0 %v593
        %1363 = vmatpush1.msra.mxu0 %v592
        %1364 = vmatprep.subr.mxu0 0.0
        %1365 = vmatpush1.msra.mxu0 0.0
        %1366 = vmatprep.subr.mxu0 0.0
        %1367 = vmatpush1.msra.mxu0 0.0
        %1368 = vmatprep.subr.mxu0 0.0
        %1369 = vmatpush1.msra.mxu0 0.0
        %1370 = vmatprep.subr.mxu0 0.0
        %1371 = vmatpush1.msra.mxu0 0.0
        %1372 = vmatprep.subr.mxu0 0.0
        %1373 = vmatpush1.msra.mxu0 0.0
        %1374 = vmatprep.subr.mxu0 0.0
        %1375 = vmatpush1.msra.mxu0 0.0
        %1376 = vmatprep.subr.mxu0 0.0
        %1377 = vmatpush1.msra.mxu0 0.0
        %1378 = vmatprep.subr.mxu0 0.0
        %1379 = vmatpush1.msra.mxu0 0.0
        %1380 = vmatprep.subr.mxu0 0.0
        %1381 = vmatpush1.msra.mxu0 0.0
        %1382 = vmatprep.subr.mxu0 0.0
        %1383 = vmatpush1.msra.mxu0 0.0
        %1384 = vmatprep.subr.mxu0 0.0
        %1385 = vmatpush1.msra.mxu0 0.0
        %1386 = vmatprep.subr.mxu0 0.0
        %1387 = vmatpush1.msra.mxu0 0.0
        %1388 = vmatprep.subr.mxu0 0.0
        %1389 = vmatpush1.msra.mxu0 0.0
        %1390 = vmatprep.subr.mxu0 0.0
        %1391 = vmatpush1.msra.mxu0 0.0
        %1392 = vmatprep.subr.mxu0 0.0
        %1393 = vmatpush1.msra.mxu0 0.0
        %1394 = vmatprep.subr.mxu0 0.0
        %1395 = vmatpush1.msra.mxu0 0.0
        %1396 = vmatprep.subr.mxu0 0.0
        %1397 = vmatpush1.msra.mxu0 0.0
        %1398 = vmatprep.subr.mxu0 0.0
        %1399 = vmatpush1.msra.mxu0 0.0
        %1400 = vmatprep.subr.mxu0 0.0
        %1401 = vmatpush1.msra.mxu0 0.0
        %1402 = vmatprep.subr.mxu0 0.0
        %1403 = vmatpush1.msra.mxu0 0.0
        %1404 = vmatprep.subr.mxu0 0.0
        %1405 = vmatpush1.msra.mxu0 0.0
        %1406 = vmatprep.subr.mxu0 0.0
        %1407 = vmatpush1.msra.mxu0 0.0
        %1408 = vmatprep.subr.mxu0 0.0
        %1409 = vmatpush1.msra.mxu0 0.0
        %1410 = vmatprep.subr.mxu0 0.0
        %1411 = vmatpush1.msra.mxu0 0.0
        %1412 = vmatprep.mubr.f32.mxu0 0.0
        %1413 = vmatmul.mubr.f32.gmra.mrb[0].mxu0 %v1346
        %v1414 = vpop.f32.mrb[0].mxu0
        %v1415 = vadd.f32 %v756, %v1414
        %v1416 = vpop.f32.mrb[0].mxu0
        %v1417 = vadd.f32 %v760, %v1416
        %1418 = vdwg.mxu0
        %v1419 = vadd.f32 %v1343, %v1415
        %v1420 = vxor.u32 %v1419, 2147483648
        %v1421 = vmul.f32 %v1420, 1.442695
        %v1422 = vpow.pop %v1421
        %v1423 = vadd.f32 %v1422, 1.0
        %v1424 = vrcp.pop %v1423
        %v1425 = vmul.f32 1.0, %v1424
        %v1426 = vmul.f32 %v1425, %v1417
        %v1427 = vadd.f32 %v1344, %v1426
        %v1428 = vtanh.pop %v1427
        %v1429 = vsub.f32 1.0, %v1425
        %1431 = vrot.lane.b32.xlu0 %v1428, 64
        %v1432 = vpop.permute.xlu0 %1431
        %v1434 = vmul.f32 %v1429, %v1432
        %1435 = vrot.lane.b32.xlu0 %v1338, 64
        %v1436 = vpop.permute.xlu0 %1435
        %v1438 = vmul.f32 %v1425, %v1436
        %v1439 = vadd.f32 %v1434, %v1438
        %v1440 = vsel %vm857, %v1104, %v1099
        %vm1441 = vcmp.gt.f32.partialorder %v1440, 0.0
        %1443 = vrot.lane.b32.xlu0 %v1439, 64
        %v1444 = vpop.permute.xlu0 %1443
        %v1446 = vsel %vm1441, %v1444, %v1338
        %v1447 = vmul.f32 %v1446, %v1104
        %1448 = vst.msk [vmem:[#allocation2 + $0x28] sm:$0xff] %vm876, %v1447
        %v1449 = vmul.f32 %v1446, %v1099
        %1450 = vst.msk [vmem:[#allocation2 + $0x10] sm:$0xff] %vm879, %v1449
        %v1451 = vsel %vm748, %v738, %v712
        %v1452 = vsel %vm749, %v740, %v714
        %v1454 = vsel %vm763, %v1446, 0
        %1456 = vmatprep.subr.mxu0 %v579
        %1457 = vmatpush1.msra.mxu0 %v578
        %1458 = vmatprep.subr.mxu0 %v581
        %1459 = vmatpush1.msra.mxu0 %v580
        %1460 = vmatprep.subr.mxu0 %v583
        %1461 = vmatpush1.msra.mxu0 %v582
        %1462 = vmatprep.subr.mxu0 %v585
        %1463 = vmatpush1.msra.mxu0 %v584
        %1464 = vmatprep.subr.mxu0 %v587
        %1465 = vmatpush1.msra.mxu0 %v586
        %1466 = vmatprep.subr.mxu0 %v589
        %1467 = vmatpush1.msra.mxu0 %v588
        %1468 = vmatprep.subr.mxu0 %v591
        %1469 = vmatpush1.msra.mxu0 %v590
        %1470 = vmatprep.subr.mxu0 %v593
        %1471 = vmatpush1.msra.mxu0 %v592
        %1472 = vmatprep.subr.mxu0 0.0
        %1473 = vmatpush1.msra.mxu0 0.0
        %1474 = vmatprep.subr.mxu0 0.0
        %1475 = vmatpush1.msra.mxu0 0.0
        %1476 = vmatprep.subr.mxu0 0.0
        %1477 = vmatpush1.msra.mxu0 0.0
        %1478 = vmatprep.subr.mxu0 0.0
        %1479 = vmatpush1.msra.mxu0 0.0
        %1480 = vmatprep.subr.mxu0 0.0
        %1481 = vmatpush1.msra.mxu0 0.0
        %1482 = vmatprep.subr.mxu0 0.0
        %1483 = vmatpush1.msra.mxu0 0.0
        %1484 = vmatprep.subr.mxu0 0.0
        %1485 = vmatpush1.msra.mxu0 0.0
        %1486 = vmatprep.subr.mxu0 0.0
        %1487 = vmatpush1.msra.mxu0 0.0
        %1488 = vmatprep.subr.mxu0 0.0
        %1489 = vmatpush1.msra.mxu0 0.0
        %1490 = vmatprep.subr.mxu0 0.0
        %1491 = vmatpush1.msra.mxu0 0.0
        %1492 = vmatprep.subr.mxu0 0.0
        %1493 = vmatpush1.msra.mxu0 0.0
        %1494 = vmatprep.subr.mxu0 0.0
        %1495 = vmatpush1.msra.mxu0 0.0
        %1496 = vmatprep.subr.mxu0 0.0
        %1497 = vmatpush1.msra.mxu0 0.0
        %1498 = vmatprep.subr.mxu0 0.0
        %1499 = vmatpush1.msra.mxu0 0.0
        %1500 = vmatprep.subr.mxu0 0.0
        %1501 = vmatpush1.msra.mxu0 0.0
        %1502 = vmatprep.subr.mxu0 0.0
        %1503 = vmatpush1.msra.mxu0 0.0
        %1504 = vmatprep.subr.mxu0 0.0
        %1505 = vmatpush1.msra.mxu0 0.0
        %1506 = vmatprep.subr.mxu0 0.0
        %1507 = vmatpush1.msra.mxu0 0.0
        %1508 = vmatprep.subr.mxu0 0.0
        %1509 = vmatpush1.msra.mxu0 0.0
        %1510 = vmatprep.subr.mxu0 0.0
        %1511 = vmatpush1.msra.mxu0 0.0
        %1512 = vmatprep.subr.mxu0 0.0
        %1513 = vmatpush1.msra.mxu0 0.0
        %1514 = vmatprep.subr.mxu0 0.0
        %1515 = vmatpush1.msra.mxu0 0.0
        %1516 = vmatprep.subr.mxu0 0.0
        %1517 = vmatpush1.msra.mxu0 0.0
        %1518 = vmatprep.subr.mxu0 0.0
        %1519 = vmatpush1.msra.mxu0 0.0
        %1520 = vmatprep.mubr.f32.mxu0 0.0
        %1521 = vmatmul.mubr.f32.gmra.mrb[0].mxu0 %v1454
        %v1522 = vpop.f32.mrb[0].mxu0
        %v1523 = vadd.f32 %v756, %v1522
        %v1524 = vpop.f32.mrb[0].mxu0
        %v1525 = vadd.f32 %v760, %v1524
        %1526 = vdwg.mxu0
        %v1527 = vadd.f32 %v1451, %v1523
        %v1528 = vxor.u32 %v1527, 2147483648
        %v1529 = vmul.f32 %v1528, 1.442695
        %v1530 = vpow.pop %v1529
        %v1531 = vadd.f32 %v1530, 1.0
        %v1532 = vrcp.pop %v1531
        %v1533 = vmul.f32 1.0, %v1532
        %v1534 = vmul.f32 %v1533, %v1525
        %v1535 = vadd.f32 %v1452, %v1534
        %v1536 = vtanh.pop %v1535
        %v1537 = vsub.f32 1.0, %v1533
        %1539 = vrot.lane.b32.xlu0 %v1536, 64
        %v1540 = vpop.permute.xlu0 %1539
        %v1542 = vmul.f32 %v1537, %v1540
        %1543 = vrot.lane.b32.xlu0 %v1446, 64
        %v1544 = vpop.permute.xlu0 %1543
        %v1546 = vmul.f32 %v1533, %v1544
        %v1547 = vadd.f32 %v1542, %v1546
        %v1548 = vsel %vm857, %v986, %v981
        %vm1549 = vcmp.gt.f32.partialorder %v1548, 0.0
        %1551 = vrot.lane.b32.xlu0 %v1547, 64
        %v1552 = vpop.permute.xlu0 %1551
        %v1554 = vsel %vm1549, %v1552, %v1446
        %v1555 = vmul.f32 %v1554, %v986
        %1556 = vst.msk [vmem:[#allocation2 + $0x30] sm:$0xff] %vm876, %v1555
        %v1557 = vmul.f32 %v1554, %v981
        %1558 = vst.msk [vmem:[#allocation2 + $0x8] sm:$0xff] %vm879, %v1557
        %v1559 = vsel %vm748, %v742, %v708
        %v1560 = vsel %vm749, %v744, %v710
        %v1562 = vsel %vm763, %v1554, 0
        %1564 = vmatprep.subr.mxu0 %v579
        %1565 = vmatpush1.msra.mxu0 %v578
        %1566 = vmatprep.subr.mxu0 %v581
        %1567 = vmatpush1.msra.mxu0 %v580
        %1568 = vmatprep.subr.mxu0 %v583
        %1569 = vmatpush1.msra.mxu0 %v582
        %1570 = vmatprep.subr.mxu0 %v585
        %1571 = vmatpush1.msra.mxu0 %v584
        %1572 = vmatprep.subr.mxu0 %v587
        %1573 = vmatpush1.msra.mxu0 %v586
        %1574 = vmatprep.subr.mxu0 %v589
        %1575 = vmatpush1.msra.mxu0 %v588
        %1576 = vmatprep.subr.mxu0 %v591
        %1577 = vmatpush1.msra.mxu0 %v590
        %1578 = vmatprep.subr.mxu0 %v593
        %1579 = vmatpush1.msra.mxu0 %v592
        %1580 = vmatprep.subr.mxu0 0.0
        %1581 = vmatpush1.msra.mxu0 0.0
        %1582 = vmatprep.subr.mxu0 0.0
        %1583 = vmatpush1.msra.mxu0 0.0
        %1584 = vmatprep.subr.mxu0 0.0
        %1585 = vmatpush1.msra.mxu0 0.0
        %1586 = vmatprep.subr.mxu0 0.0
        %1587 = vmatpush1.msra.mxu0 0.0
        %1588 = vmatprep.subr.mxu0 0.0
        %1589 = vmatpush1.msra.mxu0 0.0
        %1590 = vmatprep.subr.mxu0 0.0
        %1591 = vmatpush1.msra.mxu0 0.0
        %1592 = vmatprep.subr.mxu0 0.0
        %1593 = vmatpush1.msra.mxu0 0.0
        %1594 = vmatprep.subr.mxu0 0.0
        %1595 = vmatpush1.msra.mxu0 0.0
        %1596 = vmatprep.subr.mxu0 0.0
        %1597 = vmatpush1.msra.mxu0 0.0
        %1598 = vmatprep.subr.mxu0 0.0
        %1599 = vmatpush1.msra.mxu0 0.0
        %1600 = vmatprep.subr.mxu0 0.0
        %1601 = vmatpush1.msra.mxu0 0.0
        %1602 = vmatprep.subr.mxu0 0.0
        %1603 = vmatpush1.msra.mxu0 0.0
        %1604 = vmatprep.subr.mxu0 0.0
        %1605 = vmatpush1.msra.mxu0 0.0
        %1606 = vmatprep.subr.mxu0 0.0
        %1607 = vmatpush1.msra.mxu0 0.0
        %1608 = vmatprep.subr.mxu0 0.0
        %1609 = vmatpush1.msra.mxu0 0.0
        %1610 = vmatprep.subr.mxu0 0.0
        %1611 = vmatpush1.msra.mxu0 0.0
        %1612 = vmatprep.subr.mxu0 0.0
        %1613 = vmatpush1.msra.mxu0 0.0
        %1614 = vmatprep.subr.mxu0 0.0
        %1615 = vmatpush1.msra.mxu0 0.0
        %1616 = vmatprep.subr.mxu0 0.0
        %1617 = vmatpush1.msra.mxu0 0.0
        %1618 = vmatprep.subr.mxu0 0.0
        %1619 = vmatpush1.msra.mxu0 0.0
        %1620 = vmatprep.subr.mxu0 0.0
        %1621 = vmatpush1.msra.mxu0 0.0
        %1622 = vmatprep.subr.mxu0 0.0
        %1623 = vmatpush1.msra.mxu0 0.0
        %1624 = vmatprep.subr.mxu0 0.0
        %1625 = vmatpush1.msra.mxu0 0.0
        %1626 = vmatprep.subr.mxu0 0.0
        %1627 = vmatpush1.msra.mxu0 0.0
        %1628 = vmatprep.mubr.f32.mxu0 0.0
        %1629 = vmatmul.mubr.f32.gmra.mrb[0].mxu0 %v1562
        %v1630 = vpop.f32.mrb[0].mxu0
        %v1631 = vadd.f32 %v756, %v1630
        %v1632 = vpop.f32.mrb[0].mxu0
        %v1633 = vadd.f32 %v760, %v1632
        %1634 = vdwg.mxu0
        %v1635 = vadd.f32 %v1559, %v1631
        %v1636 = vxor.u32 %v1635, 2147483648
        %v1637 = vmul.f32 %v1636, 1.442695
        %v1638 = vpow.pop %v1637
        %v1639 = vadd.f32 %v1638, 1.0
        %v1640 = vrcp.pop %v1639
        %v1641 = vmul.f32 1.0, %v1640
        %v1642 = vmul.f32 %v1641, %v1633
        %v1643 = vadd.f32 %v1560, %v1642
        %v1644 = vtanh.pop %v1643
        %v1645 = vsub.f32 1.0, %v1641
        %1647 = vrot.lane.b32.xlu0 %v1644, 64
        %v1648 = vpop.permute.xlu0 %1647
        %v1650 = vmul.f32 %v1645, %v1648
        %1651 = vrot.lane.b32.xlu0 %v1554, 64
        %v1652 = vpop.permute.xlu0 %1651
        %v1654 = vmul.f32 %v1641, %v1652
        %v1655 = vadd.f32 %v1650, %v1654
        %v1656 = vsel %vm857, %v866, %v861
        %vm1657 = vcmp.gt.f32.partialorder %v1656, 0.0
        %1659 = vrot.lane.b32.xlu0 %v1655, 64
        %v1660 = vpop.permute.xlu0 %1659
        %v1662 = vsel %vm1657, %v1660, %v1554
        %v1663 = vmul.f32 %v1662, %v866
        %1664 = vst.msk [vmem:[#allocation2 + $0x38] sm:$0xff] %vm876, %v1663
        %v1665 = vmul.f32 %v1662, %v861
        %1666 = vst.msk [vmem:[#allocation2] sm:$0xff] %vm879, %v1665
        %v1667 = vld [vmem:[%s8] sm:$0xff]
        %v1668 = vld [vmem:[%s8 + $0x8] sm:$0xff]
        %v1669 = vld [vmem:[%s8 + $0x10] sm:$0xff]
        %v1670 = vld [vmem:[%s8 + $0x18] sm:$0xff]
        %v1671 = vld [vmem:[%s8 + $0x20] sm:$0xff]
        %v1672 = vld [vmem:[%s8 + $0x28] sm:$0xff]
        %v1673 = vld [vmem:[%s8 + $0x30] sm:$0xff]
        %v1674 = vld [vmem:[%s8 + $0x38] sm:$0xff]
        %v1675 = vld [vmem:[%s8 + $0x40] sm:$0xff]
        %v1676 = vld [vmem:[%s8 + $0x48] sm:$0xff]
        %v1677 = vld [vmem:[%s8 + $0x50] sm:$0xff]
        %v1678 = vld [vmem:[%s8 + $0x58] sm:$0xff]
        %v1679 = vld [vmem:[%s8 + $0x60] sm:$0xff]
        %v1680 = vld [vmem:[%s8 + $0x68] sm:$0xff]
        %v1681 = vld [vmem:[%s8 + $0x70] sm:$0xff]
        %v1682 = vld [vmem:[%s8 + $0x78] sm:$0xff]
        %v1683 = vld [vmem:[%s9] sm:$0x3]
        %v1684 = vld [vmem:[%s7] sm:$0x3]
        %v1685 = vld [vmem:[#allocation2] sm:$0xff]
        %v1686 = vld [vmem:[#allocation2 + $0x8] sm:$0xff]
        %v1687 = vld [vmem:[#allocation2 + $0x10] sm:$0xff]
        %v1688 = vld [vmem:[#allocation2 + $0x18] sm:$0xff]
        %v1689 = vld [vmem:[#allocation2 + $0x20] sm:$0xff]
        %v1690 = vld [vmem:[#allocation2 + $0x28] sm:$0xff]
        %v1691 = vld [vmem:[#allocation2 + $0x30] sm:$0xff]
        %v1692 = vld [vmem:[#allocation2 + $0x38] sm:$0xff]
        %v1693 = vpack.c.bf16 %v1686, %v1685
        %v1694 = vpack.c.bf16 %v1688, %v1687
        %v1695 = vpack.c.bf16 %v1690, %v1689
        %v1696 = vpack.c.bf16 %v1692, %v1691
        %v1697 = vld [vmem:[%s6] sm:$0xff]
        %v1698 = vld [vmem:[%s6 + $0x8] sm:$0xff]
        %v1699 = vld [vmem:[%s6 + $0x10] sm:$0xff]
        %v1700 = vld [vmem:[%s6 + $0x18] sm:$0xff]
        %v1701 = vld [vmem:[%s6 + $0x20] sm:$0xff]
        %v1702 = vld [vmem:[%s6 + $0x28] sm:$0xff]
        %v1703 = vld [vmem:[%s6 + $0x30] sm:$0xff]
        %v1704 = vld [vmem:[%s6 + $0x38] sm:$0xff]
        %v1706 = vlaneseq
        %v1707 = vshrl.u32 %v1706, 7
        %v1708 = vsub.s32 0, %v1707
        %v1709 = vrot.slane %v1684, %v1708
        %v1710 = vlaneseq
        %v1711 = vshrl.u32 %v1710, 7
        %v1712 = vsub.s32 1, %v1711
        %v1713 = vrot.slane %v1684, %v1712
        %v1724 = vunpack.c.l.b16 %v1697
        %v1725 = vunpack.c.h.b16 %v1697
        %v1726 = vunpack.c.l.b16 %v1698
        %v1727 = vunpack.c.h.b16 %v1698
        %v1728 = vunpack.c.l.b16 %v1699
        %v1729 = vunpack.c.h.b16 %v1699
        %v1730 = vunpack.c.l.b16 %v1700
        %v1731 = vunpack.c.h.b16 %v1700
        %v1732 = vunpack.c.l.b16 %v1701
        %v1733 = vunpack.c.h.b16 %v1701
        %v1734 = vunpack.c.l.b16 %v1702
        %v1735 = vunpack.c.h.b16 %v1702
        %v1736 = vunpack.c.l.b16 %v1703
        %v1737 = vunpack.c.h.b16 %v1703
        %v1738 = vunpack.c.l.b16 %v1704
        %v1739 = vunpack.c.h.b16 %v1704
        %v1740 = vpack.c.b16 %v1726, %v1724
        %v1741 = vpack.c.b16 %v1727, %v1725
        %v1742 = vpack.c.b16 %v1730, %v1728
        %v1743 = vpack.c.b16 %v1731, %v1729
        %v1744 = vpack.c.b16 %v1734, %v1732
        %v1745 = vpack.c.b16 %v1735, %v1733
        %v1746 = vpack.c.b16 %v1738, %v1736
        %v1747 = vpack.c.b16 %v1739, %v1737
        %v1757 = vsel %vm763, %v1693, 0
        %v1760 = vsel %vm763, %v1694, 0
        %v1763 = vsel %vm763, %v1695, 0
        %v1766 = vsel %vm763, %v1696, 0
        %1768 = vmatprep.subr.bf16.mxu0 %v1741
        %1769 = vmatpush1.bf16.msra.mxu0 %v1740
        %1770 = vmatprep.subr.bf16.mxu0 %v1743
        %1771 = vmatpush1.bf16.msra.mxu0 %v1742
        %1772 = vmatprep.subr.bf16.mxu0 %v1745
        %1773 = vmatpush1.bf16.msra.mxu0 %v1744
        %1774 = vmatprep.subr.bf16.mxu0 %v1747
        %1775 = vmatpush1.bf16.msra.mxu0 %v1746
        %1776 = vmatprep.subr.bf16.mxu0 0
        %1777 = vmatpush1.bf16.msra.mxu0 0
        %1778 = vmatprep.subr.bf16.mxu0 0
        %1779 = vmatpush1.bf16.msra.mxu0 0
        %1780 = vmatprep.subr.bf16.mxu0 0
        %1781 = vmatpush1.bf16.msra.mxu0 0
        %1782 = vmatprep.subr.bf16.mxu0 0
        %1783 = vmatpush1.bf16.msra.mxu0 0
        %1784 = vmatprep.subr.bf16.mxu0 0
        %1785 = vmatpush1.bf16.msra.mxu0 0
        %1786 = vmatprep.subr.bf16.mxu0 0
        %1787 = vmatpush1.bf16.msra.mxu0 0
        %1788 = vmatprep.subr.bf16.mxu0 0
        %1789 = vmatpush1.bf16.msra.mxu0 0
        %1790 = vmatprep.subr.bf16.mxu0 0
        %1791 = vmatpush1.bf16.msra.mxu0 0
        %1792 = vmatprep.subr.bf16.mxu0 0
        %1793 = vmatpush1.bf16.msra.mxu0 0
        %1794 = vmatprep.subr.bf16.mxu0 0
        %1795 = vmatpush1.bf16.msra.mxu0 0
        %1796 = vmatprep.subr.bf16.mxu0 0
        %1797 = vmatpush1.bf16.msra.mxu0 0
        %1798 = vmatprep.subr.bf16.mxu0 0
        %1799 = vmatpush1.bf16.msra.mxu0 0
        %1800 = vmatprep.mubr.bf16.mxu0 0
        %1801 = vmatmul.mubr.bf16.gmra.mrb[0].mxu0 %v1757
        %v1802 = vpop.f32.mrb[0].mxu0
        %v1803 = vadd.f32 %v1709, %v1802
        %v1804 = vpop.f32.mrb[0].mxu0
        %v1805 = vadd.f32 %v1713, %v1804
        %v1806 = vpop.f32.mrb[0].mxu0
        %v1807 = vadd.f32 %v1709, %v1806
        %v1808 = vpop.f32.mrb[0].mxu0
        %v1809 = vadd.f32 %v1713, %v1808
        %1810 = vmatprep.mubr.bf16.mxu0 0
        %1811 = vmatmul.mubr.bf16.gmra.mrb[0].mxu0 %v1760
        %v1812 = vpop.f32.mrb[0].mxu0
        %v1813 = vadd.f32 %v1709, %v1812
        %v1814 = vpop.f32.mrb[0].mxu0
        %v1815 = vadd.f32 %v1713, %v1814
        %v1816 = vpop.f32.mrb[0].mxu0
        %v1817 = vadd.f32 %v1709, %v1816
        %v1818 = vpop.f32.mrb[0].mxu0
        %v1819 = vadd.f32 %v1713, %v1818
        %1820 = vmatprep.mubr.bf16.mxu0 0
        %1821 = vmatmul.mubr.bf16.gmra.mrb[0].mxu0 %v1763
        %v1822 = vpop.f32.mrb[0].mxu0
        %v1823 = vadd.f32 %v1709, %v1822
        %v1824 = vpop.f32.mrb[0].mxu0
        %v1825 = vadd.f32 %v1713, %v1824
        %v1826 = vpop.f32.mrb[0].mxu0
        %v1827 = vadd.f32 %v1709, %v1826
        %v1828 = vpop.f32.mrb[0].mxu0
        %v1829 = vadd.f32 %v1713, %v1828
        %1830 = vmatprep.mubr.bf16.mxu0 0
        %1831 = vmatmul.mubr.bf16.gmra.mrb[0].mxu0 %v1766
        %v1832 = vpop.f32.mrb[0].mxu0
        %v1833 = vadd.f32 %v1709, %v1832
        %v1834 = vpop.f32.mrb[0].mxu0
        %v1835 = vadd.f32 %v1713, %v1834
        %v1836 = vpop.f32.mrb[0].mxu0
        %v1837 = vadd.f32 %v1709, %v1836
        %v1838 = vpop.f32.mrb[0].mxu0
        %v1839 = vadd.f32 %v1713, %v1838
        %1840 = vdwg.mxu0
        %v1841 = vsel %vm748, %v1803, %v1837
        %v1842 = vsel %vm749, %v1805, %v1839
        %v1844 = vlaneseq
        %v1845 = vshrl.u32 %v1844, 7
        %v1846 = vsub.s32 0, %v1845
        %v1847 = vrot.slane %v1683, %v1846
        %v1848 = vlaneseq
        %v1849 = vshrl.u32 %v1848, 7
        %v1850 = vsub.s32 1, %v1849
        %v1851 = vrot.slane %v1683, %v1850
        %1854 = vmatprep.subr.mxu0 %v1668
        %1855 = vmatpush1.msra.mxu0 %v1667
        %1856 = vmatprep.subr.mxu0 %v1670
        %1857 = vmatpush1.msra.mxu0 %v1669
        %1858 = vmatprep.subr.mxu0 %v1672
        %1859 = vmatpush1.msra.mxu0 %v1671
        %1860 = vmatprep.subr.mxu0 %v1674
        %1861 = vmatpush1.msra.mxu0 %v1673
        %1862 = vmatprep.subr.mxu0 %v1676
        %1863 = vmatpush1.msra.mxu0 %v1675
        %1864 = vmatprep.subr.mxu0 %v1678
        %1865 = vmatpush1.msra.mxu0 %v1677
        %1866 = vmatprep.subr.mxu0 %v1680
        %1867 = vmatpush1.msra.mxu0 %v1679
        %1868 = vmatprep.subr.mxu0 %v1682
        %1869 = vmatpush1.msra.mxu0 %v1681
        %1870 = vmatprep.subr.mxu0 0.0
        %1871 = vmatpush1.msra.mxu0 0.0
        %1872 = vmatprep.subr.mxu0 0.0
        %1873 = vmatpush1.msra.mxu0 0.0
        %1874 = vmatprep.subr.mxu0 0.0
        %1875 = vmatpush1.msra.mxu0 0.0
        %1876 = vmatprep.subr.mxu0 0.0
        %1877 = vmatpush1.msra.mxu0 0.0
        %1878 = vmatprep.subr.mxu0 0.0
        %1879 = vmatpush1.msra.mxu0 0.0
        %1880 = vmatprep.subr.mxu0 0.0
        %1881 = vmatpush1.msra.mxu0 0.0
        %1882 = vmatprep.subr.mxu0 0.0
        %1883 = vmatpush1.msra.mxu0 0.0
        %1884 = vmatprep.subr.mxu0 0.0
        %1885 = vmatpush1.msra.mxu0 0.0
        %1886 = vmatprep.subr.mxu0 0.0
        %1887 = vmatpush1.msra.mxu0 0.0
        %1888 = vmatprep.subr.mxu0 0.0
        %1889 = vmatpush1.msra.mxu0 0.0
        %1890 = vmatprep.subr.mxu0 0.0
        %1891 = vmatpush1.msra.mxu0 0.0
        %1892 = vmatprep.subr.mxu0 0.0
        %1893 = vmatpush1.msra.mxu0 0.0
        %1894 = vmatprep.subr.mxu0 0.0
        %1895 = vmatpush1.msra.mxu0 0.0
        %1896 = vmatprep.subr.mxu0 0.0
        %1897 = vmatpush1.msra.mxu0 0.0
        %1898 = vmatprep.subr.mxu0 0.0
        %1899 = vmatpush1.msra.mxu0 0.0
        %1900 = vmatprep.subr.mxu0 0.0
        %1901 = vmatpush1.msra.mxu0 0.0
        %1902 = vmatprep.subr.mxu0 0.0
        %1903 = vmatpush1.msra.mxu0 0.0
        %1904 = vmatprep.subr.mxu0 0.0
        %1905 = vmatpush1.msra.mxu0 0.0
        %1906 = vmatprep.subr.mxu0 0.0
        %1907 = vmatpush1.msra.mxu0 0.0
        %1908 = vmatprep.subr.mxu0 0.0
        %1909 = vmatpush1.msra.mxu0 0.0
        %1910 = vmatprep.subr.mxu0 0.0
        %1911 = vmatpush1.msra.mxu0 0.0
        %1912 = vmatprep.subr.mxu0 0.0
        %1913 = vmatpush1.msra.mxu0 0.0
        %1914 = vmatprep.subr.mxu0 0.0
        %1915 = vmatpush1.msra.mxu0 0.0
        %1916 = vmatprep.subr.mxu0 0.0
        %1917 = vmatpush1.msra.mxu0 0.0
        %1918 = vmatprep.mubr.f32.mxu0 0.0
        %1919 = vmatmul.mubr.f32.gmra.mrb[0].mxu0 %v765
        %v1920 = vpop.f32.mrb[0].mxu0
        %v1921 = vadd.f32 %v1847, %v1920
        %v1922 = vpop.f32.mrb[0].mxu0
        %v1923 = vadd.f32 %v1851, %v1922
        %1924 = vdwg.mxu0
        %v1925 = vadd.f32 %v1841, %v1921
        %v1926 = vxor.u32 %v1925, 2147483648
        %v1927 = vmul.f32 %v1926, 1.442695
        %v1928 = vpow.pop %v1927
        %v1929 = vadd.f32 %v1928, 1.0
        %v1930 = vrcp.pop %v1929
        %v1931 = vmul.f32 1.0, %v1930
        %v1932 = vmul.f32 %v1931, %v1923
        %v1933 = vadd.f32 %v1842, %v1932
        %v1934 = vtanh.pop %v1933
        %v1935 = vsub.f32 1.0, %v1931
        %1937 = vrot.lane.b32.xlu0 %v1934, 64
        %v1938 = vpop.permute.xlu0 %1937
        %v1940 = vmul.f32 %v1935, %v1938
        %v1941 = vmul.f32 %v1931, 0.0
        %v1942 = vadd.f32 %v1940, %v1941
        %1944 = vrot.lane.b32.xlu0 %v1942, 64
        %v1945 = vpop.permute.xlu0 %1944
        %v1947 = vsel %vm869, %v1945, 0.0
        %v1948 = vmul.f32 %v1947, %v861
        %1949 = vst.msk [vmem:[#allocation2] sm:$0xff] %vm876, %v1948
        %v1950 = vmul.f32 %v1947, %v866
        %1951 = vst.msk [vmem:[#allocation2 + $0x38] sm:$0xff] %vm879, %v1950
        %v1952 = vsel %vm748, %v1807, %v1833
        %v1953 = vsel %vm749, %v1809, %v1835
        %v1955 = vsel %vm763, %v1947, 0
        %1957 = vmatprep.subr.mxu0 %v1668
        %1958 = vmatpush1.msra.mxu0 %v1667
        %1959 = vmatprep.subr.mxu0 %v1670
        %1960 = vmatpush1.msra.mxu0 %v1669
        %1961 = vmatprep.subr.mxu0 %v1672
        %1962 = vmatpush1.msra.mxu0 %v1671
        %1963 = vmatprep.subr.mxu0 %v1674
        %1964 = vmatpush1.msra.mxu0 %v1673
        %1965 = vmatprep.subr.mxu0 %v1676
        %1966 = vmatpush1.msra.mxu0 %v1675
        %1967 = vmatprep.subr.mxu0 %v1678
        %1968 = vmatpush1.msra.mxu0 %v1677
        %1969 = vmatprep.subr.mxu0 %v1680
        %1970 = vmatpush1.msra.mxu0 %v1679
        %1971 = vmatprep.subr.mxu0 %v1682
        %1972 = vmatpush1.msra.mxu0 %v1681
        %1973 = vmatprep.subr.mxu0 0.0
        %1974 = vmatpush1.msra.mxu0 0.0
        %1975 = vmatprep.subr.mxu0 0.0
        %1976 = vmatpush1.msra.mxu0 0.0
        %1977 = vmatprep.subr.mxu0 0.0
        %1978 = vmatpush1.msra.mxu0 0.0
        %1979 = vmatprep.subr.mxu0 0.0
        %1980 = vmatpush1.msra.mxu0 0.0
        %1981 = vmatprep.subr.mxu0 0.0
        %1982 = vmatpush1.msra.mxu0 0.0
        %1983 = vmatprep.subr.mxu0 0.0
        %1984 = vmatpush1.msra.mxu0 0.0
        %1985 = vmatprep.subr.mxu0 0.0
        %1986 = vmatpush1.msra.mxu0 0.0
        %1987 = vmatprep.subr.mxu0 0.0
        %1988 = vmatpush1.msra.mxu0 0.0
        %1989 = vmatprep.subr.mxu0 0.0
        %1990 = vmatpush1.msra.mxu0 0.0
        %1991 = vmatprep.subr.mxu0 0.0
        %1992 = vmatpush1.msra.mxu0 0.0
        %1993 = vmatprep.subr.mxu0 0.0
        %1994 = vmatpush1.msra.mxu0 0.0
        %1995 = vmatprep.subr.mxu0 0.0
        %1996 = vmatpush1.msra.mxu0 0.0
        %1997 = vmatprep.subr.mxu0 0.0
        %1998 = vmatpush1.msra.mxu0 0.0
        %1999 = vmatprep.subr.mxu0 0.0
        %2000 = vmatpush1.msra.mxu0 0.0
        %2001 = vmatprep.subr.mxu0 0.0
        %2002 = vmatpush1.msra.mxu0 0.0
        %2003 = vmatprep.subr.mxu0 0.0
        %2004 = vmatpush1.msra.mxu0 0.0
        %2005 = vmatprep.subr.mxu0 0.0
        %2006 = vmatpush1.msra.mxu0 0.0
        %2007 = vmatprep.subr.mxu0 0.0
        %2008 = vmatpush1.msra.mxu0 0.0
        %2009 = vmatprep.subr.mxu0 0.0
        %2010 = vmatpush1.msra.mxu0 0.0
        %2011 = vmatprep.subr.mxu0 0.0
        %2012 = vmatpush1.msra.mxu0 0.0
        %2013 = vmatprep.subr.mxu0 0.0
        %2014 = vmatpush1.msra.mxu0 0.0
        %2015 = vmatprep.subr.mxu0 0.0
        %2016 = vmatpush1.msra.mxu0 0.0
        %2017 = vmatprep.subr.mxu0 0.0
        %2018 = vmatpush1.msra.mxu0 0.0
        %2019 = vmatprep.subr.mxu0 0.0
        %2020 = vmatpush1.msra.mxu0 0.0
        %2021 = vmatprep.mubr.f32.mxu0 0.0
        %2022 = vmatmul.mubr.f32.gmra.mrb[0].mxu0 %v1955
        %v2023 = vpop.f32.mrb[0].mxu0
        %v2024 = vadd.f32 %v1847, %v2023
        %v2025 = vpop.f32.mrb[0].mxu0
        %v2026 = vadd.f32 %v1851, %v2025
        %2027 = vdwg.mxu0
        %v2028 = vadd.f32 %v1952, %v2024
        %v2029 = vxor.u32 %v2028, 2147483648
        %v2030 = vmul.f32 %v2029, 1.442695
        %v2031 = vpow.pop %v2030
        %v2032 = vadd.f32 %v2031, 1.0
        %v2033 = vrcp.pop %v2032
        %v2034 = vmul.f32 1.0, %v2033
        %v2035 = vmul.f32 %v2034, %v2026
        %v2036 = vadd.f32 %v1953, %v2035
        %v2037 = vtanh.pop %v2036
        %v2038 = vsub.f32 1.0, %v2034
        %2040 = vrot.lane.b32.xlu0 %v2037, 64
        %v2041 = vpop.permute.xlu0 %2040
        %v2043 = vmul.f32 %v2038, %v2041
        %2044 = vrot.lane.b32.xlu0 %v1947, 64
        %v2045 = vpop.permute.xlu0 %2044
        %v2047 = vmul.f32 %v2034, %v2045
        %v2048 = vadd.f32 %v2043, %v2047
        %2050 = vrot.lane.b32.xlu0 %v2048, 64
        %v2051 = vpop.permute.xlu0 %2050
        %v2053 = vsel %vm989, %v2051, %v1947
        %v2054 = vmul.f32 %v2053, %v981
        %2055 = vst.msk [vmem:[#allocation2 + $0x8] sm:$0xff] %vm876, %v2054
        %v2056 = vmul.f32 %v2053, %v986
        %2057 = vst.msk [vmem:[#allocation2 + $0x30] sm:$0xff] %vm879, %v2056
        %v2058 = vsel %vm748, %v1813, %v1827
        %v2059 = vsel %vm749, %v1815, %v1829
        %v2061 = vsel %vm763, %v2053, 0
        %2063 = vmatprep.subr.mxu0 %v1668
        %2064 = vmatpush1.msra.mxu0 %v1667
        %2065 = vmatprep.subr.mxu0 %v1670
        %2066 = vmatpush1.msra.mxu0 %v1669
        %2067 = vmatprep.subr.mxu0 %v1672
        %2068 = vmatpush1.msra.mxu0 %v1671
        %2069 = vmatprep.subr.mxu0 %v1674
        %2070 = vmatpush1.msra.mxu0 %v1673
        %2071 = vmatprep.subr.mxu0 %v1676
        %2072 = vmatpush1.msra.mxu0 %v1675
        %2073 = vmatprep.subr.mxu0 %v1678
        %2074 = vmatpush1.msra.mxu0 %v1677
        %2075 = vmatprep.subr.mxu0 %v1680
        %2076 = vmatpush1.msra.mxu0 %v1679
        %2077 = vmatprep.subr.mxu0 %v1682
        %2078 = vmatpush1.msra.mxu0 %v1681
        %2079 = vmatprep.subr.mxu0 0.0
        %2080 = vmatpush1.msra.mxu0 0.0
        %2081 = vmatprep.subr.mxu0 0.0
        %2082 = vmatpush1.msra.mxu0 0.0
        %2083 = vmatprep.subr.mxu0 0.0
        %2084 = vmatpush1.msra.mxu0 0.0
        %2085 = vmatprep.subr.mxu0 0.0
        %2086 = vmatpush1.msra.mxu0 0.0
        %2087 = vmatprep.subr.mxu0 0.0
        %2088 = vmatpush1.msra.mxu0 0.0
        %2089 = vmatprep.subr.mxu0 0.0
        %2090 = vmatpush1.msra.mxu0 0.0
        %2091 = vmatprep.subr.mxu0 0.0
        %2092 = vmatpush1.msra.mxu0 0.0
        %2093 = vmatprep.subr.mxu0 0.0
        %2094 = vmatpush1.msra.mxu0 0.0
        %2095 = vmatprep.subr.mxu0 0.0
        %2096 = vmatpush1.msra.mxu0 0.0
        %2097 = vmatprep.subr.mxu0 0.0
        %2098 = vmatpush1.msra.mxu0 0.0
        %2099 = vmatprep.subr.mxu0 0.0
        %2100 = vmatpush1.msra.mxu0 0.0
        %2101 = vmatprep.subr.mxu0 0.0
        %2102 = vmatpush1.msra.mxu0 0.0
        %2103 = vmatprep.subr.mxu0 0.0
        %2104 = vmatpush1.msra.mxu0 0.0
        %2105 = vmatprep.subr.mxu0 0.0
        %2106 = vmatpush1.msra.mxu0 0.0
        %2107 = vmatprep.subr.mxu0 0.0
        %2108 = vmatpush1.msra.mxu0 0.0
        %2109 = vmatprep.subr.mxu0 0.0
        %2110 = vmatpush1.msra.mxu0 0.0
        %2111 = vmatprep.subr.mxu0 0.0
        %2112 = vmatpush1.msra.mxu0 0.0
        %2113 = vmatprep.subr.mxu0 0.0
        %2114 = vmatpush1.msra.mxu0 0.0
        %2115 = vmatprep.subr.mxu0 0.0
        %2116 = vmatpush1.msra.mxu0 0.0
        %2117 = vmatprep.subr.mxu0 0.0
        %2118 = vmatpush1.msra.mxu0 0.0
        %2119 = vmatprep.subr.mxu0 0.0
        %2120 = vmatpush1.msra.mxu0 0.0
        %2121 = vmatprep.subr.mxu0 0.0
        %2122 = vmatpush1.msra.mxu0 0.0
        %2123 = vmatprep.subr.mxu0 0.0
        %2124 = vmatpush1.msra.mxu0 0.0
        %2125 = vmatprep.subr.mxu0 0.0
        %2126 = vmatpush1.msra.mxu0 0.0
        %2127 = vmatprep.mubr.f32.mxu0 0.0
        %2128 = vmatmul.mubr.f32.gmra.mrb[0].mxu0 %v2061
        %v2129 = vpop.f32.mrb[0].mxu0
        %v2130 = vadd.f32 %v1847, %v2129
        %v2131 = vpop.f32.mrb[0].mxu0
        %v2132 = vadd.f32 %v1851, %v2131
        %2133 = vdwg.mxu0
        %v2134 = vadd.f32 %v2058, %v2130
        %v2135 = vxor.u32 %v2134, 2147483648
        %v2136 = vmul.f32 %v2135, 1.442695
        %v2137 = vpow.pop %v2136
        %v2138 = vadd.f32 %v2137, 1.0
        %v2139 = vrcp.pop %v2138
        %v2140 = vmul.f32 1.0, %v2139
        %v2141 = vmul.f32 %v2140, %v2132
        %v2142 = vadd.f32 %v2059, %v2141
        %v2143 = vtanh.pop %v2142
        %v2144 = vsub.f32 1.0, %v2140
        %2146 = vrot.lane.b32.xlu0 %v2143, 64
        %v2147 = vpop.permute.xlu0 %2146
        %v2149 = vmul.f32 %v2144, %v2147
        %2150 = vrot.lane.b32.xlu0 %v2053, 64
        %v2151 = vpop.permute.xlu0 %2150
        %v2153 = vmul.f32 %v2140, %v2151
        %v2154 = vadd.f32 %v2149, %v2153
        %2156 = vrot.lane.b32.xlu0 %v2154, 64
        %v2157 = vpop.permute.xlu0 %2156
        %v2159 = vsel %vm1107, %v2157, %v2053
        %v2160 = vmul.f32 %v2159, %v1099
        %2161 = vst.msk [vmem:[#allocation2 + $0x10] sm:$0xff] %vm876, %v2160
        %v2162 = vmul.f32 %v2159, %v1104
        %2163 = vst.msk [vmem:[#allocation2 + $0x28] sm:$0xff] %vm879, %v2162
        %v2164 = vsel %vm748, %v1817, %v1823
        %v2165 = vsel %vm749, %v1819, %v1825
        %v2167 = vsel %vm763, %v2159, 0
        %2169 = vmatprep.subr.mxu0 %v1668
        %2170 = vmatpush1.msra.mxu0 %v1667
        %2171 = vmatprep.subr.mxu0 %v1670
        %2172 = vmatpush1.msra.mxu0 %v1669
        %2173 = vmatprep.subr.mxu0 %v1672
        %2174 = vmatpush1.msra.mxu0 %v1671
        %2175 = vmatprep.subr.mxu0 %v1674
        %2176 = vmatpush1.msra.mxu0 %v1673
        %2177 = vmatprep.subr.mxu0 %v1676
        %2178 = vmatpush1.msra.mxu0 %v1675
        %2179 = vmatprep.subr.mxu0 %v1678
        %2180 = vmatpush1.msra.mxu0 %v1677
        %2181 = vmatprep.subr.mxu0 %v1680
        %2182 = vmatpush1.msra.mxu0 %v1679
        %2183 = vmatprep.subr.mxu0 %v1682
        %2184 = vmatpush1.msra.mxu0 %v1681
        %2185 = vmatprep.subr.mxu0 0.0
        %2186 = vmatpush1.msra.mxu0 0.0
        %2187 = vmatprep.subr.mxu0 0.0
        %2188 = vmatpush1.msra.mxu0 0.0
        %2189 = vmatprep.subr.mxu0 0.0
        %2190 = vmatpush1.msra.mxu0 0.0
        %2191 = vmatprep.subr.mxu0 0.0
        %2192 = vmatpush1.msra.mxu0 0.0
        %2193 = vmatprep.subr.mxu0 0.0
        %2194 = vmatpush1.msra.mxu0 0.0
        %2195 = vmatprep.subr.mxu0 0.0
        %2196 = vmatpush1.msra.mxu0 0.0
        %2197 = vmatprep.subr.mxu0 0.0
        %2198 = vmatpush1.msra.mxu0 0.0
        %2199 = vmatprep.subr.mxu0 0.0
        %2200 = vmatpush1.msra.mxu0 0.0
        %2201 = vmatprep.subr.mxu0 0.0
        %2202 = vmatpush1.msra.mxu0 0.0
        %2203 = vmatprep.subr.mxu0 0.0
        %2204 = vmatpush1.msra.mxu0 0.0
        %2205 = vmatprep.subr.mxu0 0.0
        %2206 = vmatpush1.msra.mxu0 0.0
        %2207 = vmatprep.subr.mxu0 0.0
        %2208 = vmatpush1.msra.mxu0 0.0
        %2209 = vmatprep.subr.mxu0 0.0
        %2210 = vmatpush1.msra.mxu0 0.0
        %2211 = vmatprep.subr.mxu0 0.0
        %2212 = vmatpush1.msra.mxu0 0.0
        %2213 = vmatprep.subr.mxu0 0.0
        %2214 = vmatpush1.msra.mxu0 0.0
        %2215 = vmatprep.subr.mxu0 0.0
        %2216 = vmatpush1.msra.mxu0 0.0
        %2217 = vmatprep.subr.mxu0 0.0
        %2218 = vmatpush1.msra.mxu0 0.0
        %2219 = vmatprep.subr.mxu0 0.0
        %2220 = vmatpush1.msra.mxu0 0.0
        %2221 = vmatprep.subr.mxu0 0.0
        %2222 = vmatpush1.msra.mxu0 0.0
        %2223 = vmatprep.subr.mxu0 0.0
        %2224 = vmatpush1.msra.mxu0 0.0
        %2225 = vmatprep.subr.mxu0 0.0
        %2226 = vmatpush1.msra.mxu0 0.0
        %2227 = vmatprep.subr.mxu0 0.0
        %2228 = vmatpush1.msra.mxu0 0.0
        %2229 = vmatprep.subr.mxu0 0.0
        %2230 = vmatpush1.msra.mxu0 0.0
        %2231 = vmatprep.subr.mxu0 0.0
        %2232 = vmatpush1.msra.mxu0 0.0
        %2233 = vmatprep.mubr.f32.mxu0 0.0
        %2234 = vmatmul.mubr.f32.gmra.mrb[0].mxu0 %v2167
        %v2235 = vpop.f32.mrb[0].mxu0
        %v2236 = vadd.f32 %v1847, %v2235
        %v2237 = vpop.f32.mrb[0].mxu0
        %v2238 = vadd.f32 %v1851, %v2237
        %2239 = vdwg.mxu0
        %v2240 = vadd.f32 %v2164, %v2236
        %v2241 = vxor.u32 %v2240, 2147483648
        %v2242 = vmul.f32 %v2241, 1.442695
        %v2243 = vpow.pop %v2242
        %v2244 = vadd.f32 %v2243, 1.0
        %v2245 = vrcp.pop %v2244
        %v2246 = vmul.f32 1.0, %v2245
        %v2247 = vmul.f32 %v2246, %v2238
        %v2248 = vadd.f32 %v2165, %v2247
        %v2249 = vtanh.pop %v2248
        %v2250 = vsub.f32 1.0, %v2246
        %2252 = vrot.lane.b32.xlu0 %v2249, 64
        %v2253 = vpop.permute.xlu0 %2252
        %v2255 = vmul.f32 %v2250, %v2253
        %2256 = vrot.lane.b32.xlu0 %v2159, 64
        %v2257 = vpop.permute.xlu0 %2256
        %v2259 = vmul.f32 %v2246, %v2257
        %v2260 = vadd.f32 %v2255, %v2259
        %2262 = vrot.lane.b32.xlu0 %v2260, 64
        %v2263 = vpop.permute.xlu0 %2262
        %v2265 = vsel %vm1225, %v2263, %v2159
        %v2266 = vmul.f32 %v2265, %v1217
        %2267 = vst.msk [vmem:[#allocation2 + $0x18] sm:$0xff] %vm876, %v2266
        %v2268 = vmul.f32 %v2265, %v1222
        %2269 = vst.msk [vmem:[#allocation2 + $0x20] sm:$0xff] %vm879, %v2268
        %v2270 = vsel %vm748, %v1823, %v1817
        %v2271 = vsel %vm749, %v1825, %v1819
        %v2273 = vsel %vm763, %v2265, 0
        %2275 = vmatprep.subr.mxu0 %v1668
        %2276 = vmatpush1.msra.mxu0 %v1667
        %2277 = vmatprep.subr.mxu0 %v1670
        %2278 = vmatpush1.msra.mxu0 %v1669
        %2279 = vmatprep.subr.mxu0 %v1672
        %2280 = vmatpush1.msra.mxu0 %v1671
        %2281 = vmatprep.subr.mxu0 %v1674
        %2282 = vmatpush1.msra.mxu0 %v1673
        %2283 = vmatprep.subr.mxu0 %v1676
        %2284 = vmatpush1.msra.mxu0 %v1675
        %2285 = vmatprep.subr.mxu0 %v1678
        %2286 = vmatpush1.msra.mxu0 %v1677
        %2287 = vmatprep.subr.mxu0 %v1680
        %2288 = vmatpush1.msra.mxu0 %v1679
        %2289 = vmatprep.subr.mxu0 %v1682
        %2290 = vmatpush1.msra.mxu0 %v1681
        %2291 = vmatprep.subr.mxu0 0.0
        %2292 = vmatpush1.msra.mxu0 0.0
        %2293 = vmatprep.subr.mxu0 0.0
        %2294 = vmatpush1.msra.mxu0 0.0
        %2295 = vmatprep.subr.mxu0 0.0
        %2296 = vmatpush1.msra.mxu0 0.0
        %2297 = vmatprep.subr.mxu0 0.0
        %2298 = vmatpush1.msra.mxu0 0.0
        %2299 = vmatprep.subr.mxu0 0.0
        %2300 = vmatpush1.msra.mxu0 0.0
        %2301 = vmatprep.subr.mxu0 0.0
        %2302 = vmatpush1.msra.mxu0 0.0
        %2303 = vmatprep.subr.mxu0 0.0
        %2304 = vmatpush1.msra.mxu0 0.0
        %2305 = vmatprep.subr.mxu0 0.0
        %2306 = vmatpush1.msra.mxu0 0.0
        %2307 = vmatprep.subr.mxu0 0.0
        %2308 = vmatpush1.msra.mxu0 0.0
        %2309 = vmatprep.subr.mxu0 0.0
        %2310 = vmatpush1.msra.mxu0 0.0
        %2311 = vmatprep.subr.mxu0 0.0
        %2312 = vmatpush1.msra.mxu0 0.0
        %2313 = vmatprep.subr.mxu0 0.0
        %2314 = vmatpush1.msra.mxu0 0.0
        %2315 = vmatprep.subr.mxu0 0.0
        %2316 = vmatpush1.msra.mxu0 0.0
        %2317 = vmatprep.subr.mxu0 0.0
        %2318 = vmatpush1.msra.mxu0 0.0
        %2319 = vmatprep.subr.mxu0 0.0
        %2320 = vmatpush1.msra.mxu0 0.0
        %2321 = vmatprep.subr.mxu0 0.0
        %2322 = vmatpush1.msra.mxu0 0.0
        %2323 = vmatprep.subr.mxu0 0.0
        %2324 = vmatpush1.msra.mxu0 0.0
        %2325 = vmatprep.subr.mxu0 0.0
        %2326 = vmatpush1.msra.mxu0 0.0
        %2327 = vmatprep.subr.mxu0 0.0
        %2328 = vmatpush1.msra.mxu0 0.0
        %2329 = vmatprep.subr.mxu0 0.0
        %2330 = vmatpush1.msra.mxu0 0.0
        %2331 = vmatprep.subr.mxu0 0.0
        %2332 = vmatpush1.msra.mxu0 0.0
        %2333 = vmatprep.subr.mxu0 0.0
        %2334 = vmatpush1.msra.mxu0 0.0
        %2335 = vmatprep.subr.mxu0 0.0
        %2336 = vmatpush1.msra.mxu0 0.0
        %2337 = vmatprep.subr.mxu0 0.0
        %2338 = vmatpush1.msra.mxu0 0.0
        %2339 = vmatprep.mubr.f32.mxu0 0.0
        %2340 = vmatmul.mubr.f32.gmra.mrb[0].mxu0 %v2273
        %v2341 = vpop.f32.mrb[0].mxu0
        %v2342 = vadd.f32 %v1847, %v2341
        %v2343 = vpop.f32.mrb[0].mxu0
        %v2344 = vadd.f32 %v1851, %v2343
        %2345 = vdwg.mxu0
        %v2346 = vadd.f32 %v2270, %v2342
        %v2347 = vxor.u32 %v2346, 2147483648
        %v2348 = vmul.f32 %v2347, 1.442695
        %v2349 = vpow.pop %v2348
        %v2350 = vadd.f32 %v2349, 1.0
        %v2351 = vrcp.pop %v2350
        %v2352 = vmul.f32 1.0, %v2351
        %v2353 = vmul.f32 %v2352, %v2344
        %v2354 = vadd.f32 %v2271, %v2353
        %v2355 = vtanh.pop %v2354
        %v2356 = vsub.f32 1.0, %v2352
        %2358 = vrot.lane.b32.xlu0 %v2355, 64
        %v2359 = vpop.permute.xlu0 %2358
        %v2361 = vmul.f32 %v2356, %v2359
        %2362 = vrot.lane.b32.xlu0 %v2265, 64
        %v2363 = vpop.permute.xlu0 %2362
        %v2365 = vmul.f32 %v2352, %v2363
        %v2366 = vadd.f32 %v2361, %v2365
        %2368 = vrot.lane.b32.xlu0 %v2366, 64
        %v2369 = vpop.permute.xlu0 %2368
        %v2371 = vsel %vm1333, %v2369, %v2265
        %v2372 = vmul.f32 %v2371, %v1222
        %2373 = vst.msk [vmem:[#allocation2 + $0x20] sm:$0xff] %vm876, %v2372
        %v2374 = vmul.f32 %v2371, %v1217
        %2375 = vst.msk [vmem:[#allocation2 + $0x18] sm:$0xff] %vm879, %v2374
        %v2376 = vsel %vm748, %v1827, %v1813
        %v2377 = vsel %vm749, %v1829, %v1815
        %v2379 = vsel %vm763, %v2371, 0
        %2381 = vmatprep.subr.mxu0 %v1668
        %2382 = vmatpush1.msra.mxu0 %v1667
        %2383 = vmatprep.subr.mxu0 %v1670
        %2384 = vmatpush1.msra.mxu0 %v1669
        %2385 = vmatprep.subr.mxu0 %v1672
        %2386 = vmatpush1.msra.mxu0 %v1671
        %2387 = vmatprep.subr.mxu0 %v1674
        %2388 = vmatpush1.msra.mxu0 %v1673
        %2389 = vmatprep.subr.mxu0 %v1676
        %2390 = vmatpush1.msra.mxu0 %v1675
        %2391 = vmatprep.subr.mxu0 %v1678
        %2392 = vmatpush1.msra.mxu0 %v1677
        %2393 = vmatprep.subr.mxu0 %v1680
        %2394 = vmatpush1.msra.mxu0 %v1679
        %2395 = vmatprep.subr.mxu0 %v1682
        %2396 = vmatpush1.msra.mxu0 %v1681
        %2397 = vmatprep.subr.mxu0 0.0
        %2398 = vmatpush1.msra.mxu0 0.0
        %2399 = vmatprep.subr.mxu0 0.0
        %2400 = vmatpush1.msra.mxu0 0.0
        %2401 = vmatprep.subr.mxu0 0.0
        %2402 = vmatpush1.msra.mxu0 0.0
        %2403 = vmatprep.subr.mxu0 0.0
        %2404 = vmatpush1.msra.mxu0 0.0
        %2405 = vmatprep.subr.mxu0 0.0
        %2406 = vmatpush1.msra.mxu0 0.0
        %2407 = vmatprep.subr.mxu0 0.0
        %2408 = vmatpush1.msra.mxu0 0.0
        %2409 = vmatprep.subr.mxu0 0.0
        %2410 = vmatpush1.msra.mxu0 0.0
        %2411 = vmatprep.subr.mxu0 0.0
        %2412 = vmatpush1.msra.mxu0 0.0
        %2413 = vmatprep.subr.mxu0 0.0
        %2414 = vmatpush1.msra.mxu0 0.0
        %2415 = vmatprep.subr.mxu0 0.0
        %2416 = vmatpush1.msra.mxu0 0.0
        %2417 = vmatprep.subr.mxu0 0.0
        %2418 = vmatpush1.msra.mxu0 0.0
        %2419 = vmatprep.subr.mxu0 0.0
        %2420 = vmatpush1.msra.mxu0 0.0
        %2421 = vmatprep.subr.mxu0 0.0
        %2422 = vmatpush1.msra.mxu0 0.0
        %2423 = vmatprep.subr.mxu0 0.0
        %2424 = vmatpush1.msra.mxu0 0.0
        %2425 = vmatprep.subr.mxu0 0.0
        %2426 = vmatpush1.msra.mxu0 0.0
        %2427 = vmatprep.subr.mxu0 0.0
        %2428 = vmatpush1.msra.mxu0 0.0
        %2429 = vmatprep.subr.mxu0 0.0
        %2430 = vmatpush1.msra.mxu0 0.0
        %2431 = vmatprep.subr.mxu0 0.0
        %2432 = vmatpush1.msra.mxu0 0.0
        %2433 = vmatprep.subr.mxu0 0.0
        %2434 = vmatpush1.msra.mxu0 0.0
        %2435 = vmatprep.subr.mxu0 0.0
        %2436 = vmatpush1.msra.mxu0 0.0
        %2437 = vmatprep.subr.mxu0 0.0
        %2438 = vmatpush1.msra.mxu0 0.0
        %2439 = vmatprep.subr.mxu0 0.0
        %2440 = vmatpush1.msra.mxu0 0.0
        %2441 = vmatprep.subr.mxu0 0.0
        %2442 = vmatpush1.msra.mxu0 0.0
        %2443 = vmatprep.subr.mxu0 0.0
        %2444 = vmatpush1.msra.mxu0 0.0
        %2445 = vmatprep.mubr.f32.mxu0 0.0
        %2446 = vmatmul.mubr.f32.gmra.mrb[0].mxu0 %v2379
        %v2447 = vpop.f32.mrb[0].mxu0
        %v2448 = vadd.f32 %v1847, %v2447
        %v2449 = vpop.f32.mrb[0].mxu0
        %v2450 = vadd.f32 %v1851, %v2449
        %2451 = vdwg.mxu0
        %v2452 = vadd.f32 %v2376, %v2448
        %v2453 = vxor.u32 %v2452, 2147483648
        %v2454 = vmul.f32 %v2453, 1.442695
        %v2455 = vpow.pop %v2454
        %v2456 = vadd.f32 %v2455, 1.0
        %v2457 = vrcp.pop %v2456
        %v2458 = vmul.f32 1.0, %v2457
        %v2459 = vmul.f32 %v2458, %v2450
        %v2460 = vadd.f32 %v2377, %v2459
        %v2461 = vtanh.pop %v2460
        %v2462 = vsub.f32 1.0, %v2458
        %2464 = vrot.lane.b32.xlu0 %v2461, 64
        %v2465 = vpop.permute.xlu0 %2464
        %v2467 = vmul.f32 %v2462, %v2465
        %2468 = vrot.lane.b32.xlu0 %v2371, 64
        %v2469 = vpop.permute.xlu0 %2468
        %v2471 = vmul.f32 %v2458, %v2469
        %v2472 = vadd.f32 %v2467, %v2471
        %2474 = vrot.lane.b32.xlu0 %v2472, 64
        %v2475 = vpop.permute.xlu0 %2474
        %v2477 = vsel %vm1441, %v2475, %v2371
        %v2478 = vmul.f32 %v2477, %v1104
        %2479 = vst.msk [vmem:[#allocation2 + $0x28] sm:$0xff] %vm876, %v2478
        %v2480 = vmul.f32 %v2477, %v1099
        %2481 = vst.msk [vmem:[#allocation2 + $0x10] sm:$0xff] %vm879, %v2480
        %v2482 = vsel %vm748, %v1833, %v1807
        %v2483 = vsel %vm749, %v1835, %v1809
        %v2485 = vsel %vm763, %v2477, 0
        %2487 = vmatprep.subr.mxu0 %v1668
        %2488 = vmatpush1.msra.mxu0 %v1667
        %2489 = vmatprep.subr.mxu0 %v1670
        %2490 = vmatpush1.msra.mxu0 %v1669
        %2491 = vmatprep.subr.mxu0 %v1672
        %2492 = vmatpush1.msra.mxu0 %v1671
        %2493 = vmatprep.subr.mxu0 %v1674
        %2494 = vmatpush1.msra.mxu0 %v1673
        %2495 = vmatprep.subr.mxu0 %v1676
        %2496 = vmatpush1.msra.mxu0 %v1675
        %2497 = vmatprep.subr.mxu0 %v1678
        %2498 = vmatpush1.msra.mxu0 %v1677
        %2499 = vmatprep.subr.mxu0 %v1680
        %2500 = vmatpush1.msra.mxu0 %v1679
        %2501 = vmatprep.subr.mxu0 %v1682
        %2502 = vmatpush1.msra.mxu0 %v1681
        %2503 = vmatprep.subr.mxu0 0.0
        %2504 = vmatpush1.msra.mxu0 0.0
        %2505 = vmatprep.subr.mxu0 0.0
        %2506 = vmatpush1.msra.mxu0 0.0
        %2507 = vmatprep.subr.mxu0 0.0
        %2508 = vmatpush1.msra.mxu0 0.0
        %2509 = vmatprep.subr.mxu0 0.0
        %2510 = vmatpush1.msra.mxu0 0.0
        %2511 = vmatprep.subr.mxu0 0.0
        %2512 = vmatpush1.msra.mxu0 0.0
        %2513 = vmatprep.subr.mxu0 0.0
        %2514 = vmatpush1.msra.mxu0 0.0
        %2515 = vmatprep.subr.mxu0 0.0
        %2516 = vmatpush1.msra.mxu0 0.0
        %2517 = vmatprep.subr.mxu0 0.0
        %2518 = vmatpush1.msra.mxu0 0.0
        %2519 = vmatprep.subr.mxu0 0.0
        %2520 = vmatpush1.msra.mxu0 0.0
        %2521 = vmatprep.subr.mxu0 0.0
        %2522 = vmatpush1.msra.mxu0 0.0
        %2523 = vmatprep.subr.mxu0 0.0
        %2524 = vmatpush1.msra.mxu0 0.0
        %2525 = vmatprep.subr.mxu0 0.0
        %2526 = vmatpush1.msra.mxu0 0.0
        %2527 = vmatprep.subr.mxu0 0.0
        %2528 = vmatpush1.msra.mxu0 0.0
        %2529 = vmatprep.subr.mxu0 0.0
        %2530 = vmatpush1.msra.mxu0 0.0
        %2531 = vmatprep.subr.mxu0 0.0
        %2532 = vmatpush1.msra.mxu0 0.0
        %2533 = vmatprep.subr.mxu0 0.0
        %2534 = vmatpush1.msra.mxu0 0.0
        %2535 = vmatprep.subr.mxu0 0.0
        %2536 = vmatpush1.msra.mxu0 0.0
        %2537 = vmatprep.subr.mxu0 0.0
        %2538 = vmatpush1.msra.mxu0 0.0
        %2539 = vmatprep.subr.mxu0 0.0
        %2540 = vmatpush1.msra.mxu0 0.0
        %2541 = vmatprep.subr.mxu0 0.0
        %2542 = vmatpush1.msra.mxu0 0.0
        %2543 = vmatprep.subr.mxu0 0.0
        %2544 = vmatpush1.msra.mxu0 0.0
        %2545 = vmatprep.subr.mxu0 0.0
        %2546 = vmatpush1.msra.mxu0 0.0
        %2547 = vmatprep.subr.mxu0 0.0
        %2548 = vmatpush1.msra.mxu0 0.0
        %2549 = vmatprep.subr.mxu0 0.0
        %2550 = vmatpush1.msra.mxu0 0.0
        %2551 = vmatprep.mubr.f32.mxu0 0.0
        %2552 = vmatmul.mubr.f32.gmra.mrb[0].mxu0 %v2485
        %v2553 = vpop.f32.mrb[0].mxu0
        %v2554 = vadd.f32 %v1847, %v2553
        %v2555 = vpop.f32.mrb[0].mxu0
        %v2556 = vadd.f32 %v1851, %v2555
        %2557 = vdwg.mxu0
        %v2558 = vadd.f32 %v2482, %v2554
        %v2559 = vxor.u32 %v2558, 2147483648
        %v2560 = vmul.f32 %v2559, 1.442695
        %v2561 = vpow.pop %v2560
        %v2562 = vadd.f32 %v2561, 1.0
        %v2563 = vrcp.pop %v2562
        %v2564 = vmul.f32 1.0, %v2563
        %v2565 = vmul.f32 %v2564, %v2556
        %v2566 = vadd.f32 %v2483, %v2565
        %v2567 = vtanh.pop %v2566
        %v2568 = vsub.f32 1.0, %v2564
        %2570 = vrot.lane.b32.xlu0 %v2567, 64
        %v2571 = vpop.permute.xlu0 %2570
        %v2573 = vmul.f32 %v2568, %v2571
        %2574 = vrot.lane.b32.xlu0 %v2477, 64
        %v2575 = vpop.permute.xlu0 %2574
        %v2577 = vmul.f32 %v2564, %v2575
        %v2578 = vadd.f32 %v2573, %v2577
        %2580 = vrot.lane.b32.xlu0 %v2578, 64
        %v2581 = vpop.permute.xlu0 %2580
        %v2583 = vsel %vm1549, %v2581, %v2477
        %v2584 = vmul.f32 %v2583, %v986
        %2585 = vst.msk [vmem:[#allocation2 + $0x30] sm:$0xff] %vm876, %v2584
        %v2586 = vmul.f32 %v2583, %v981
        %2587 = vst.msk [vmem:[#allocation2 + $0x8] sm:$0xff] %vm879, %v2586
        %v2588 = vsel %vm748, %v1837, %v1803
        %v2589 = vsel %vm749, %v1839, %v1805
        %v2591 = vsel %vm763, %v2583, 0
        %2593 = vmatprep.subr.mxu0 %v1668
        %2594 = vmatpush1.msra.mxu0 %v1667
        %2595 = vmatprep.subr.mxu0 %v1670
        %2596 = vmatpush1.msra.mxu0 %v1669
        %2597 = vmatprep.subr.mxu0 %v1672
        %2598 = vmatpush1.msra.mxu0 %v1671
        %2599 = vmatprep.subr.mxu0 %v1674
        %2600 = vmatpush1.msra.mxu0 %v1673
        %2601 = vmatprep.subr.mxu0 %v1676
        %2602 = vmatpush1.msra.mxu0 %v1675
        %2603 = vmatprep.subr.mxu0 %v1678
        %2604 = vmatpush1.msra.mxu0 %v1677
        %2605 = vmatprep.subr.mxu0 %v1680
        %2606 = vmatpush1.msra.mxu0 %v1679
        %2607 = vmatprep.subr.mxu0 %v1682
        %2608 = vmatpush1.msra.mxu0 %v1681
        %2609 = vmatprep.subr.mxu0 0.0
        %2610 = vmatpush1.msra.mxu0 0.0
        %2611 = vmatprep.subr.mxu0 0.0
        %2612 = vmatpush1.msra.mxu0 0.0
        %2613 = vmatprep.subr.mxu0 0.0
        %2614 = vmatpush1.msra.mxu0 0.0
        %2615 = vmatprep.subr.mxu0 0.0
        %2616 = vmatpush1.msra.mxu0 0.0
        %2617 = vmatprep.subr.mxu0 0.0
        %2618 = vmatpush1.msra.mxu0 0.0
        %2619 = vmatprep.subr.mxu0 0.0
        %2620 = vmatpush1.msra.mxu0 0.0
        %2621 = vmatprep.subr.mxu0 0.0
        %2622 = vmatpush1.msra.mxu0 0.0
        %2623 = vmatprep.subr.mxu0 0.0
        %2624 = vmatpush1.msra.mxu0 0.0
        %2625 = vmatprep.subr.mxu0 0.0
        %2626 = vmatpush1.msra.mxu0 0.0
        %2627 = vmatprep.subr.mxu0 0.0
        %2628 = vmatpush1.msra.mxu0 0.0
        %2629 = vmatprep.subr.mxu0 0.0
        %2630 = vmatpush1.msra.mxu0 0.0
        %2631 = vmatprep.subr.mxu0 0.0
        %2632 = vmatpush1.msra.mxu0 0.0
        %2633 = vmatprep.subr.mxu0 0.0
        %2634 = vmatpush1.msra.mxu0 0.0
        %2635 = vmatprep.subr.mxu0 0.0
        %2636 = vmatpush1.msra.mxu0 0.0
        %2637 = vmatprep.subr.mxu0 0.0
        %2638 = vmatpush1.msra.mxu0 0.0
        %2639 = vmatprep.subr.mxu0 0.0
        %2640 = vmatpush1.msra.mxu0 0.0
        %2641 = vmatprep.subr.mxu0 0.0
        %2642 = vmatpush1.msra.mxu0 0.0
        %2643 = vmatprep.subr.mxu0 0.0
        %2644 = vmatpush1.msra.mxu0 0.0
        %2645 = vmatprep.subr.mxu0 0.0
        %2646 = vmatpush1.msra.mxu0 0.0
        %2647 = vmatprep.subr.mxu0 0.0
        %2648 = vmatpush1.msra.mxu0 0.0
        %2649 = vmatprep.subr.mxu0 0.0
        %2650 = vmatpush1.msra.mxu0 0.0
        %2651 = vmatprep.subr.mxu0 0.0
        %2652 = vmatpush1.msra.mxu0 0.0
        %2653 = vmatprep.subr.mxu0 0.0
        %2654 = vmatpush1.msra.mxu0 0.0
        %2655 = vmatprep.subr.mxu0 0.0
        %2656 = vmatpush1.msra.mxu0 0.0
        %2657 = vmatprep.mubr.f32.mxu0 0.0
        %2658 = vmatmul.mubr.f32.gmra.mrb[0].mxu0 %v2591
        %v2659 = vpop.f32.mrb[0].mxu0
        %v2660 = vadd.f32 %v1847, %v2659
        %v2661 = vpop.f32.mrb[0].mxu0
        %v2662 = vadd.f32 %v1851, %v2661
        %2663 = vdwg.mxu0
        %v2664 = vadd.f32 %v2588, %v2660
        %v2665 = vxor.u32 %v2664, 2147483648
        %v2666 = vmul.f32 %v2665, 1.442695
        %v2667 = vpow.pop %v2666
        %v2668 = vadd.f32 %v2667, 1.0
        %v2669 = vrcp.pop %v2668
        %v2670 = vmul.f32 1.0, %v2669
        %v2671 = vmul.f32 %v2670, %v2662
        %v2672 = vadd.f32 %v2589, %v2671
        %v2673 = vtanh.pop %v2672
        %v2674 = vsub.f32 1.0, %v2670
        %2676 = vrot.lane.b32.xlu0 %v2673, 64
        %v2677 = vpop.permute.xlu0 %2676
        %v2679 = vmul.f32 %v2674, %v2677
        %2680 = vrot.lane.b32.xlu0 %v2583, 64
        %v2681 = vpop.permute.xlu0 %2680
        %v2683 = vmul.f32 %v2670, %v2681
        %v2684 = vadd.f32 %v2679, %v2683
        %2686 = vrot.lane.b32.xlu0 %v2684, 64
        %v2687 = vpop.permute.xlu0 %2686
        %v2689 = vsel %vm1657, %v2687, %v2583
        %v2690 = vmul.f32 %v2689, %v866
        %2691 = vst.msk [vmem:[#allocation2 + $0x38] sm:$0xff] %vm876, %v2690
        %v2692 = vmul.f32 %v2689, %v861
        %2693 = vst.msk [vmem:[#allocation2] sm:$0xff] %vm879, %v2692
        %v2694 = vld [vmem:[#allocation2] sm:$0xff]
        %v2695 = vld [vmem:[#allocation2 + $0x8] sm:$0xff]
        %v2696 = vld [vmem:[#allocation2 + $0x10] sm:$0xff]
        %v2697 = vld [vmem:[#allocation2 + $0x18] sm:$0xff]
        %v2698 = vld [vmem:[#allocation2 + $0x20] sm:$0xff]
        %v2699 = vld [vmem:[#allocation2 + $0x28] sm:$0xff]
        %v2700 = vld [vmem:[#allocation2 + $0x30] sm:$0xff]
        %v2701 = vld [vmem:[#allocation2 + $0x38] sm:$0xff]
        %v2702 = vld [vmem:[%s10] sm:$0x1]
        %v2704 = vlaneseq
        %v2705 = vshrl.u32 %v2704, 7
        %v2706 = vsub.s32 0, %v2705
        %v2707 = vrot.slane %v2702, %v2706
        %v2709 = vmul.f32 %v2694, %v2707
        %v2710 = vmul.f32 %v2695, %v2707
        %v2711 = vmul.f32 %v2696, %v2707
        %v2712 = vmul.f32 %v2697, %v2707
        %v2713 = vmul.f32 %v2698, %v2707
        %v2714 = vmul.f32 %v2699, %v2707
        %v2715 = vmul.f32 %v2700, %v2707
        %v2716 = vmul.f32 %v2701, %v2707
        %v2717 = vsel %vm763, %v2709, 0.0
        %2718 = vadd.xlane.f32.xlu0 %v2717
        %v2719 = vpop.xlane.xlu0 %2718
        %v2720 = vsel %vm763, %v2710, 0.0
        %2721 = vadd.xlane.f32.xlu0 %v2720
        %v2722 = vpop.xlane.xlu0 %2721
        %v2723 = vsel %vm763, %v2711, 0.0
        %2724 = vadd.xlane.f32.xlu0 %v2723
        %v2725 = vpop.xlane.xlu0 %2724
        %v2726 = vsel %vm763, %v2712, 0.0
        %2727 = vadd.xlane.f32.xlu0 %v2726
        %v2728 = vpop.xlane.xlu0 %2727
        %v2729 = vsel %vm763, %v2713, 0.0
        %2730 = vadd.xlane.f32.xlu0 %v2729
        %v2731 = vpop.xlane.xlu0 %2730
        %v2732 = vsel %vm763, %v2714, 0.0
        %2733 = vadd.xlane.f32.xlu0 %v2732
        %v2734 = vpop.xlane.xlu0 %2733
        %v2735 = vsel %vm763, %v2715, 0.0
        %2736 = vadd.xlane.f32.xlu0 %v2735
        %v2737 = vpop.xlane.xlu0 %2736
        %v2738 = vsel %vm763, %v2716, 0.0
        %2739 = vadd.xlane.f32.xlu0 %v2738
        %v2740 = vpop.xlane.xlu0 %2739
        %v2741 = vmax.f32 %v2719, %v2722
        %v2742 = vmax.f32 %v2741, %v2725
        %v2743 = vmax.f32 %v2742, %v2728
        %v2744 = vmax.f32 %v2743, %v2731
        %v2745 = vmax.f32 %v2744, %v2734
        %v2746 = vmax.f32 %v2745, %v2737
        %v2747 = vmax.f32 %v2746, %v2740
        %v2748 = vsub.f32 %v2719, %v2747
        %v2749 = vmul.f32 %v2748, 1.442695
        %v2750 = vpow.pop %v2749
        %v2751 = vmul.f32 %v2750, %v540
        %v2752 = vadd.f32 %v2751, 0.0
        %v2753 = vsub.f32 %v2722, %v2747
        %v2754 = vmul.f32 %v2753, 1.442695
        %v2755 = vpow.pop %v2754
        %v2756 = vmul.f32 %v2755, %v541
        %v2757 = vadd.f32 %v2752, %v2756
        %v2758 = vsub.f32 %v2725, %v2747
        %v2759 = vmul.f32 %v2758, 1.442695
        %v2760 = vpow.pop %v2759
        %v2761 = vmul.f32 %v2760, %v542
        %v2762 = vadd.f32 %v2757, %v2761
        %v2763 = vsub.f32 %v2728, %v2747
        %v2764 = vmul.f32 %v2763, 1.442695
        %v2765 = vpow.pop %v2764
        %v2766 = vmul.f32 %v2765, %v543
        %v2767 = vadd.f32 %v2762, %v2766
        %v2768 = vsub.f32 %v2731, %v2747
        %v2769 = vmul.f32 %v2768, 1.442695
        %v2770 = vpow.pop %v2769
        %v2771 = vmul.f32 %v2770, %v544
        %v2772 = vadd.f32 %v2767, %v2771
        %v2773 = vsub.f32 %v2734, %v2747
        %v2774 = vmul.f32 %v2773, 1.442695
        %v2775 = vpow.pop %v2774
        %v2776 = vmul.f32 %v2775, %v545
        %v2777 = vadd.f32 %v2772, %v2776
        %v2778 = vsub.f32 %v2737, %v2747
        %v2779 = vmul.f32 %v2778, 1.442695
        %v2780 = vpow.pop %v2779
        %v2781 = vmul.f32 %v2780, %v546
        %v2782 = vadd.f32 %v2777, %v2781
        %v2783 = vsub.f32 %v2740, %v2747
        %v2784 = vmul.f32 %v2783, 1.442695
        %v2785 = vpow.pop %v2784
        %v2786 = vmul.f32 %v2785, %v547
        %v2787 = vadd.f32 %v2782, %v2786
        %vm2788 = vcmp.eq.f32.partialorder %v2787, 0.0
        %v2789 = vsel %vm2788, 1, 0
        %v2790 = vcvt.s32.f32 %v2789
        %v2791 = vadd.f32 %v2787, %v2790
        %v2792 = vrcp.pop %v2791
        %v2793 = vmul.f32 1.0, %v2792
        %v2794 = vmul.f32 %v2751, %v2793
        %2796 = vset.pattern.permute.xlu0 0
        %2797 = vperm.xlu0 %2796, %v2794
        %v2798 = vpop.permute.xlu0 %2797
        %v2800 = vmul.f32 %v2694, %v2798
        %v2801 = vadd.f32 %v2800, 0.0
        %v2802 = vmul.f32 %v2756, %v2793
        %2804 = vset.pattern.permute.xlu0 0
        %2805 = vperm.xlu0 %2804, %v2802
        %v2806 = vpop.permute.xlu0 %2805
        %v2808 = vmul.f32 %v2695, %v2806
        %v2809 = vadd.f32 %v2801, %v2808
        %v2810 = vmul.f32 %v2761, %v2793
        %2812 = vset.pattern.permute.xlu0 0
        %2813 = vperm.xlu0 %2812, %v2810
        %v2814 = vpop.permute.xlu0 %2813
        %v2816 = vmul.f32 %v2696, %v2814
        %v2817 = vadd.f32 %v2809, %v2816
        %v2818 = vmul.f32 %v2766, %v2793
        %2820 = vset.pattern.permute.xlu0 0
        %2821 = vperm.xlu0 %2820, %v2818
        %v2822 = vpop.permute.xlu0 %2821
        %v2824 = vmul.f32 %v2697, %v2822
        %v2825 = vadd.f32 %v2817, %v2824
        %v2826 = vmul.f32 %v2771, %v2793
        %2828 = vset.pattern.permute.xlu0 0
        %2829 = vperm.xlu0 %2828, %v2826
        %v2830 = vpop.permute.xlu0 %2829
        %v2832 = vmul.f32 %v2698, %v2830
        %v2833 = vadd.f32 %v2825, %v2832
        %v2834 = vmul.f32 %v2776, %v2793
        %2836 = vset.pattern.permute.xlu0 0
        %2837 = vperm.xlu0 %2836, %v2834
        %v2838 = vpop.permute.xlu0 %2837
        %v2840 = vmul.f32 %v2699, %v2838
        %v2841 = vadd.f32 %v2833, %v2840
        %v2842 = vmul.f32 %v2781, %v2793
        %2844 = vset.pattern.permute.xlu0 0
        %2845 = vperm.xlu0 %2844, %v2842
        %v2846 = vpop.permute.xlu0 %2845
        %v2848 = vmul.f32 %v2700, %v2846
        %v2849 = vadd.f32 %v2841, %v2848
        %v2850 = vmul.f32 %v2786, %v2793
        %2852 = vset.pattern.permute.xlu0 0
        %2853 = vperm.xlu0 %2852, %v2850
        %v2854 = vpop.permute.xlu0 %2853
        %v2856 = vmul.f32 %v2701, %v2854
        %v2857 = vadd.f32 %v2849, %v2856
        %v2858 = vld [vmem:[%s11] sm:$0x1]
        %v2860 = vlaneseq
        %v2861 = vshrl.u32 %v2860, 7
        %v2862 = vsub.s32 0, %v2861
        %v2863 = vrot.slane %v2858, %v2862
        %v2865 = vmul.f32 %v2857, %v2863
        %v2866 = vsel %vm763, %v2865, 0.0
        %2867 = vadd.xlane.f32.xlu0 %v2866
        %v2868 = vpop.xlane.xlu0 %2867
        %v2869 = vrot.slane %v2868, 4
        %v2870 = vmax.f32 %v2868, %v2869
        %v2871 = vrot.slane %v2870, 2
        %v2872 = vmax.f32 %v2870, %v2871
        %v2873 = vrot.slane %v2872, 1
        %v2874 = vmax.f32 %v2872, %v2873
        %v2875 = vsub.f32 %v2868, %v2874
        %v2876 = vmax.f32 %v540, %v541
        %v2877 = vmax.f32 %v2876, %v542
        %v2878 = vmax.f32 %v2877, %v543
        %v2879 = vmax.f32 %v2878, %v544
        %v2880 = vmax.f32 %v2879, %v545
        %v2881 = vmax.f32 %v2880, %v546
        %v2882 = vmax.f32 %v2881, %v547
        %v2883 = vmul.f32 %v2875, 1.442695
        %v2884 = vpow.pop %v2883
        %v2885 = vmul.f32 %v2884, %v2882
        %vm2886 = vcmask 7168
        %v2887 = vsel %vm2886, %v2885, 0.0
        %v2888 = vrot.slane %v2887, 4
        %v2889 = vadd.f32 %v2887, %v2888
        %v2890 = vrot.slane %v2889, 2
        %v2891 = vadd.f32 %v2889, %v2890
        %v2892 = vrot.slane %v2891, 1
        %v2893 = vadd.f32 %v2891, %v2892
        %v2894 = vrcp.pop %v2893
        %v2895 = vmul.f32 %v2885, %v2894
        %2897 = vset.pattern.permute.xlu0 0
        %2898 = vperm.xlu0 %2897, %v2895
        %v2899 = vpop.permute.xlu0 %2898
        %v2901 = vmul.f32 %v2857, %v2899
        %v2902 = vsel %vm763, %v2901, 0.0
        %v2903 = vrot.slane %v2902, 4
        %v2904 = vadd.f32 %v2902, %v2903
        %v2905 = vrot.slane %v2904, 2
        %v2906 = vadd.f32 %v2904, %v2905
        %v2907 = vrot.slane %v2906, 1
        %v2908 = vadd.f32 %v2906, %v2907
        %v2909 = vld [vmem:[%s12] sm:$0xff]
        %v2910 = vld [vmem:[%s12 + $0x8] sm:$0xff]
        %v2911 = vld [vmem:[%s12 + $0x10] sm:$0xff]
        %v2912 = vld [vmem:[%s12 + $0x18] sm:$0xff]
        %v2913 = vld [vmem:[%s12 + $0x20] sm:$0xff]
        %v2914 = vld [vmem:[%s12 + $0x28] sm:$0xff]
        %v2915 = vld [vmem:[%s12 + $0x30] sm:$0xff]
        %v2916 = vld [vmem:[%s12 + $0x38] sm:$0xff]
        %v2917 = vld [vmem:[%s13] sm:$0x1]
        %v2919 = vsel %vm763, %v2908, 0
        %2921 = vmatprep.subr.mxu0 0.0
        %2922 = vmatpush1.msra.mxu0 %v2909
        %2923 = vmatprep.subr.mxu0 0.0
        %2924 = vmatpush1.msra.mxu0 %v2910
        %2925 = vmatprep.subr.mxu0 0.0
        %2926 = vmatpush1.msra.mxu0 %v2911
        %2927 = vmatprep.subr.mxu0 0.0
        %2928 = vmatpush1.msra.mxu0 %v2912
        %2929 = vmatprep.subr.mxu0 0.0
        %2930 = vmatpush1.msra.mxu0 %v2913
        %2931 = vmatprep.subr.mxu0 0.0
        %2932 = vmatpush1.msra.mxu0 %v2914
        %2933 = vmatprep.subr.mxu0 0.0
        %2934 = vmatpush1.msra.mxu0 %v2915
        %2935 = vmatprep.subr.mxu0 0.0
        %2936 = vmatpush1.msra.mxu0 %v2916
        %2937 = vmatprep.subr.mxu0 0.0
        %2938 = vmatpush1.msra.mxu0 0.0
        %2939 = vmatprep.subr.mxu0 0.0
        %2940 = vmatpush1.msra.mxu0 0.0
        %2941 = vmatprep.subr.mxu0 0.0
        %2942 = vmatpush1.msra.mxu0 0.0
        %2943 = vmatprep.subr.mxu0 0.0
        %2944 = vmatpush1.msra.mxu0 0.0
        %2945 = vmatprep.subr.mxu0 0.0
        %2946 = vmatpush1.msra.mxu0 0.0
        %2947 = vmatprep.subr.mxu0 0.0
        %2948 = vmatpush1.msra.mxu0 0.0
        %2949 = vmatprep.subr.mxu0 0.0
        %2950 = vmatpush1.msra.mxu0 0.0
        %2951 = vmatprep.subr.mxu0 0.0
        %2952 = vmatpush1.msra.mxu0 0.0
        %2953 = vmatprep.subr.mxu0 0.0
        %2954 = vmatpush1.msra.mxu0 0.0
        %2955 = vmatprep.subr.mxu0 0.0
        %2956 = vmatpush1.msra.mxu0 0.0
        %2957 = vmatprep.subr.mxu0 0.0
        %2958 = vmatpush1.msra.mxu0 0.0
        %2959 = vmatprep.subr.mxu0 0.0
        %2960 = vmatpush1.msra.mxu0 0.0
        %2961 = vmatprep.subr.mxu0 0.0
        %2962 = vmatpush1.msra.mxu0 0.0
        %2963 = vmatprep.subr.mxu0 0.0
        %2964 = vmatpush1.msra.mxu0 0.0
        %2965 = vmatprep.subr.mxu0 0.0
        %2966 = vmatpush1.msra.mxu0 0.0
        %2967 = vmatprep.subr.mxu0 0.0
        %2968 = vmatpush1.msra.mxu0 0.0
        %2969 = vmatprep.subr.mxu0 0.0
        %2970 = vmatpush1.msra.mxu0 0.0
        %2971 = vmatprep.subr.mxu0 0.0
        %2972 = vmatpush1.msra.mxu0 0.0
        %2973 = vmatprep.subr.mxu0 0.0
        %2974 = vmatpush1.msra.mxu0 0.0
        %2975 = vmatprep.subr.mxu0 0.0
        %2976 = vmatpush1.msra.mxu0 0.0
        %2977 = vmatprep.subr.mxu0 0.0
        %2978 = vmatpush1.msra.mxu0 0.0
        %2979 = vmatprep.subr.mxu0 0.0
        %2980 = vmatpush1.msra.mxu0 0.0
        %2981 = vmatprep.subr.mxu0 0.0
        %2982 = vmatpush1.msra.mxu0 0.0
        %2983 = vmatprep.subr.mxu0 0.0
        %2984 = vmatpush1.msra.mxu0 0.0
        %2985 = vmatprep.mubr.f32.mxu0 0.0
        %2986 = vmatmul.mubr.f32.gmra.mrb[0].mxu0 %v2919
        %v2987 = vpop.f32.mrb[0].mxu0
        %v2988 = vadd.f32 %v2917, %v2987
        %v2989 = vpop.f32.mrb[0].mxu0
        %2990 = vdwg.mxu0
        %v2991 = vmax.f32 %v2988, 0.0
        %v2992 = vld [vmem:[%s14] sm:$0xff]
        %v2993 = vld [vmem:[%s14 + $0x8] sm:$0xff]
        %v2994 = vld [vmem:[%s14 + $0x10] sm:$0xff]
        %v2995 = vld [vmem:[%s14 + $0x18] sm:$0xff]
        %v2996 = vld [vmem:[%s15] sm:$0x1]
        %v2998 = vsel %vm876, %v2991, 0
        %3000 = vmatprep.subr.mxu0 0.0
        %3001 = vmatpush1.msra.mxu0 %v2992
        %3002 = vmatprep.subr.mxu0 0.0
        %3003 = vmatpush1.msra.mxu0 %v2993
        %3004 = vmatprep.subr.mxu0 0.0
        %3005 = vmatpush1.msra.mxu0 %v2994
        %3006 = vmatprep.subr.mxu0 0.0
        %3007 = vmatpush1.msra.mxu0 %v2995
        %3008 = vmatprep.subr.mxu0 0.0
        %3009 = vmatpush1.msra.mxu0 0.0
        %3010 = vmatprep.subr.mxu0 0.0
        %3011 = vmatpush1.msra.mxu0 0.0
        %3012 = vmatprep.subr.mxu0 0.0
        %3013 = vmatpush1.msra.mxu0 0.0
        %3014 = vmatprep.subr.mxu0 0.0
        %3015 = vmatpush1.msra.mxu0 0.0
        %3016 = vmatprep.subr.mxu0 0.0
        %3017 = vmatpush1.msra.mxu0 0.0
        %3018 = vmatprep.subr.mxu0 0.0
        %3019 = vmatpush1.msra.mxu0 0.0
        %3020 = vmatprep.subr.mxu0 0.0
        %3021 = vmatpush1.msra.mxu0 0.0
        %3022 = vmatprep.subr.mxu0 0.0
        %3023 = vmatpush1.msra.mxu0 0.0
        %3024 = vmatprep.subr.mxu0 0.0
        %3025 = vmatpush1.msra.mxu0 0.0
        %3026 = vmatprep.subr.mxu0 0.0
        %3027 = vmatpush1.msra.mxu0 0.0
        %3028 = vmatprep.subr.mxu0 0.0
        %3029 = vmatpush1.msra.mxu0 0.0
        %3030 = vmatprep.subr.mxu0 0.0
        %3031 = vmatpush1.msra.mxu0 0.0
        %3032 = vmatprep.subr.mxu0 0.0
        %3033 = vmatpush1.msra.mxu0 0.0
        %3034 = vmatprep.subr.mxu0 0.0
        %3035 = vmatpush1.msra.mxu0 0.0
        %3036 = vmatprep.subr.mxu0 0.0
        %3037 = vmatpush1.msra.mxu0 0.0
        %3038 = vmatprep.subr.mxu0 0.0
        %3039 = vmatpush1.msra.mxu0 0.0
        %3040 = vmatprep.subr.mxu0 0.0
        %3041 = vmatpush1.msra.mxu0 0.0
        %3042 = vmatprep.subr.mxu0 0.0
        %3043 = vmatpush1.msra.mxu0 0.0
        %3044 = vmatprep.subr.mxu0 0.0
        %3045 = vmatpush1.msra.mxu0 0.0
        %3046 = vmatprep.subr.mxu0 0.0
        %3047 = vmatpush1.msra.mxu0 0.0
        %3048 = vmatprep.subr.mxu0 0.0
        %3049 = vmatpush1.msra.mxu0 0.0
        %3050 = vmatprep.subr.mxu0 0.0
        %3051 = vmatpush1.msra.mxu0 0.0
        %3052 = vmatprep.subr.mxu0 0.0
        %3053 = vmatpush1.msra.mxu0 0.0
        %3054 = vmatprep.subr.mxu0 0.0
        %3055 = vmatpush1.msra.mxu0 0.0
        %3056 = vmatprep.subr.mxu0 0.0
        %3057 = vmatpush1.msra.mxu0 0.0
        %3058 = vmatprep.subr.mxu0 0.0
        %3059 = vmatpush1.msra.mxu0 0.0
        %3060 = vmatprep.subr.mxu0 0.0
        %3061 = vmatpush1.msra.mxu0 0.0
        %3062 = vmatprep.subr.mxu0 0.0
        %3063 = vmatpush1.msra.mxu0 0.0
        %3064 = vmatprep.mubr.f32.mxu0 0.0
        %3065 = vmatmul.mubr.f32.gmra.mrb[0].mxu0 %v2998
        %v3066 = vpop.f32.mrb[0].mxu0
        %v3067 = vadd.f32 %v2996, %v3066
        %v3068 = vpop.f32.mrb[0].mxu0
        %3069 = vdwg.mxu0
        %vm3070 = vcmask 32768
        %3071 = vst.msk [vmem:[%s528] sm:$0x1] %vm3070, %v3067
        %s3072 = sand.u32 %s384, 1
        %s3073 = scalar_lea.sflag [#allocation4], %s3072
        %s3074 = sand.u32 %s384, 1
        %s3075 = scalar_lea.vmem [#allocation3], %s3074
        // Predicated region
        $region85: #{dds_forward.1} parent=83 // pred_check
          %p3076 = pneg %p394
        $region86: #{dds_forward.1} parent=83 // pred_check_branch
          %3078 = sbr.rel (%p3076) target = $region88
        $region87: #{dds_forward.1} parent=83 // pred_region
          %s3080 = ssub.s32 16, 16
          %3081 = vsyncadd %s3073, %s3080
          %s3082 = smul.addr %s30, 16
          %s3083 = scalar_lea.hbm %s16, %s3082
          %s3085 = sshll.u32 %s3075, 4
          %s3086 = int_to_ptr.vmem [resolvable:$true] %s3085
          %3088 = dma.vmem_to_hbm [thread:$0]  %s3086, 16, %s3083, %s3073
        $region88: #{dds_forward.1} parent=83 // pred_fallthru
          _
      $region84: #{dds_forward.1} parent=5 // pred_fallthru
        _
      %p3089 = scmp.le.s32.totalorder 2, %s25
      // Predicated region
      $region89: #{dds_forward.1} parent=5 // pred_check
        %p3090 = pneg %p3089
      $region90: #{dds_forward.1} parent=5 // pred_check_branch
        %3092 = sbr.rel (%p3090) target = $region92
      $region91: #{dds_forward.1} parent=5 // pred_region
        %s3093 = ssub.s32 %s25, 2
        // Predicated region
        $region93: #{dds_forward.1} parent=91 // pred_check
          %p3094 = pneg %p400
        $region94: #{dds_forward.1} parent=91 // pred_check_branch
          %3096 = sbr.rel (%p3094) target = $region96
        $region95: #{dds_forward.1} parent=91 // pred_region
          %s3097 = sand.u32 %s385, 1
          %s3098 = scalar_lea.sflag [#allocation4], %s3097
          %s3099 = sand.u32 %s385, 1
          %s3100 = scalar_lea.vmem [#allocation3], %s3099
          %3101 = dma.done %s3098, 16
        $region96: #{dds_forward.1} parent=91 // pred_fallthru
          _
      $region92: #{dds_forward.1} parent=5 // pred_fallthru
        _
    $region6: #{dds_forward.1} parent=1 // loop_footer
      %s29 = sadd.s32 1, %s25
    $region7: #{dds_forward.1} parent=1 // loop_footer_branch
      %24 = sbr.rel target = $region3
    $region8: #{dds_forward.1} parent=1 // loop_exit
      _
    %3102 = vsyncpa [#allocation4], 1
    %s3103 = scalar_lea.sflag [#allocation4], 1
    %3104 = vsyncpa %s3103, 1

</llo_original>
